<compile_context>
chip_gen: v6e
topology: v6e:2x2x1
jax: 0.10.0
libtpu: 0.0.40
codegen_flags: <defaults>
</compile_context>

<pallas_src>
from functools import partial

import numpy as np
import jax
import jax.numpy as jnp
from jax.experimental import pallas as pl
from jax.experimental.pallas import tpu as pltpu

NEG = -float(np.finfo(np.float32).max)   # torch max_neg_value(float32)
LN_EPS = 1e-5
DEFAULT_TM = 256                         # row tile for row-parallel kernels (tunable)
VMEM_LIMIT = 48 * 1024 * 1024            # above the default scoped limit on all generations


# ---------------------------------------------------------------------------
# In-kernel helpers (traced inline)
# ---------------------------------------------------------------------------

def _adaptive_layer_norm(x, c, cond_ln_g, wg, bg, wb):
    """AdaptiveLayerNorm (Algorithm 26). x:(tm,d) f32, c:(tm,dc) f32, wg/wb bf16."""
    xm = jnp.mean(x, axis=-1, keepdims=True)
    xc = x - xm
    xv = jnp.mean(xc * xc, axis=-1, keepdims=True)
    x_n = xc * jax.lax.rsqrt(xv + LN_EPS)                       # LN(dim), no affine

    cm = jnp.mean(c, axis=-1, keepdims=True)
    cc = c - cm
    cv = jnp.mean(cc * cc, axis=-1, keepdims=True)
    c_n = cc * jax.lax.rsqrt(cv + LN_EPS) * cond_ln_g           # LN(dim_cond), weight only

    c_nb = c_n.astype(wg.dtype)                                 # bf16 MXU operands
    gamma = jax.nn.sigmoid(
        jnp.dot(c_nb, wg, preferred_element_type=jnp.float32) + bg)
    beta = jnp.dot(c_nb, wb, preferred_element_type=jnp.float32)
    return x_n * gamma + beta


# ---------------------------------------------------------------------------
# Pallas kernels
# ---------------------------------------------------------------------------

def _cond_transition_kernel(x_ref, c_ref,
                            cond_ln_g_ref, wg_ref, bg_ref, wb_ref,
                            w1v_ref, w1g_ref, w2_ref,
                            wz_ref, bz_ref,
                            o_ref):
    """Fully fused ConditionWrapper(fn=Transition): AdaLN -> SwiGLU FF -> zero-gamma gate."""
    x = x_ref[...]
    c = c_ref[...]
    xa = _adaptive_layer_norm(x, c, cond_ln_g_ref[...],
                              wg_ref[...], bg_ref[...], wb_ref[...])
    xab = xa.astype(w1v_ref.dtype)
    # SwiGLU with split value/gate weights (avoids lane-axis slicing of one wide matmul result)
    val = jnp.dot(xab, w1v_ref[...], preferred_element_type=jnp.float32)
    gate = jnp.dot(xab, w1g_ref[...], preferred_element_type=jnp.float32)
    h = jax.nn.silu(gate) * val                                 # f32 elementwise
    y = jnp.dot(h.astype(w2_ref.dtype), w2_ref[...],
                preferred_element_type=jnp.float32)
    # adaln-zero gamma uses the *raw* cond
    gz = jax.nn.sigmoid(
        jnp.dot(c.astype(wz_ref.dtype), wz_ref[...],
                preferred_element_type=jnp.float32) + bz_ref[...])
    o_ref[...] = (y * gz).astype(o_ref.dtype)


def _adaln_qkvg_kernel(x_ref, c_ref,
                       cond_ln_g_ref, wg_ref, bg_ref, wb_ref,
                       wqkvg_ref, bqkvg_ref,
                       o_ref):
    """Fused AdaLN + concatenated [q | k | v | gate] projection (lane-dense 4*h*dh output)."""
    xa = _adaptive_layer_norm(x_ref[...], c_ref[...], cond_ln_g_ref[...],
                              wg_ref[...], bg_ref[...], wb_ref[...])
    y = jnp.dot(xa.astype(wqkvg_ref.dtype), wqkvg_ref[...],
                preferred_element_type=jnp.float32) + bqkvg_ref[...]
    o_ref[...] = y.astype(o_ref.dtype)                          # bf16 out: halves HBM traffic


def _ln_linear_kernel(x_ref, g_ref, b_ref, w_ref, o_ref):
    """Fused LayerNorm(affine) + LinearNoBias (pairwise -> per-head attention bias)."""
    x = x_ref[...]
    mu = jnp.mean(x, axis=-1, keepdims=True)
    xc = x - mu
    var = jnp.mean(xc * xc, axis=-1, keepdims=True)
    xn = xc * jax.lax.rsqrt(var + LN_EPS) * g_ref[...] + b_ref[...]
    o_ref[...] = jnp.dot(xn.astype(w_ref.dtype), w_ref[...],
                         preferred_element_type=jnp.float32).astype(o_ref.dtype)


def _attn_core_kernel(q_ref, k_ref, v_ref, bias_ref, mask_ref, o_ref, *, scale):
    """Per-(batch, head) attention: scores + pair bias + key mask + softmax + PV."""
    q = q_ref[0, 0]                                   # (n, dh) bf16
    k = k_ref[0, 0]
    v = v_ref[0, 0]
    # q @ k^T without materializing a transposed copy of K: contract last dims on the MXU
    s = jax.lax.dot_general(q, k, (((1,), (1,)), ((), ())),
                            preferred_element_type=jnp.float32)
    s = s * scale + bias_ref[0, 0]
    s = jnp.where(mask_ref[0, 0] > 0, s, NEG)         # (1,n) key mask broadcast in-kernel
    s = s - jnp.max(s, axis=-1, keepdims=True)
    p = jnp.exp(s)
    p = p * pl.reciprocal(jnp.sum(p, axis=-1, keepdims=True), approx=True)
    o_ref[0, 0] = jnp.dot(p.astype(v.dtype), v,
                          preferred_element_type=jnp.float32).astype(o_ref.dtype)


def _attn_out_kernel(a_ref, g_ref, c_ref, wo_ref, wz_ref, bz_ref, o_ref):
    """Fused attention gating + output projection + adaln-zero gamma gate."""
    a = a_ref[...].astype(jnp.float32)
    g = g_ref[...].astype(jnp.float32)
    gated = (a * jax.nn.sigmoid(g)).astype(wo_ref.dtype)
    y = jnp.dot(gated, wo_ref[...], preferred_element_type=jnp.float32)
    gz = jax.nn.sigmoid(
        jnp.dot(c_ref[...].astype(wz_ref.dtype), wz_ref[...],
                preferred_element_type=jnp.float32) + bz_ref[...])
    o_ref[...] = (y * gz).astype(o_ref.dtype)


# ---------------------------------------------------------------------------
# Generic row-tiled pallas_call wrapper
# ---------------------------------------------------------------------------

def _round_up(x, m):
    return (x + m - 1) // m * m


def _row_tiled_call(kernel, row_inputs, const_inputs, out_dim, tm,
                    out_dtype=jnp.float32):
    """Row-parallel kernel over flattened (m, K) inputs with resident (2-D) constants.

    Uses a pl.cdiv grid; partial last blocks are handled by Pallas masked writes. Every row
    is independent, so garbage rows in the padded region never affect kept outputs.
    """
    m = row_inputs[0].shape[0]
    m8 = _round_up(m, 8)
    if m8 != m:                       # tiny (<8 row) pad only to satisfy the sublane multiple
        row_inputs = [jnp.pad(r, ((0, m8 - m), (0, 0))) for r in row_inputs]
    tile = min(tm, m8)
    tile = max(8, (tile // 8) * 8)
    grid = (pl.cdiv(m8, tile),)

    in_specs = [pl.BlockSpec((tile, r.shape[1]), lambda i: (i, 0)) for r in row_inputs]
    in_specs += [pl.BlockSpec(c.shape, lambda i: (0, 0)) for c in const_inputs]

    out = pl.pallas_call(
        kernel,
        out_shape=jax.ShapeDtypeStruct((m8, out_dim), out_dtype),
        grid=grid,
        in_specs=in_specs,
        out_specs=pl.BlockSpec((tile, out_dim), lambda i: (i, 0)),
        compiler_params=pltpu.CompilerParams(
            dimension_semantics=("parallel",),
            vmem_limit_bytes=VMEM_LIMIT),
    )(*row_inputs, *const_inputs)
    return out[:m] if m8 != m else out


# ---------------------------------------------------------------------------
# ConditionWrapper forward passes
# ---------------------------------------------------------------------------

def condition_wrapper_transition(x, cond, params, *, tm=DEFAULT_TM):
    """ConditionWrapper(fn=Transition) forward, one fused Pallas kernel."""
    b, n, d = x.shape
    dc = cond.shape[-1]
    bf = jnp.bfloat16
    p = params
    consts = [
        p["cond_ln_g"].reshape(1, dc),
        p["ada_gamma_w"].astype(bf), p["ada_gamma_b"].reshape(1, d),
        p["ada_beta_w"].astype(bf),
        p["ff_w1_val"].astype(bf), p["ff_w1_gate"].astype(bf), p["ff_w2"].astype(bf),
        p["zero_gamma_w"].astype(bf), p["zero_gamma_b"].reshape(1, d),
    ]
    out = _row_tiled_call(_cond_transition_kernel,
                          [x.reshape(-1, d), cond.reshape(-1, dc)],
                          consts, d, tm)
    return out.reshape(b, n, d)


def condition_wrapper_attention_pair_bias(x, cond, pairwise, mask, params, *,
                                          heads, dim_head, tm=DEFAULT_TM):
    """ConditionWrapper(fn=AttentionPairBias) forward (attn_bias kwarg = None path)."""
    b, n, d = x.shape
    dc = cond.shape[-1]
    dp = pairwise.shape[-1]
    hd = heads * dim_head
    bf = jnp.bfloat16
    p = params

    # 1) fused AdaLN + concatenated [q | k | v | gate] projection (one matmul, lane-dense)
    w_qkvg = jnp.concatenate(
        [p["attn_q_w"], p["attn_kv_w"], p["attn_gate_w"]], axis=1).astype(bf)        # (d, 4*hd)
    b_qkvg = jnp.concatenate(
        [p["attn_q_b"], jnp.zeros((2 * hd,), jnp.float32), p["attn_gate_b"]]).reshape(1, 4 * hd)
    consts = [
        p["cond_ln_g"].reshape(1, dc),
        p["ada_gamma_w"].astype(bf), p["ada_gamma_b"].reshape(1, d),
        p["ada_beta_w"].astype(bf),
        w_qkvg, b_qkvg,
    ]
    qkvg = _row_tiled_call(_adaln_qkvg_kernel,
                           [x.reshape(-1, d), cond.reshape(-1, dc)],
                           consts, 4 * hd, tm, out_dtype=bf)                          # (b*n, 4hd)
    qkvg = qkvg.reshape(b, n, 4, heads, dim_head)
    q = qkvg[:, :, 0].transpose(0, 2, 1, 3)                                           # (b,h,n,dh)
    k = qkvg[:, :, 1].transpose(0, 2, 1, 3)
    v = qkvg[:, :, 2].transpose(0, 2, 1, 3)
    gate_pre = qkvg[:, :, 3].reshape(b * n, hd)                                       # (b*n, hd)

    # 2) pairwise attention bias: fused LayerNorm + LinearNoBias(dp -> heads)
    bias_flat = _row_tiled_call(
        _ln_linear_kernel,
        [pairwise.reshape(-1, dp)],
        [p["attn_bias_ln_g"].reshape(1, dp),
         p["attn_bias_ln_b"].reshape(1, dp),
         p["attn_bias_w"].astype(bf)],
        heads, tm)                                                                    # (b*n*n, h)
    attn_bias = bias_flat.reshape(b, n, n, heads).transpose(0, 3, 1, 2)               # (b,h,n,n)

    # 3) attention core over grid (batch, head); key mask stays un-broadcast (b,1,1,n)
    maskf = mask.astype(jnp.float32).reshape(b, 1, 1, n)
    attn = pl.pallas_call(
        partial(_attn_core_kernel, scale=dim_head ** -0.5),
        out_shape=jax.ShapeDtypeStruct((b, heads, n, dim_head), bf),
        grid=(b, heads),
        in_specs=[
            pl.BlockSpec((1, 1, n, dim_head), lambda bi, hi: (bi, hi, 0, 0)),
            pl.BlockSpec((1, 1, n, dim_head), lambda bi, hi: (bi, hi, 0, 0)),
            pl.BlockSpec((1, 1, n, dim_head), lambda bi, hi: (bi, hi, 0, 0)),
            pl.BlockSpec((1, 1, n, n), lambda bi, hi: (bi, hi, 0, 0)),
            pl.BlockSpec((1, 1, 1, n), lambda bi, hi: (bi, 0, 0, 0)),   # mask reused across heads
        ],
        out_specs=pl.BlockSpec((1, 1, n, dim_head), lambda bi, hi: (bi, hi, 0, 0)),
        compiler_params=pltpu.CompilerParams(
            dimension_semantics=("parallel", "parallel"),
            vmem_limit_bytes=VMEM_LIMIT),
    )(q, k, v, attn_bias, maskf)                                                      # (b,h,n,dh)
    attn = attn.transpose(0, 2, 1, 3).reshape(b * n, hd)

    # 4) fused attention gating + output projection + adaln-zero gamma
    out = _row_tiled_call(_attn_out_kernel,
                          [attn, gate_pre, cond.reshape(-1, dc)],
                          [p["attn_out_w"].astype(bf),
                           p["zero_gamma_w"].astype(bf),
                           p["zero_gamma_b"].reshape(1, d)],
                          d, tm)
    return out.reshape(b, n, d)


# ---------------------------------------------------------------------------
# Deterministic parameter init (torch default inits, plus the spec'd zero inits)
# ---------------------------------------------------------------------------

def _torch_linear_init(key, din, dout, *, bias=True):
    bound = 1.0 / np.sqrt(din)
    kw, kb = jax.random.split(key)
    w = jax.random.uniform(kw, (din, dout), jnp.float32, -bound, bound)
    b = jax.random.uniform(kb, (dout,), jnp.float32, -bound, bound) if bias else None
    return w, b


def init_condition_wrapper_params(key, *, dim, dim_cond, fn, heads=None, dim_head=None,
                                  dim_pairwise=None, expansion_factor=4,
                                  adaln_zero_bias_init_value=-2.0):
    keys = iter(jax.random.split(key, 16))
    p = {}
    # AdaptiveLayerNorm (Algorithm 26)
    p["cond_ln_g"] = jnp.ones((dim_cond,), jnp.float32)          # LayerNorm(dim_cond, bias=False)
    p["ada_gamma_w"], p["ada_gamma_b"] = _torch_linear_init(next(keys), dim_cond, dim)
    p["ada_beta_w"], _ = _torch_linear_init(next(keys), dim_cond, dim, bias=False)
    # adaln-zero output gate: weight zero, bias = -2.0
    p["zero_gamma_w"] = jnp.zeros((dim_cond, dim), jnp.float32)
    p["zero_gamma_b"] = jnp.full((dim,), adaln_zero_bias_init_value, jnp.float32)

    if fn == "transition":
        dim_inner = dim * expansion_factor
        w1, _ = _torch_linear_init(next(keys), dim, 2 * dim_inner, bias=False)
        p["ff_w1_val"] = w1[:, :dim_inner]     # SwiGLU: first half = value
        p["ff_w1_gate"] = w1[:, dim_inner:]    # second half = gate (F.silu(gates) * x)
        p["ff_w2"], _ = _torch_linear_init(next(keys), dim_inner, dim, bias=False)
    elif fn == "attention_pair_bias":
        hd = heads * dim_head
        p["attn_q_w"], p["attn_q_b"] = _torch_linear_init(next(keys), dim, hd)
        p["attn_kv_w"], _ = _torch_linear_init(next(keys), dim, 2 * hd, bias=False)
        p["attn_gate_w"] = jnp.zeros((dim, hd), jnp.float32)     # zero-init gate, bias=1
        p["attn_gate_b"] = jnp.ones((hd,), jnp.float32)
        p["attn_out_w"], _ = _torch_linear_init(next(keys), hd, dim, bias=False)
        p["attn_bias_ln_g"] = jnp.ones((dim_pairwise,), jnp.float32)
        p["attn_bias_ln_b"] = jnp.zeros((dim_pairwise,), jnp.float32)
        p["attn_bias_w"] = jnp.zeros((dim_pairwise, heads), jnp.float32)  # zero-init (spec)
    else:
        raise ValueError(fn)
    return p


# ---------------------------------------------------------------------------
# Pure-JAX references (f32, exact math) for correctness checks
# ---------------------------------------------------------------------------

def _ref_ln(t, eps=LN_EPS):
    m = jnp.mean(t, -1, keepdims=True)
    v = jnp.mean((t - m) ** 2, -1, keepdims=True)
    return (t - m) * jax.lax.rsqrt(v + eps)


def _ref_adaln(x, cond, p):
    x_n = _ref_ln(x)
    c_n = _ref_ln(cond) * p["cond_ln_g"]
    gamma = jax.nn.sigmoid(c_n @ p["ada_gamma_w"] + p["ada_gamma_b"])
    beta = c_n @ p["ada_beta_w"]
    return x_n * gamma + beta


def _ref_zero_gamma(cond, p):
    return jax.nn.sigmoid(cond @ p["zero_gamma_w"] + p["zero_gamma_b"])


def _ref_transition_path(x, cond, p):
    xa = _ref_adaln(x, cond, p)
    y = (jax.nn.silu(xa @ p["ff_w1_gate"]) * (xa @ p["ff_w1_val"])) @ p["ff_w2"]
    return y * _ref_zero_gamma(cond, p)


def _ref_attention_pair_bias_path(x, cond, pairwise, mask, p, heads, dim_head):
    b, n, d = x.shape
    hd = heads * dim_head
    xa = _ref_adaln(x, cond, p)
    q = xa @ p["attn_q_w"] + p["attn_q_b"]
    kv = xa @ p["attn_kv_w"]
    k, v = kv[..., :hd], kv[..., hd:]
    gates = jax.nn.sigmoid(xa @ p["attn_gate_w"] + p["attn_gate_b"])
    split = lambda t: t.reshape(b, n, heads, dim_head).transpose(0, 2, 1, 3)
    qh, kh, vh = split(q), split(k), split(v)
    pwn = _ref_ln(pairwise) * p["attn_bias_ln_g"] + p["attn_bias_ln_b"]
    bias = (pwn @ p["attn_bias_w"]).transpose(0, 3, 1, 2)
    s = jnp.einsum("bhid,bhjd->bhij", qh, kh) * (dim_head ** -0.5) + bias
    s = jnp.where(mask[:, None, None, :], s, NEG)
    attn = jnp.einsum("bhij,bhjd->bhid", jax.nn.softmax(s, axis=-1), vh)
    attn = attn.transpose(0, 2, 1, 3).reshape(b, n, hd) * gates
    return (attn @ p["attn_out_w"]) * _ref_zero_gamma(cond, p)


# ---------------------------------------------------------------------------

if __name__ == "__main__":
    key = jax.random.PRNGKey(0)
    kx, kc, kpw, kp1, kp2, kz, kb2 = jax.random.split(key, 7)

    b, n = 2, 64
    dim, dim_cond, dim_pairwise = 128, 128, 64     # lane-dense channel widths
    heads, dim_head = 4, 32

    x = jax.random.normal(kx, (b, n, dim), jnp.float32)
    cond = jax.random.normal(kc, (b, n, dim_cond), jnp.float32)
    pairwise = jax.random.normal(kpw, (b, n, n, dim_pairwise), jnp.float32)
    mask = jnp.arange(n)[None, :] < jnp.array([n, n - 9])[:, None]   # (b, n) bool key mask

    # --- ConditionWrapper(fn=Transition) -----------------------------------
    p_tr = init_condition_wrapper_params(kp1, dim=dim, dim_cond=dim_cond, fn="transition")
    fwd_tr = jax.jit(partial(condition_wrapper_transition, tm=DEFAULT_TM))
    out_tr = jax.block_until_ready(fwd_tr(x, cond, p_tr))
    assert out_tr.shape == (b, n, dim), out_tr.shape
    assert not bool(jnp.isnan(out_tr).any()), "NaN in Transition-path output"
    ref_tr = _ref_transition_path(x, cond, p_tr)
    err_tr = float(jnp.max(jnp.abs(out_tr - ref_tr)))
    assert err_tr < 1e-1, f"Transition path mismatch: {err_tr}"

    # --- ConditionWrapper(fn=AttentionPairBias) -----------------------------
    p_ab = init_condition_wrapper_params(kp2, dim=dim, dim_cond=dim_cond,
                                         fn="attention_pair_bias", heads=heads,
                                         dim_head=dim_head, dim_pairwise=dim_pairwise)
    # perturb the spec'd zero-init weights so the test actually exercises those paths
    p_ab["zero_gamma_w"] = 0.02 * jax.random.normal(kz, (dim_cond, dim), jnp.float32)
    p_ab["attn_bias_w"] = 0.05 * jax.random.normal(kb2, (dim_pairwise, heads), jnp.float32)

    fwd_ab = jax.jit(partial(condition_wrapper_attention_pair_bias,
                             heads=heads, dim_head=dim_head, tm=DEFAULT_TM))
    out_ab = jax.block_until_ready(fwd_ab(x, cond, pairwise, mask, p_ab))
    assert out_ab.shape == (b, n, dim), out_ab.shape
    assert not bool(jnp.isnan(out_ab).any()), "NaN in AttentionPairBias-path output"
    ref_ab = _ref_attention_pair_bias_path(x, cond, pairwise, mask, p_ab, heads, dim_head)
    err_ab = float(jnp.max(jnp.abs(out_ab - ref_ab)))
    assert err_ab < 1e-1, f"AttentionPairBias path mismatch: {err_ab}"

    print("KERNEL_OK")
</pallas_src>

<mosaic_0001>
module attributes {stable_mosaic.version = 11 : i64} {
  func.func @_cond_transition_kernel(%arg0: i32, %arg1: memref<128x128xf32, #tpu.memory_space<vmem>>, %arg2: memref<128x128xf32, #tpu.memory_space<vmem>>, %arg3: memref<1x128xf32, #tpu.memory_space<vmem>>, %arg4: memref<128x128xbf16, #tpu.memory_space<vmem>>, %arg5: memref<1x128xf32, #tpu.memory_space<vmem>>, %arg6: memref<128x128xbf16, #tpu.memory_space<vmem>>, %arg7: memref<128x512xbf16, #tpu.memory_space<vmem>>, %arg8: memref<128x512xbf16, #tpu.memory_space<vmem>>, %arg9: memref<512x128xbf16, #tpu.memory_space<vmem>>, %arg10: memref<128x128xbf16, #tpu.memory_space<vmem>>, %arg11: memref<1x128xf32, #tpu.memory_space<vmem>>, %arg12: memref<128x128xf32, #tpu.memory_space<vmem>>) attributes {dimension_semantics = [#tpu.dimension_semantics<parallel>], iteration_bounds = array<i64: 1>, scalar_prefetch = 0 : i64, scratch_operands = 0 : i64, tpu.core_type = #tpu.core_type<tc>, window_params = [{transform_indices = @transform_0, window_bounds = array<i64: 128, 128>}, {transform_indices = @transform_1, window_bounds = array<i64: 128, 128>}, {pipeline_mode = #tpu.pipeline_mode<synchronous>, transform_indices = @transform_2, window_bounds = array<i64: 1, 128>}, {pipeline_mode = #tpu.pipeline_mode<synchronous>, transform_indices = @transform_3, window_bounds = array<i64: 128, 128>}, {pipeline_mode = #tpu.pipeline_mode<synchronous>, transform_indices = @transform_4, window_bounds = array<i64: 1, 128>}, {pipeline_mode = #tpu.pipeline_mode<synchronous>, transform_indices = @transform_5, window_bounds = array<i64: 128, 128>}, {pipeline_mode = #tpu.pipeline_mode<synchronous>, transform_indices = @transform_6, window_bounds = array<i64: 128, 512>}, {pipeline_mode = #tpu.pipeline_mode<synchronous>, transform_indices = @transform_7, window_bounds = array<i64: 128, 512>}, {pipeline_mode = #tpu.pipeline_mode<synchronous>, transform_indices = @transform_8, window_bounds = array<i64: 512, 128>}, {pipeline_mode = #tpu.pipeline_mode<synchronous>, transform_indices = @transform_9, window_bounds = array<i64: 128, 128>}, {pipeline_mode = #tpu.pipeline_mode<synchronous>, transform_indices = @transform_10, window_bounds = array<i64: 1, 128>}, {transform_indices = @transform_11, window_bounds = array<i64: 128, 128>}]} {
    %c0 = arith.constant 0 : index
    %c0_0 = arith.constant 0 : index
    %0 = vector.load %arg1[%c0, %c0_0] : memref<128x128xf32, #tpu.memory_space<vmem>>, vector<128x128xf32>
    %c0_1 = arith.constant 0 : index
    %c0_2 = arith.constant 0 : index
    %1 = vector.load %arg2[%c0_1, %c0_2] : memref<128x128xf32, #tpu.memory_space<vmem>>, vector<128x128xf32>
    %c0_3 = arith.constant 0 : index
    %c0_4 = arith.constant 0 : index
    %2 = vector.load %arg3[%c0_3, %c0_4] : memref<1x128xf32, #tpu.memory_space<vmem>>, vector<1x128xf32>
    %c0_5 = arith.constant 0 : index
    %c0_6 = arith.constant 0 : index
    %3 = vector.load %arg4[%c0_5, %c0_6] : memref<128x128xbf16, #tpu.memory_space<vmem>>, vector<128x128xbf16>
    %c0_7 = arith.constant 0 : index
    %c0_8 = arith.constant 0 : index
    %4 = vector.load %arg5[%c0_7, %c0_8] : memref<1x128xf32, #tpu.memory_space<vmem>>, vector<1x128xf32>
    %c0_9 = arith.constant 0 : index
    %c0_10 = arith.constant 0 : index
    %5 = vector.load %arg6[%c0_9, %c0_10] : memref<128x128xbf16, #tpu.memory_space<vmem>>, vector<128x128xbf16>
    %cst = arith.constant dense<0.000000e+00> : vector<128xf32>
    %6 = vector.multi_reduction <add>, %0, %cst [1] : vector<128x128xf32> to vector<128xf32>
    %7 = vector.shape_cast %6 : vector<128xf32> to vector<128x1xf32>
    %cst_11 = arith.constant 1.280000e+02 : f32
    %8 = vector.broadcast %cst_11 : f32 to vector<128x1xf32>
    %9 = arith.divf %7, %8 : vector<128x1xf32>
    %10 = vector.broadcast %9 : vector<128x1xf32> to vector<128x128xf32>
    %11 = arith.subf %0, %10 : vector<128x128xf32>
    %12 = arith.mulf %11, %11 : vector<128x128xf32>
    %cst_12 = arith.constant dense<0.000000e+00> : vector<128xf32>
    %13 = vector.multi_reduction <add>, %12, %cst_12 [1] : vector<128x128xf32> to vector<128xf32>
    %14 = vector.shape_cast %13 : vector<128xf32> to vector<128x1xf32>
    %cst_13 = arith.constant 1.280000e+02 : f32
    %15 = vector.broadcast %cst_13 : f32 to vector<128x1xf32>
    %16 = arith.divf %14, %15 : vector<128x1xf32>
    %cst_14 = arith.constant 9.99999974E-6 : f32
    %17 = vector.broadcast %cst_14 : f32 to vector<128x1xf32>
    %18 = arith.addf %16, %17 : vector<128x1xf32>
    %19 = math.rsqrt %18 : vector<128x1xf32>
    %20 = vector.broadcast %19 : vector<128x1xf32> to vector<128x128xf32>
    %21 = arith.mulf %11, %20 : vector<128x128xf32>
    %cst_15 = arith.constant dense<0.000000e+00> : vector<128xf32>
    %22 = vector.multi_reduction <add>, %1, %cst_15 [1] : vector<128x128xf32> to vector<128xf32>
    %23 = vector.shape_cast %22 : vector<128xf32> to vector<128x1xf32>
    %cst_16 = arith.constant 1.280000e+02 : f32
    %24 = vector.broadcast %cst_16 : f32 to vector<128x1xf32>
    %25 = arith.divf %23, %24 : vector<128x1xf32>
    %26 = vector.broadcast %25 : vector<128x1xf32> to vector<128x128xf32>
    %27 = arith.subf %1, %26 : vector<128x128xf32>
    %28 = arith.mulf %27, %27 : vector<128x128xf32>
    %cst_17 = arith.constant dense<0.000000e+00> : vector<128xf32>
    %29 = vector.multi_reduction <add>, %28, %cst_17 [1] : vector<128x128xf32> to vector<128xf32>
    %30 = vector.shape_cast %29 : vector<128xf32> to vector<128x1xf32>
    %cst_18 = arith.constant 1.280000e+02 : f32
    %31 = vector.broadcast %cst_18 : f32 to vector<128x1xf32>
    %32 = arith.divf %30, %31 : vector<128x1xf32>
    %cst_19 = arith.constant 9.99999974E-6 : f32
    %33 = vector.broadcast %cst_19 : f32 to vector<128x1xf32>
    %34 = arith.addf %32, %33 : vector<128x1xf32>
    %35 = math.rsqrt %34 : vector<128x1xf32>
    %36 = vector.broadcast %35 : vector<128x1xf32> to vector<128x128xf32>
    %37 = arith.mulf %27, %36 : vector<128x128xf32>
    %38 = vector.broadcast %2 : vector<1x128xf32> to vector<128x128xf32>
    %39 = arith.mulf %37, %38 : vector<128x128xf32>
    %40 = arith.truncf %39 : vector<128x128xf32> to vector<128x128xbf16>
    %cst_20 = arith.constant dense<0.000000e+00> : vector<128x128xf32>
    %41 = tpu.matmul %40, %3, %cst_20 {dimension_numbers = #tpu.dot_dimension_numbers<[1], [0], [0], [1], [0, 0, 1, 1], [], []>} : vector<128x128xbf16>, vector<128x128xbf16>, vector<128x128xf32> -> vector<128x128xf32>
    %42 = vector.broadcast %4 : vector<1x128xf32> to vector<128x128xf32>
    %43 = arith.addf %41, %42 : vector<128x128xf32>
    %44 = arith.negf %43 : vector<128x128xf32>
    %45 = math.exp %44 : vector<128x128xf32>
    %cst_21 = arith.constant 1.000000e+00 : f32
    %46 = vector.broadcast %cst_21 : f32 to vector<128x128xf32>
    %47 = arith.addf %46, %45 : vector<128x128xf32>
    %48 = arith.divf %46, %47 : vector<128x128xf32>
    %cst_22 = arith.constant dense<0.000000e+00> : vector<128x128xf32>
    %49 = tpu.matmul %40, %5, %cst_22 {dimension_numbers = #tpu.dot_dimension_numbers<[1], [0], [0], [1], [0, 0, 1, 1], [], []>} : vector<128x128xbf16>, vector<128x128xbf16>, vector<128x128xf32> -> vector<128x128xf32>
    %50 = arith.mulf %21, %48 : vector<128x128xf32>
    %51 = arith.addf %50, %49 : vector<128x128xf32>
    %52 = arith.truncf %51 : vector<128x128xf32> to vector<128x128xbf16>
    %c0_23 = arith.constant 0 : index
    %c0_24 = arith.constant 0 : index
    %53 = vector.load %arg7[%c0_23, %c0_24] : memref<128x512xbf16, #tpu.memory_space<vmem>>, vector<128x512xbf16>
    %cst_25 = arith.constant dense<0.000000e+00> : vector<128x512xf32>
    %54 = tpu.matmul %52, %53, %cst_25 {dimension_numbers = #tpu.dot_dimension_numbers<[1], [0], [0], [1], [0, 0, 1, 1], [], []>} : vector<128x128xbf16>, vector<128x512xbf16>, vector<128x512xf32> -> vector<128x512xf32>
    %c0_26 = arith.constant 0 : index
    %c0_27 = arith.constant 0 : index
    %55 = vector.load %arg8[%c0_26, %c0_27] : memref<128x512xbf16, #tpu.memory_space<vmem>>, vector<128x512xbf16>
    %cst_28 = arith.constant dense<0.000000e+00> : vector<128x512xf32>
    %56 = tpu.matmul %52, %55, %cst_28 {dimension_numbers = #tpu.dot_dimension_numbers<[1], [0], [0], [1], [0, 0, 1, 1], [], []>} : vector<128x128xbf16>, vector<128x512xbf16>, vector<128x512xf32> -> vector<128x512xf32>
    %57 = arith.negf %56 : vector<128x512xf32>
    %58 = math.exp %57 : vector<128x512xf32>
    %cst_29 = arith.constant 1.000000e+00 : f32
    %59 = vector.broadcast %cst_29 : f32 to vector<128x512xf32>
    %60 = arith.addf %59, %58 : vector<128x512xf32>
    %61 = arith.divf %59, %60 : vector<128x512xf32>
    %62 = arith.mulf %56, %61 : vector<128x512xf32>
    %63 = arith.mulf %62, %54 : vector<128x512xf32>
    %64 = arith.truncf %63 : vector<128x512xf32> to vector<128x512xbf16>
    %c0_30 = arith.constant 0 : index
    %c0_31 = arith.constant 0 : index
    %65 = vector.load %arg9[%c0_30, %c0_31] : memref<512x128xbf16, #tpu.memory_space<vmem>>, vector<512x128xbf16>
    %cst_32 = arith.constant dense<0.000000e+00> : vector<128x128xf32>
    %66 = tpu.matmul %64, %65, %cst_32 {dimension_numbers = #tpu.dot_dimension_numbers<[1], [0], [0], [1], [0, 0, 1, 1], [], []>} : vector<128x512xbf16>, vector<512x128xbf16>, vector<128x128xf32> -> vector<128x128xf32>
    %67 = arith.truncf %1 : vector<128x128xf32> to vector<128x128xbf16>
    %c0_33 = arith.constant 0 : index
    %c0_34 = arith.constant 0 : index
    %68 = vector.load %arg10[%c0_33, %c0_34] : memref<128x128xbf16, #tpu.memory_space<vmem>>, vector<128x128xbf16>
    %cst_35 = arith.constant dense<0.000000e+00> : vector<128x128xf32>
    %69 = tpu.matmul %67, %68, %cst_35 {dimension_numbers = #tpu.dot_dimension_numbers<[1], [0], [0], [1], [0, 0, 1, 1], [], []>} : vector<128x128xbf16>, vector<128x128xbf16>, vector<128x128xf32> -> vector<128x128xf32>
    %c0_36 = arith.constant 0 : index
    %c0_37 = arith.constant 0 : index
    %70 = vector.load %arg11[%c0_36, %c0_37] : memref<1x128xf32, #tpu.memory_space<vmem>>, vector<1x128xf32>
    %71 = vector.broadcast %70 : vector<1x128xf32> to vector<128x128xf32>
    %72 = arith.addf %69, %71 : vector<128x128xf32>
    %73 = arith.negf %72 : vector<128x128xf32>
    %74 = math.exp %73 : vector<128x128xf32>
    %cst_38 = arith.constant 1.000000e+00 : f32
    %75 = vector.broadcast %cst_38 : f32 to vector<128x128xf32>
    %76 = arith.addf %75, %74 : vector<128x128xf32>
    %77 = arith.divf %75, %76 : vector<128x128xf32>
    %78 = arith.mulf %66, %77 : vector<128x128xf32>
    %c0_39 = arith.constant 0 : index
    %c0_40 = arith.constant 0 : index
    %79 = vector.load %arg12[%c0_39, %c0_40] : memref<128x128xf32, #tpu.memory_space<vmem>>, vector<128x128xf32>
    tpu.vector_store %arg12[%c0_39, %c0_40], %78 {strides = array<i32>} : memref<128x128xf32, #tpu.memory_space<vmem>>, vector<128x128xf32>,
    return
  }
  func.func @transform_0(%arg0: i32) -> (i32, i32) {
    %c0_i32 = arith.constant 0 : i32
    %c0_i32_0 = arith.constant 0 : i32
    return %arg0, %c0_i32 : i32, i32
  }
  func.func @transform_1(%arg0: i32) -> (i32, i32) {
    %c0_i32 = arith.constant 0 : i32
    %c0_i32_0 = arith.constant 0 : i32
    return %arg0, %c0_i32 : i32, i32
  }
  func.func @transform_2(%arg0: i32) -> (i32, i32) {
    %c0_i32 = arith.constant 0 : i32
    %c0_i32_0 = arith.constant 0 : i32
    %c0_i32_1 = arith.constant 0 : i32
    return %c0_i32, %c0_i32_0 : i32, i32
  }
  func.func @transform_3(%arg0: i32) -> (i32, i32) {
    %c0_i32 = arith.constant 0 : i32
    %c0_i32_0 = arith.constant 0 : i32
    %c0_i32_1 = arith.constant 0 : i32
    return %c0_i32, %c0_i32_0 : i32, i32
  }
  func.func @transform_4(%arg0: i32) -> (i32, i32) {
    %c0_i32 = arith.constant 0 : i32
    %c0_i32_0 = arith.constant 0 : i32
    %c0_i32_1 = arith.constant 0 : i32
    return %c0_i32, %c0_i32_0 : i32, i32
  }
  func.func @transform_5(%arg0: i32) -> (i32, i32) {
    %c0_i32 = arith.constant 0 : i32
    %c0_i32_0 = arith.constant 0 : i32
    %c0_i32_1 = arith.constant 0 : i32
    return %c0_i32, %c0_i32_0 : i32, i32
  }
  func.func @transform_6(%arg0: i32) -> (i32, i32) {
    %c0_i32 = arith.constant 0 : i32
    %c0_i32_0 = arith.constant 0 : i32
    %c0_i32_1 = arith.constant 0 : i32
    return %c0_i32, %c0_i32_0 : i32, i32
  }
  func.func @transform_7(%arg0: i32) -> (i32, i32) {
    %c0_i32 = arith.constant 0 : i32
    %c0_i32_0 = arith.constant 0 : i32
    %c0_i32_1 = arith.constant 0 : i32
    return %c0_i32, %c0_i32_0 : i32, i32
  }
  func.func @transform_8(%arg0: i32) -> (i32, i32) {
    %c0_i32 = arith.constant 0 : i32
    %c0_i32_0 = arith.constant 0 : i32
    %c0_i32_1 = arith.constant 0 : i32
    return %c0_i32, %c0_i32_0 : i32, i32
  }
  func.func @transform_9(%arg0: i32) -> (i32, i32) {
    %c0_i32 = arith.constant 0 : i32
    %c0_i32_0 = arith.constant 0 : i32
    %c0_i32_1 = arith.constant 0 : i32
    return %c0_i32, %c0_i32_0 : i32, i32
  }
  func.func @transform_10(%arg0: i32) -> (i32, i32) {
    %c0_i32 = arith.constant 0 : i32
    %c0_i32_0 = arith.constant 0 : i32
    %c0_i32_1 = arith.constant 0 : i32
    return %c0_i32, %c0_i32_0 : i32, i32
  }
  func.func @transform_11(%arg0: i32) -> (i32, i32) {
    %c0_i32 = arith.constant 0 : i32
    %c0_i32_0 = arith.constant 0 : i32
    return %arg0, %c0_i32 : i32, i32
  }
}

</mosaic_0001>

<llo_original>
// kernel: condition_wrapper_transition.1
$region0: #{condition_wrapper_transition.1}
  #allocation0 [shape = 'u32[]', space=smem, size = 0x4, offset = 0x4, fixed_abs, tag = 'smem constant byte address 0x4 - core index']
  #allocation1 [shape = 'u32[144,128]{1,0:T(1,128)}', space=vmem, size = 0x12000, scoped, tag = 'internal scratch']
  %s0 = inlined_call_operand.vmem [shape: f32[128,128], index: 0, kind: input, shape index: {}]
  %s1 = inlined_call_operand.vmem [shape: f32[128,128], index: 1, kind: input, shape index: {}]
  %s2 = inlined_call_operand.vmem [shape: f32[1,128], index: 2, kind: input, shape index: {}]
  %s3 = inlined_call_operand.vmem [shape: bf16[128,128], index: 3, kind: input, shape index: {}]
  %s4 = inlined_call_operand.vmem [shape: f32[1,128], index: 4, kind: input, shape index: {}]
  %s5 = inlined_call_operand.vmem [shape: bf16[128,128], index: 5, kind: input, shape index: {}]
  %s6 = inlined_call_operand.vmem [shape: bf16[128,512], index: 6, kind: input, shape index: {}]
  %s7 = inlined_call_operand.vmem [shape: bf16[128,512], index: 7, kind: input, shape index: {}]
  %s8 = inlined_call_operand.vmem [shape: bf16[512,128], index: 8, kind: input, shape index: {}]
  %s9 = inlined_call_operand.vmem [shape: bf16[128,128], index: 9, kind: input, shape index: {}]
  %s10 = inlined_call_operand.vmem [shape: f32[1,128], index: 10, kind: input, shape index: {}]
  %s11 = inlined_call_operand.hbm [shape: f32[128,128], index: 11, kind: output, shape index: {}]
  %s12 = sld [smem:[#allocation0]]
  $region54: #{condition_wrapper_transition.1} parent=0
    _
  %s14 = ssub.s32 1, %s12
  %s15 = scalar_select 0, %s14, %s12
  $region1: #{condition_wrapper_transition.1} parent=0
    #allocation2 [shape = 'u8[65536]{0}', space=vmem, size = 0x10000, scoped, tag = 'output window, operand 0, single buffered']
    #allocation3 [shape = 's32[1]{0}', space=sflag, size = 0x4, scoped, tag = 'scoped memory for condition_wrapper_transition.1']
    %16 = vsyncpa [#allocation3], 0
    // Predicated region
    $region2: #{condition_wrapper_transition.1} parent=1 // pred_check
      _
    $region3: #{condition_wrapper_transition.1} parent=1 // pred_check_branch
      %18 = sbr.rel (0) target = $region5
    $region4: #{condition_wrapper_transition.1} parent=1 // pred_region
      _
    $region5: #{condition_wrapper_transition.1} parent=1 // pred_fallthru
      _
    // Predicated region
    $region6: #{condition_wrapper_transition.1} parent=1 // pred_check
      _
    $region7: #{condition_wrapper_transition.1} parent=1 // pred_check_branch
      %20 = sbr.rel (0) target = $region9
    $region8: #{condition_wrapper_transition.1} parent=1 // pred_region
      _
    $region9: #{condition_wrapper_transition.1} parent=1 // pred_fallthru
      _
    // Predicated region
    $region10: #{condition_wrapper_transition.1} parent=1 // pred_check
      _
    $region11: #{condition_wrapper_transition.1} parent=1 // pred_check_branch
      %22 = sbr.rel (0) target = $region13
    $region12: #{condition_wrapper_transition.1} parent=1 // pred_region
      _
    $region13: #{condition_wrapper_transition.1} parent=1 // pred_fallthru
      _
    // Predicated region
    $region14: #{condition_wrapper_transition.1} parent=1 // pred_check
      _
    $region15: #{condition_wrapper_transition.1} parent=1 // pred_check_branch
      %24 = sbr.rel (0) target = $region17
    $region16: #{condition_wrapper_transition.1} parent=1 // pred_region
      _
    $region17: #{condition_wrapper_transition.1} parent=1 // pred_fallthru
      _
    // Predicated region
    $region18: #{condition_wrapper_transition.1} parent=1 // pred_check
      _
    $region19: #{condition_wrapper_transition.1} parent=1 // pred_check_branch
      %26 = sbr.rel (0) target = $region21
    $region20: #{condition_wrapper_transition.1} parent=1 // pred_region
      _
    $region21: #{condition_wrapper_transition.1} parent=1 // pred_fallthru
      _
    // Predicated region
    $region22: #{condition_wrapper_transition.1} parent=1 // pred_check
      _
    $region23: #{condition_wrapper_transition.1} parent=1 // pred_check_branch
      %28 = sbr.rel (0) target = $region25
    $region24: #{condition_wrapper_transition.1} parent=1 // pred_region
      _
    $region25: #{condition_wrapper_transition.1} parent=1 // pred_fallthru
      _
    // Predicated region
    $region26: #{condition_wrapper_transition.1} parent=1 // pred_check
      _
    $region27: #{condition_wrapper_transition.1} parent=1 // pred_check_branch
      %30 = sbr.rel (0) target = $region29
    $region28: #{condition_wrapper_transition.1} parent=1 // pred_region
      _
    $region29: #{condition_wrapper_transition.1} parent=1 // pred_fallthru
      _
    // Predicated region
    $region30: #{condition_wrapper_transition.1} parent=1 // pred_check
      _
    $region31: #{condition_wrapper_transition.1} parent=1 // pred_check_branch
      %32 = sbr.rel (0) target = $region33
    $region32: #{condition_wrapper_transition.1} parent=1 // pred_region
      _
    $region33: #{condition_wrapper_transition.1} parent=1 // pred_fallthru
      _
    // Predicated region
    $region34: #{condition_wrapper_transition.1} parent=1 // pred_check
      _
    $region35: #{condition_wrapper_transition.1} parent=1 // pred_check_branch
      %34 = sbr.rel (0) target = $region37
    $region36: #{condition_wrapper_transition.1} parent=1 // pred_region
      _
    $region37: #{condition_wrapper_transition.1} parent=1 // pred_fallthru
      _
    // Predicated region
    $region38: #{condition_wrapper_transition.1} parent=1 // pred_check
      _
    $region39: #{condition_wrapper_transition.1} parent=1 // pred_check_branch
      %36 = sbr.rel (0) target = $region41
    $region40: #{condition_wrapper_transition.1} parent=1 // pred_region
      _
    $region41: #{condition_wrapper_transition.1} parent=1 // pred_fallthru
      _
    // Predicated region
    $region42: #{condition_wrapper_transition.1} parent=1 // pred_check
      _
    $region43: #{condition_wrapper_transition.1} parent=1 // pred_check_branch
      %38 = sbr.rel (0) target = $region45
    $region44: #{condition_wrapper_transition.1} parent=1 // pred_region
      _
    $region45: #{condition_wrapper_transition.1} parent=1 // pred_fallthru
      _
    %v40 = vld [vmem:[%s0] sm:$0xff]
    %v41 = vld [vmem:[%s0 + $0x8] sm:$0xff]
    %v42 = vld [vmem:[%s0 + $0x10] sm:$0xff]
    %v43 = vld [vmem:[%s0 + $0x18] sm:$0xff]
    %v44 = vld [vmem:[%s0 + $0x20] sm:$0xff]
    %v45 = vld [vmem:[%s0 + $0x28] sm:$0xff]
    %v46 = vld [vmem:[%s0 + $0x30] sm:$0xff]
    %v47 = vld [vmem:[%s0 + $0x38] sm:$0xff]
    %v48 = vld [vmem:[%s0 + $0x40] sm:$0xff]
    %v49 = vld [vmem:[%s0 + $0x48] sm:$0xff]
    %v50 = vld [vmem:[%s0 + $0x50] sm:$0xff]
    %v51 = vld [vmem:[%s0 + $0x58] sm:$0xff]
    %v52 = vld [vmem:[%s0 + $0x60] sm:$0xff]
    %v53 = vld [vmem:[%s0 + $0x68] sm:$0xff]
    %v54 = vld [vmem:[%s0 + $0x70] sm:$0xff]
    %v55 = vld [vmem:[%s0 + $0x78] sm:$0xff]
    %v56 = vld [vmem:[%s1] sm:$0xff]
    %v57 = vld [vmem:[%s1 + $0x8] sm:$0xff]
    %v58 = vld [vmem:[%s1 + $0x10] sm:$0xff]
    %v59 = vld [vmem:[%s1 + $0x18] sm:$0xff]
    %v60 = vld [vmem:[%s1 + $0x20] sm:$0xff]
    %v61 = vld [vmem:[%s1 + $0x28] sm:$0xff]
    %v62 = vld [vmem:[%s1 + $0x30] sm:$0xff]
    %v63 = vld [vmem:[%s1 + $0x38] sm:$0xff]
    %v64 = vld [vmem:[%s1 + $0x40] sm:$0xff]
    %v65 = vld [vmem:[%s1 + $0x48] sm:$0xff]
    %v66 = vld [vmem:[%s1 + $0x50] sm:$0xff]
    %v67 = vld [vmem:[%s1 + $0x58] sm:$0xff]
    %v68 = vld [vmem:[%s1 + $0x60] sm:$0xff]
    %v69 = vld [vmem:[%s1 + $0x68] sm:$0xff]
    %v70 = vld [vmem:[%s1 + $0x70] sm:$0xff]
    %v71 = vld [vmem:[%s1 + $0x78] sm:$0xff]
    %v72 = vld [vmem:[%s2] sm:$0x1]
    %v73 = vld [vmem:[%s3] sm:$0xf]
    %v74 = vld [vmem:[%s3 + $0x4] sm:$0xf]
    %v75 = vld [vmem:[%s3 + $0x8] sm:$0xf]
    %v76 = vld [vmem:[%s3 + $0xc] sm:$0xf]
    %v77 = vld [vmem:[%s3 + $0x10] sm:$0xf]
    %v78 = vld [vmem:[%s3 + $0x14] sm:$0xf]
    %v79 = vld [vmem:[%s3 + $0x18] sm:$0xf]
    %v80 = vld [vmem:[%s3 + $0x1c] sm:$0xf]
    %v81 = vld [vmem:[%s3 + $0x20] sm:$0xf]
    %v82 = vld [vmem:[%s3 + $0x24] sm:$0xf]
    %v83 = vld [vmem:[%s3 + $0x28] sm:$0xf]
    %v84 = vld [vmem:[%s3 + $0x2c] sm:$0xf]
    %v85 = vld [vmem:[%s3 + $0x30] sm:$0xf]
    %v86 = vld [vmem:[%s3 + $0x34] sm:$0xf]
    %v87 = vld [vmem:[%s3 + $0x38] sm:$0xf]
    %v88 = vld [vmem:[%s3 + $0x3c] sm:$0xf]
    %v89 = vld [vmem:[%s4] sm:$0x1]
    %v90 = vld [vmem:[%s5] sm:$0xf]
    %v91 = vld [vmem:[%s5 + $0x4] sm:$0xf]
    %v92 = vld [vmem:[%s5 + $0x8] sm:$0xf]
    %v93 = vld [vmem:[%s5 + $0xc] sm:$0xf]
    %v94 = vld [vmem:[%s5 + $0x10] sm:$0xf]
    %v95 = vld [vmem:[%s5 + $0x14] sm:$0xf]
    %v96 = vld [vmem:[%s5 + $0x18] sm:$0xf]
    %v97 = vld [vmem:[%s5 + $0x1c] sm:$0xf]
    %v98 = vld [vmem:[%s5 + $0x20] sm:$0xf]
    %v99 = vld [vmem:[%s5 + $0x24] sm:$0xf]
    %v100 = vld [vmem:[%s5 + $0x28] sm:$0xf]
    %v101 = vld [vmem:[%s5 + $0x2c] sm:$0xf]
    %v102 = vld [vmem:[%s5 + $0x30] sm:$0xf]
    %v103 = vld [vmem:[%s5 + $0x34] sm:$0xf]
    %v104 = vld [vmem:[%s5 + $0x38] sm:$0xf]
    %v105 = vld [vmem:[%s5 + $0x3c] sm:$0xf]
    %106 = vadd.xlane.f32.xlu0 %v40
    %v107 = vpop.xlane.xlu0 %106
    %108 = vadd.xlane.f32.xlu0 %v41
    %v109 = vpop.xlane.xlu0 %108
    %110 = vadd.xlane.f32.xlu0 %v42
    %v111 = vpop.xlane.xlu0 %110
    %112 = vadd.xlane.f32.xlu0 %v43
    %v113 = vpop.xlane.xlu0 %112
    %114 = vadd.xlane.f32.xlu0 %v44
    %v115 = vpop.xlane.xlu0 %114
    %116 = vadd.xlane.f32.xlu0 %v45
    %v117 = vpop.xlane.xlu0 %116
    %118 = vadd.xlane.f32.xlu0 %v46
    %v119 = vpop.xlane.xlu0 %118
    %120 = vadd.xlane.f32.xlu0 %v47
    %v121 = vpop.xlane.xlu0 %120
    %122 = vadd.xlane.f32.xlu0 %v48
    %v123 = vpop.xlane.xlu0 %122
    %124 = vadd.xlane.f32.xlu0 %v49
    %v125 = vpop.xlane.xlu0 %124
    %126 = vadd.xlane.f32.xlu0 %v50
    %v127 = vpop.xlane.xlu0 %126
    %128 = vadd.xlane.f32.xlu0 %v51
    %v129 = vpop.xlane.xlu0 %128
    %130 = vadd.xlane.f32.xlu0 %v52
    %v131 = vpop.xlane.xlu0 %130
    %132 = vadd.xlane.f32.xlu0 %v53
    %v133 = vpop.xlane.xlu0 %132
    %134 = vadd.xlane.f32.xlu0 %v54
    %v135 = vpop.xlane.xlu0 %134
    %136 = vadd.xlane.f32.xlu0 %v55
    %v137 = vpop.xlane.xlu0 %136
    %v138 = vrcp.pop 128.0
    %v139 = vmul.f32 %v107, %v138
    %v140 = vmul.f32 %v109, %v138
    %v141 = vmul.f32 %v111, %v138
    %v142 = vmul.f32 %v113, %v138
    %v143 = vmul.f32 %v115, %v138
    %v144 = vmul.f32 %v117, %v138
    %v145 = vmul.f32 %v119, %v138
    %v146 = vmul.f32 %v121, %v138
    %v147 = vmul.f32 %v123, %v138
    %v148 = vmul.f32 %v125, %v138
    %v149 = vmul.f32 %v127, %v138
    %v150 = vmul.f32 %v129, %v138
    %v151 = vmul.f32 %v131, %v138
    %v152 = vmul.f32 %v133, %v138
    %v153 = vmul.f32 %v135, %v138
    %v154 = vmul.f32 %v137, %v138
    %v155 = vsub.f32 %v40, %v139
    %v156 = vsub.f32 %v41, %v140
    %v157 = vsub.f32 %v42, %v141
    %v158 = vsub.f32 %v43, %v142
    %v159 = vsub.f32 %v44, %v143
    %v160 = vsub.f32 %v45, %v144
    %v161 = vsub.f32 %v46, %v145
    %v162 = vsub.f32 %v47, %v146
    %v163 = vsub.f32 %v48, %v147
    %v164 = vsub.f32 %v49, %v148
    %v165 = vsub.f32 %v50, %v149
    %v166 = vsub.f32 %v51, %v150
    %v167 = vsub.f32 %v52, %v151
    %v168 = vsub.f32 %v53, %v152
    %v169 = vsub.f32 %v54, %v153
    %v170 = vsub.f32 %v55, %v154
    %v171 = vmul.f32 %v155, %v155
    %v172 = vmul.f32 %v156, %v156
    %v173 = vmul.f32 %v157, %v157
    %v174 = vmul.f32 %v158, %v158
    %v175 = vmul.f32 %v159, %v159
    %v176 = vmul.f32 %v160, %v160
    %v177 = vmul.f32 %v161, %v161
    %v178 = vmul.f32 %v162, %v162
    %v179 = vmul.f32 %v163, %v163
    %v180 = vmul.f32 %v164, %v164
    %v181 = vmul.f32 %v165, %v165
    %v182 = vmul.f32 %v166, %v166
    %v183 = vmul.f32 %v167, %v167
    %v184 = vmul.f32 %v168, %v168
    %v185 = vmul.f32 %v169, %v169
    %v186 = vmul.f32 %v170, %v170
    %187 = vadd.xlane.f32.xlu0 %v171
    %v188 = vpop.xlane.xlu0 %187
    %189 = vadd.xlane.f32.xlu0 %v172
    %v190 = vpop.xlane.xlu0 %189
    %191 = vadd.xlane.f32.xlu0 %v173
    %v192 = vpop.xlane.xlu0 %191
    %193 = vadd.xlane.f32.xlu0 %v174
    %v194 = vpop.xlane.xlu0 %193
    %195 = vadd.xlane.f32.xlu0 %v175
    %v196 = vpop.xlane.xlu0 %195
    %197 = vadd.xlane.f32.xlu0 %v176
    %v198 = vpop.xlane.xlu0 %197
    %199 = vadd.xlane.f32.xlu0 %v177
    %v200 = vpop.xlane.xlu0 %199
    %201 = vadd.xlane.f32.xlu0 %v178
    %v202 = vpop.xlane.xlu0 %201
    %203 = vadd.xlane.f32.xlu0 %v179
    %v204 = vpop.xlane.xlu0 %203
    %205 = vadd.xlane.f32.xlu0 %v180
    %v206 = vpop.xlane.xlu0 %205
    %207 = vadd.xlane.f32.xlu0 %v181
    %v208 = vpop.xlane.xlu0 %207
    %209 = vadd.xlane.f32.xlu0 %v182
    %v210 = vpop.xlane.xlu0 %209
    %211 = vadd.xlane.f32.xlu0 %v183
    %v212 = vpop.xlane.xlu0 %211
    %213 = vadd.xlane.f32.xlu0 %v184
    %v214 = vpop.xlane.xlu0 %213
    %215 = vadd.xlane.f32.xlu0 %v185
    %v216 = vpop.xlane.xlu0 %215
    %217 = vadd.xlane.f32.xlu0 %v186
    %v218 = vpop.xlane.xlu0 %217
    %v219 = vmul.f32 %v188, %v138
    %v220 = vmul.f32 %v190, %v138
    %v221 = vmul.f32 %v192, %v138
    %v222 = vmul.f32 %v194, %v138
    %v223 = vmul.f32 %v196, %v138
    %v224 = vmul.f32 %v198, %v138
    %v225 = vmul.f32 %v200, %v138
    %v226 = vmul.f32 %v202, %v138
    %v227 = vmul.f32 %v204, %v138
    %v228 = vmul.f32 %v206, %v138
    %v229 = vmul.f32 %v208, %v138
    %v230 = vmul.f32 %v210, %v138
    %v231 = vmul.f32 %v212, %v138
    %v232 = vmul.f32 %v214, %v138
    %v233 = vmul.f32 %v216, %v138
    %v234 = vmul.f32 %v218, %v138
    %v235 = vadd.f32 %v219, 1e-05
    %v236 = vadd.f32 %v220, 1e-05
    %v237 = vadd.f32 %v221, 1e-05
    %v238 = vadd.f32 %v222, 1e-05
    %v239 = vadd.f32 %v223, 1e-05
    %v240 = vadd.f32 %v224, 1e-05
    %v241 = vadd.f32 %v225, 1e-05
    %v242 = vadd.f32 %v226, 1e-05
    %v243 = vadd.f32 %v227, 1e-05
    %v244 = vadd.f32 %v228, 1e-05
    %v245 = vadd.f32 %v229, 1e-05
    %v246 = vadd.f32 %v230, 1e-05
    %v247 = vadd.f32 %v231, 1e-05
    %v248 = vadd.f32 %v232, 1e-05
    %v249 = vadd.f32 %v233, 1e-05
    %v250 = vadd.f32 %v234, 1e-05
    %v251 = vrsqrt.pop %v235
    %v252 = vrsqrt.pop %v236
    %v253 = vrsqrt.pop %v237
    %v254 = vrsqrt.pop %v238
    %v255 = vrsqrt.pop %v239
    %v256 = vrsqrt.pop %v240
    %v257 = vrsqrt.pop %v241
    %v258 = vrsqrt.pop %v242
    %v259 = vrsqrt.pop %v243
    %v260 = vrsqrt.pop %v244
    %v261 = vrsqrt.pop %v245
    %v262 = vrsqrt.pop %v246
    %v263 = vrsqrt.pop %v247
    %v264 = vrsqrt.pop %v248
    %v265 = vrsqrt.pop %v249
    %v266 = vrsqrt.pop %v250
    %v267 = vmul.f32 %v155, %v251
    %v268 = vmul.f32 %v156, %v252
    %v269 = vmul.f32 %v157, %v253
    %v270 = vmul.f32 %v158, %v254
    %v271 = vmul.f32 %v159, %v255
    %v272 = vmul.f32 %v160, %v256
    %v273 = vmul.f32 %v161, %v257
    %v274 = vmul.f32 %v162, %v258
    %v275 = vmul.f32 %v163, %v259
    %v276 = vmul.f32 %v164, %v260
    %v277 = vmul.f32 %v165, %v261
    %v278 = vmul.f32 %v166, %v262
    %v279 = vmul.f32 %v167, %v263
    %v280 = vmul.f32 %v168, %v264
    %v281 = vmul.f32 %v169, %v265
    %v282 = vmul.f32 %v170, %v266
    %283 = vadd.xlane.f32.xlu0 %v56
    %v284 = vpop.xlane.xlu0 %283
    %285 = vadd.xlane.f32.xlu0 %v57
    %v286 = vpop.xlane.xlu0 %285
    %287 = vadd.xlane.f32.xlu0 %v58
    %v288 = vpop.xlane.xlu0 %287
    %289 = vadd.xlane.f32.xlu0 %v59
    %v290 = vpop.xlane.xlu0 %289
    %291 = vadd.xlane.f32.xlu0 %v60
    %v292 = vpop.xlane.xlu0 %291
    %293 = vadd.xlane.f32.xlu0 %v61
    %v294 = vpop.xlane.xlu0 %293
    %295 = vadd.xlane.f32.xlu0 %v62
    %v296 = vpop.xlane.xlu0 %295
    %297 = vadd.xlane.f32.xlu0 %v63
    %v298 = vpop.xlane.xlu0 %297
    %299 = vadd.xlane.f32.xlu0 %v64
    %v300 = vpop.xlane.xlu0 %299
    %301 = vadd.xlane.f32.xlu0 %v65
    %v302 = vpop.xlane.xlu0 %301
    %303 = vadd.xlane.f32.xlu0 %v66
    %v304 = vpop.xlane.xlu0 %303
    %305 = vadd.xlane.f32.xlu0 %v67
    %v306 = vpop.xlane.xlu0 %305
    %307 = vadd.xlane.f32.xlu0 %v68
    %v308 = vpop.xlane.xlu0 %307
    %309 = vadd.xlane.f32.xlu0 %v69
    %v310 = vpop.xlane.xlu0 %309
    %311 = vadd.xlane.f32.xlu0 %v70
    %v312 = vpop.xlane.xlu0 %311
    %313 = vadd.xlane.f32.xlu0 %v71
    %v314 = vpop.xlane.xlu0 %313
    %v315 = vmul.f32 %v284, %v138
    %v316 = vmul.f32 %v286, %v138
    %v317 = vmul.f32 %v288, %v138
    %v318 = vmul.f32 %v290, %v138
    %v319 = vmul.f32 %v292, %v138
    %v320 = vmul.f32 %v294, %v138
    %v321 = vmul.f32 %v296, %v138
    %v322 = vmul.f32 %v298, %v138
    %v323 = vmul.f32 %v300, %v138
    %v324 = vmul.f32 %v302, %v138
    %v325 = vmul.f32 %v304, %v138
    %v326 = vmul.f32 %v306, %v138
    %v327 = vmul.f32 %v308, %v138
    %v328 = vmul.f32 %v310, %v138
    %v329 = vmul.f32 %v312, %v138
    %v330 = vmul.f32 %v314, %v138
    %v331 = vsub.f32 %v56, %v315
    %v332 = vsub.f32 %v57, %v316
    %v333 = vsub.f32 %v58, %v317
    %v334 = vsub.f32 %v59, %v318
    %v335 = vsub.f32 %v60, %v319
    %v336 = vsub.f32 %v61, %v320
    %v337 = vsub.f32 %v62, %v321
    %v338 = vsub.f32 %v63, %v322
    %v339 = vsub.f32 %v64, %v323
    %v340 = vsub.f32 %v65, %v324
    %v341 = vsub.f32 %v66, %v325
    %v342 = vsub.f32 %v67, %v326
    %v343 = vsub.f32 %v68, %v327
    %v344 = vsub.f32 %v69, %v328
    %v345 = vsub.f32 %v70, %v329
    %v346 = vsub.f32 %v71, %v330
    %v347 = vmul.f32 %v331, %v331
    %v348 = vmul.f32 %v332, %v332
    %v349 = vmul.f32 %v333, %v333
    %v350 = vmul.f32 %v334, %v334
    %v351 = vmul.f32 %v335, %v335
    %v352 = vmul.f32 %v336, %v336
    %v353 = vmul.f32 %v337, %v337
    %v354 = vmul.f32 %v338, %v338
    %v355 = vmul.f32 %v339, %v339
    %v356 = vmul.f32 %v340, %v340
    %v357 = vmul.f32 %v341, %v341
    %v358 = vmul.f32 %v342, %v342
    %v359 = vmul.f32 %v343, %v343
    %v360 = vmul.f32 %v344, %v344
    %v361 = vmul.f32 %v345, %v345
    %v362 = vmul.f32 %v346, %v346
    %363 = vadd.xlane.f32.xlu0 %v347
    %v364 = vpop.xlane.xlu0 %363
    %365 = vadd.xlane.f32.xlu0 %v348
    %v366 = vpop.xlane.xlu0 %365
    %367 = vadd.xlane.f32.xlu0 %v349
    %v368 = vpop.xlane.xlu0 %367
    %369 = vadd.xlane.f32.xlu0 %v350
    %v370 = vpop.xlane.xlu0 %369
    %371 = vadd.xlane.f32.xlu0 %v351
    %v372 = vpop.xlane.xlu0 %371
    %373 = vadd.xlane.f32.xlu0 %v352
    %v374 = vpop.xlane.xlu0 %373
    %375 = vadd.xlane.f32.xlu0 %v353
    %v376 = vpop.xlane.xlu0 %375
    %377 = vadd.xlane.f32.xlu0 %v354
    %v378 = vpop.xlane.xlu0 %377
    %379 = vadd.xlane.f32.xlu0 %v355
    %v380 = vpop.xlane.xlu0 %379
    %381 = vadd.xlane.f32.xlu0 %v356
    %v382 = vpop.xlane.xlu0 %381
    %383 = vadd.xlane.f32.xlu0 %v357
    %v384 = vpop.xlane.xlu0 %383
    %385 = vadd.xlane.f32.xlu0 %v358
    %v386 = vpop.xlane.xlu0 %385
    %387 = vadd.xlane.f32.xlu0 %v359
    %v388 = vpop.xlane.xlu0 %387
    %389 = vadd.xlane.f32.xlu0 %v360
    %v390 = vpop.xlane.xlu0 %389
    %391 = vadd.xlane.f32.xlu0 %v361
    %v392 = vpop.xlane.xlu0 %391
    %393 = vadd.xlane.f32.xlu0 %v362
    %v394 = vpop.xlane.xlu0 %393
    %v395 = vmul.f32 %v364, %v138
    %v396 = vmul.f32 %v366, %v138
    %v397 = vmul.f32 %v368, %v138
    %v398 = vmul.f32 %v370, %v138
    %v399 = vmul.f32 %v372, %v138
    %v400 = vmul.f32 %v374, %v138
    %v401 = vmul.f32 %v376, %v138
    %v402 = vmul.f32 %v378, %v138
    %v403 = vmul.f32 %v380, %v138
    %v404 = vmul.f32 %v382, %v138
    %v405 = vmul.f32 %v384, %v138
    %v406 = vmul.f32 %v386, %v138
    %v407 = vmul.f32 %v388, %v138
    %v408 = vmul.f32 %v390, %v138
    %v409 = vmul.f32 %v392, %v138
    %v410 = vmul.f32 %v394, %v138
    %v411 = vadd.f32 %v395, 1e-05
    %v412 = vadd.f32 %v396, 1e-05
    %v413 = vadd.f32 %v397, 1e-05
    %v414 = vadd.f32 %v398, 1e-05
    %v415 = vadd.f32 %v399, 1e-05
    %v416 = vadd.f32 %v400, 1e-05
    %v417 = vadd.f32 %v401, 1e-05
    %v418 = vadd.f32 %v402, 1e-05
    %v419 = vadd.f32 %v403, 1e-05
    %v420 = vadd.f32 %v404, 1e-05
    %v421 = vadd.f32 %v405, 1e-05
    %v422 = vadd.f32 %v406, 1e-05
    %v423 = vadd.f32 %v407, 1e-05
    %v424 = vadd.f32 %v408, 1e-05
    %v425 = vadd.f32 %v409, 1e-05
    %v426 = vadd.f32 %v410, 1e-05
    %v427 = vrsqrt.pop %v411
    %v428 = vrsqrt.pop %v412
    %v429 = vrsqrt.pop %v413
    %v430 = vrsqrt.pop %v414
    %v431 = vrsqrt.pop %v415
    %v432 = vrsqrt.pop %v416
    %v433 = vrsqrt.pop %v417
    %v434 = vrsqrt.pop %v418
    %v435 = vrsqrt.pop %v419
    %v436 = vrsqrt.pop %v420
    %v437 = vrsqrt.pop %v421
    %v438 = vrsqrt.pop %v422
    %v439 = vrsqrt.pop %v423
    %v440 = vrsqrt.pop %v424
    %v441 = vrsqrt.pop %v425
    %v442 = vrsqrt.pop %v426
    %v443 = vmul.f32 %v331, %v427
    %v444 = vmul.f32 %v332, %v428
    %v445 = vmul.f32 %v333, %v429
    %v446 = vmul.f32 %v334, %v430
    %v447 = vmul.f32 %v335, %v431
    %v448 = vmul.f32 %v336, %v432
    %v449 = vmul.f32 %v337, %v433
    %v450 = vmul.f32 %v338, %v434
    %v451 = vmul.f32 %v339, %v435
    %v452 = vmul.f32 %v340, %v436
    %v453 = vmul.f32 %v341, %v437
    %v454 = vmul.f32 %v342, %v438
    %v455 = vmul.f32 %v343, %v439
    %v456 = vmul.f32 %v344, %v440
    %v457 = vmul.f32 %v345, %v441
    %v458 = vmul.f32 %v346, %v442
    %v460 = vlaneseq
    %v461 = vshrl.u32 %v460, 7
    %v462 = vsub.s32 0, %v461
    %v463 = vrot.slane %v72, %v462
    %v465 = vmul.f32 %v443, %v463
    %v466 = vmul.f32 %v444, %v463
    %v467 = vmul.f32 %v445, %v463
    %v468 = vmul.f32 %v446, %v463
    %v469 = vmul.f32 %v447, %v463
    %v470 = vmul.f32 %v448, %v463
    %v471 = vmul.f32 %v449, %v463
    %v472 = vmul.f32 %v450, %v463
    %v473 = vmul.f32 %v451, %v463
    %v474 = vmul.f32 %v452, %v463
    %v475 = vmul.f32 %v453, %v463
    %v476 = vmul.f32 %v454, %v463
    %v477 = vmul.f32 %v455, %v463
    %v478 = vmul.f32 %v456, %v463
    %v479 = vmul.f32 %v457, %v463
    %v480 = vmul.f32 %v458, %v463
    %v481 = vpack.c.bf16 %v466, %v465
    %v482 = vpack.c.bf16 %v468, %v467
    %v483 = vpack.c.bf16 %v470, %v469
    %v484 = vpack.c.bf16 %v472, %v471
    %v485 = vpack.c.bf16 %v474, %v473
    %v486 = vpack.c.bf16 %v476, %v475
    %v487 = vpack.c.bf16 %v478, %v477
    %v488 = vpack.c.bf16 %v480, %v479
    %v490 = vlaneseq
    %v491 = vshrl.u32 %v490, 7
    %v492 = vsub.s32 0, %v491
    %v493 = vrot.slane %v89, %v492
    %v511 = vunpack.c.l.b16 %v73
    %v512 = vunpack.c.l.b16 %v74
    %v513 = vunpack.c.l.b16 %v75
    %v514 = vunpack.c.l.b16 %v76
    %v515 = vunpack.c.l.b16 %v77
    %v516 = vunpack.c.l.b16 %v78
    %v517 = vunpack.c.l.b16 %v79
    %v518 = vunpack.c.l.b16 %v80
    %v519 = vunpack.c.l.b16 %v81
    %v520 = vunpack.c.l.b16 %v82
    %v521 = vunpack.c.l.b16 %v83
    %v522 = vunpack.c.l.b16 %v84
    %v523 = vunpack.c.l.b16 %v85
    %v524 = vunpack.c.l.b16 %v86
    %v525 = vunpack.c.l.b16 %v87
    %v526 = vunpack.c.l.b16 %v88
    %v527 = vpack.c.b16 %v512, %v511
    %v528 = vpack.c.b16 %v514, %v513
    %v529 = vpack.c.b16 %v516, %v515
    %v530 = vpack.c.b16 %v518, %v517
    %v531 = vpack.c.b16 %v520, %v519
    %v532 = vpack.c.b16 %v522, %v521
    %v533 = vpack.c.b16 %v524, %v523
    %v534 = vpack.c.b16 %v526, %v525
    %543 = vmatprep.subr.bf16.mxu0 0
    %544 = vmatpush1.bf16.msra.mxu0 %v534
    %545 = vmatprep.subr.bf16.mxu0 0
    %546 = vmatpush1.bf16.msra.mxu0 %v533
    %547 = vmatprep.subr.bf16.mxu0 0
    %548 = vmatpush1.bf16.msra.mxu0 %v532
    %549 = vmatprep.subr.bf16.mxu0 0
    %550 = vmatpush1.bf16.msra.mxu0 %v531
    %551 = vmatprep.subr.bf16.mxu0 0
    %552 = vmatpush1.bf16.msra.mxu0 %v530
    %553 = vmatprep.subr.bf16.mxu0 0
    %554 = vmatpush1.bf16.msra.mxu0 %v529
    %555 = vmatprep.subr.bf16.mxu0 0
    %556 = vmatpush1.bf16.msra.mxu0 %v528
    %557 = vmatprep.subr.bf16.mxu0 0
    %558 = vmatpush1.bf16.msra.mxu0 %v527
    %559 = vmatprep.subr.bf16.mxu0 0
    %560 = vmatpush2.bf16.msra.mxu0 0
    %561 = vmatprep.subr.bf16.mxu0 0
    %562 = vmatpush2.bf16.msra.mxu0 0
    %563 = vmatprep.subr.bf16.mxu0 0
    %564 = vmatpush2.bf16.msra.mxu0 0
    %565 = vmatprep.subr.bf16.mxu0 0
    %566 = vmatpush2.bf16.msra.mxu0 0
    %567 = vmatprep.subr.bf16.mxu0 0
    %568 = vmatpush2.bf16.msra.mxu0 0
    %569 = vmatprep.subr.bf16.mxu0 0
    %570 = vmatpush2.bf16.msra.mxu0 0
    %571 = vmatprep.subr.bf16.mxu0 0
    %572 = vmatpush2.bf16.msra.mxu0 0
    %573 = vmatprep.subr.bf16.mxu0 0
    %574 = vmatpush2.bf16.msra.mxu0 0
    %575 = vmatprep.mubr.bf16.mxu0 0
    %576 = vmatmul.mubr.bf16.gmra.mxu0 %v481
    %v577 = vpop.f32.mrf.mxu0
    %v578 = vadd.f32 %v493, %v577
    %v579 = vpop.f32.mrf.mxu0
    %v580 = vpop.f32.mrf.mxu0
    %v581 = vadd.f32 %v493, %v580
    %v582 = vpop.f32.mrf.mxu0
    %583 = vmatprep.mubr.bf16.mxu0 0
    %584 = vmatmul.mubr.bf16.gmra.mxu0 %v482
    %v585 = vpop.f32.mrf.mxu0
    %v586 = vadd.f32 %v493, %v585
    %v587 = vpop.f32.mrf.mxu0
    %v588 = vpop.f32.mrf.mxu0
    %v589 = vadd.f32 %v493, %v588
    %v590 = vpop.f32.mrf.mxu0
    %591 = vmatprep.mubr.bf16.mxu0 0
    %592 = vmatmul.mubr.bf16.gmra.mxu0 %v483
    %v593 = vpop.f32.mrf.mxu0
    %v594 = vadd.f32 %v493, %v593
    %v595 = vpop.f32.mrf.mxu0
    %v596 = vpop.f32.mrf.mxu0
    %v597 = vadd.f32 %v493, %v596
    %v598 = vpop.f32.mrf.mxu0
    %599 = vmatprep.mubr.bf16.mxu0 0
    %600 = vmatmul.mubr.bf16.gmra.mxu0 %v484
    %v601 = vpop.f32.mrf.mxu0
    %v602 = vadd.f32 %v493, %v601
    %v603 = vpop.f32.mrf.mxu0
    %v604 = vpop.f32.mrf.mxu0
    %v605 = vadd.f32 %v493, %v604
    %v606 = vpop.f32.mrf.mxu0
    %607 = vmatprep.mubr.bf16.mxu0 0
    %608 = vmatmul.mubr.bf16.gmra.mxu0 %v485
    %v609 = vpop.f32.mrf.mxu0
    %v610 = vadd.f32 %v493, %v609
    %v611 = vpop.f32.mrf.mxu0
    %v612 = vpop.f32.mrf.mxu0
    %v613 = vadd.f32 %v493, %v612
    %v614 = vpop.f32.mrf.mxu0
    %615 = vmatprep.mubr.bf16.mxu0 0
    %616 = vmatmul.mubr.bf16.gmra.mxu0 %v486
    %v617 = vpop.f32.mrf.mxu0
    %v618 = vadd.f32 %v493, %v617
    %v619 = vpop.f32.mrf.mxu0
    %v620 = vpop.f32.mrf.mxu0
    %v621 = vadd.f32 %v493, %v620
    %v622 = vpop.f32.mrf.mxu0
    %623 = vmatprep.mubr.bf16.mxu0 0
    %624 = vmatmul.mubr.bf16.gmra.mxu0 %v487
    %v625 = vpop.f32.mrf.mxu0
    %v626 = vadd.f32 %v493, %v625
    %v627 = vpop.f32.mrf.mxu0
    %v628 = vpop.f32.mrf.mxu0
    %v629 = vadd.f32 %v493, %v628
    %v630 = vpop.f32.mrf.mxu0
    %631 = vmatprep.mubr.bf16.mxu0 0
    %632 = vmatmul.mubr.bf16.gmra.mxu0 %v488
    %v633 = vpop.f32.mrf.mxu0
    %v634 = vadd.f32 %v493, %v633
    %v635 = vpop.f32.mrf.mxu0
    %v636 = vpop.f32.mrf.mxu0
    %v637 = vadd.f32 %v493, %v636
    %v638 = vpop.f32.mrf.mxu0
    %639 = vdwg.mxu0
    %v640 = vxor.u32 %v578, 2147483648
    %v641 = vxor.u32 %v581, 2147483648
    %v642 = vxor.u32 %v586, 2147483648
    %v643 = vxor.u32 %v589, 2147483648
    %v644 = vxor.u32 %v594, 2147483648
    %v645 = vxor.u32 %v597, 2147483648
    %v646 = vxor.u32 %v602, 2147483648
    %v647 = vxor.u32 %v605, 2147483648
    %v648 = vxor.u32 %v610, 2147483648
    %v649 = vxor.u32 %v613, 2147483648
    %v650 = vxor.u32 %v618, 2147483648
    %v651 = vxor.u32 %v621, 2147483648
    %v652 = vxor.u32 %v626, 2147483648
    %v653 = vxor.u32 %v629, 2147483648
    %v654 = vxor.u32 %v634, 2147483648
    %v655 = vxor.u32 %v637, 2147483648
    %v656 = vmul.f32 %v640, 1.442695
    %v657 = vpow.pop %v656
    %v658 = vmul.f32 %v641, 1.442695
    %v659 = vpow.pop %v658
    %v660 = vmul.f32 %v642, 1.442695
    %v661 = vpow.pop %v660
    %v662 = vmul.f32 %v643, 1.442695
    %v663 = vpow.pop %v662
    %v664 = vmul.f32 %v644, 1.442695
    %v665 = vpow.pop %v664
    %v666 = vmul.f32 %v645, 1.442695
    %v667 = vpow.pop %v666
    %v668 = vmul.f32 %v646, 1.442695
    %v669 = vpow.pop %v668
    %v670 = vmul.f32 %v647, 1.442695
    %v671 = vpow.pop %v670
    %v672 = vmul.f32 %v648, 1.442695
    %v673 = vpow.pop %v672
    %v674 = vmul.f32 %v649, 1.442695
    %v675 = vpow.pop %v674
    %v676 = vmul.f32 %v650, 1.442695
    %v677 = vpow.pop %v676
    %v678 = vmul.f32 %v651, 1.442695
    %v679 = vpow.pop %v678
    %v680 = vmul.f32 %v652, 1.442695
    %v681 = vpow.pop %v680
    %v682 = vmul.f32 %v653, 1.442695
    %v683 = vpow.pop %v682
    %v684 = vmul.f32 %v654, 1.442695
    %v685 = vpow.pop %v684
    %v686 = vmul.f32 %v655, 1.442695
    %v687 = vpow.pop %v686
    %v688 = vadd.f32 %v657, 1.0
    %v689 = vadd.f32 %v659, 1.0
    %v690 = vadd.f32 %v661, 1.0
    %v691 = vadd.f32 %v663, 1.0
    %v692 = vadd.f32 %v665, 1.0
    %v693 = vadd.f32 %v667, 1.0
    %v694 = vadd.f32 %v669, 1.0
    %v695 = vadd.f32 %v671, 1.0
    %v696 = vadd.f32 %v673, 1.0
    %v697 = vadd.f32 %v675, 1.0
    %v698 = vadd.f32 %v677, 1.0
    %v699 = vadd.f32 %v679, 1.0
    %v700 = vadd.f32 %v681, 1.0
    %v701 = vadd.f32 %v683, 1.0
    %v702 = vadd.f32 %v685, 1.0
    %v703 = vadd.f32 %v687, 1.0
    %v704 = vrcp.pop %v688
    %v705 = vmul.f32 1.0, %v704
    %v706 = vrcp.pop %v689
    %v707 = vmul.f32 1.0, %v706
    %v708 = vrcp.pop %v690
    %v709 = vmul.f32 1.0, %v708
    %v710 = vrcp.pop %v691
    %v711 = vmul.f32 1.0, %v710
    %v712 = vrcp.pop %v692
    %v713 = vmul.f32 1.0, %v712
    %v714 = vrcp.pop %v693
    %v715 = vmul.f32 1.0, %v714
    %v716 = vrcp.pop %v694
    %v717 = vmul.f32 1.0, %v716
    %v718 = vrcp.pop %v695
    %v719 = vmul.f32 1.0, %v718
    %v720 = vrcp.pop %v696
    %v721 = vmul.f32 1.0, %v720
    %v722 = vrcp.pop %v697
    %v723 = vmul.f32 1.0, %v722
    %v724 = vrcp.pop %v698
    %v725 = vmul.f32 1.0, %v724
    %v726 = vrcp.pop %v699
    %v727 = vmul.f32 1.0, %v726
    %v728 = vrcp.pop %v700
    %v729 = vmul.f32 1.0, %v728
    %v730 = vrcp.pop %v701
    %v731 = vmul.f32 1.0, %v730
    %v732 = vrcp.pop %v702
    %v733 = vmul.f32 1.0, %v732
    %v734 = vrcp.pop %v703
    %v735 = vmul.f32 1.0, %v734
    %v752 = vunpack.c.l.b16 %v90
    %v753 = vunpack.c.l.b16 %v91
    %v754 = vunpack.c.l.b16 %v92
    %v755 = vunpack.c.l.b16 %v93
    %v756 = vunpack.c.l.b16 %v94
    %v757 = vunpack.c.l.b16 %v95
    %v758 = vunpack.c.l.b16 %v96
    %v759 = vunpack.c.l.b16 %v97
    %v760 = vunpack.c.l.b16 %v98
    %v761 = vunpack.c.l.b16 %v99
    %v762 = vunpack.c.l.b16 %v100
    %v763 = vunpack.c.l.b16 %v101
    %v764 = vunpack.c.l.b16 %v102
    %v765 = vunpack.c.l.b16 %v103
    %v766 = vunpack.c.l.b16 %v104
    %v767 = vunpack.c.l.b16 %v105
    %v768 = vpack.c.b16 %v753, %v752
    %v769 = vpack.c.b16 %v755, %v754
    %v770 = vpack.c.b16 %v757, %v756
    %v771 = vpack.c.b16 %v759, %v758
    %v772 = vpack.c.b16 %v761, %v760
    %v773 = vpack.c.b16 %v763, %v762
    %v774 = vpack.c.b16 %v765, %v764
    %v775 = vpack.c.b16 %v767, %v766
    %784 = vmatprep.subr.bf16.mxu0 0
    %785 = vmatpush1.bf16.msra.mxu0 %v775
    %786 = vmatprep.subr.bf16.mxu0 0
    %787 = vmatpush1.bf16.msra.mxu0 %v774
    %788 = vmatprep.subr.bf16.mxu0 0
    %789 = vmatpush1.bf16.msra.mxu0 %v773
    %790 = vmatprep.subr.bf16.mxu0 0
    %791 = vmatpush1.bf16.msra.mxu0 %v772
    %792 = vmatprep.subr.bf16.mxu0 0
    %793 = vmatpush1.bf16.msra.mxu0 %v771
    %794 = vmatprep.subr.bf16.mxu0 0
    %795 = vmatpush1.bf16.msra.mxu0 %v770
    %796 = vmatprep.subr.bf16.mxu0 0
    %797 = vmatpush1.bf16.msra.mxu0 %v769
    %798 = vmatprep.subr.bf16.mxu0 0
    %799 = vmatpush1.bf16.msra.mxu0 %v768
    %800 = vmatprep.subr.bf16.mxu0 0
    %801 = vmatpush2.bf16.msra.mxu0 0
    %802 = vmatprep.subr.bf16.mxu0 0
    %803 = vmatpush2.bf16.msra.mxu0 0
    %804 = vmatprep.subr.bf16.mxu0 0
    %805 = vmatpush2.bf16.msra.mxu0 0
    %806 = vmatprep.subr.bf16.mxu0 0
    %807 = vmatpush2.bf16.msra.mxu0 0
    %808 = vmatprep.subr.bf16.mxu0 0
    %809 = vmatpush2.bf16.msra.mxu0 0
    %810 = vmatprep.subr.bf16.mxu0 0
    %811 = vmatpush2.bf16.msra.mxu0 0
    %812 = vmatprep.subr.bf16.mxu0 0
    %813 = vmatpush2.bf16.msra.mxu0 0
    %814 = vmatprep.subr.bf16.mxu0 0
    %815 = vmatpush2.bf16.msra.mxu0 0
    %816 = vmatprep.mubr.bf16.mxu0 0
    %817 = vmatmul.mubr.bf16.gmra.mxu0 %v481
    %v818 = vpop.f32.mrf.mxu0
    %v819 = vadd.f32 0.0, %v818
    %v820 = vpop.f32.mrf.mxu0
    %v821 = vpop.f32.mrf.mxu0
    %v822 = vadd.f32 0.0, %v821
    %v823 = vpop.f32.mrf.mxu0
    %824 = vmatprep.mubr.bf16.mxu0 0
    %825 = vmatmul.mubr.bf16.gmra.mxu0 %v482
    %v826 = vpop.f32.mrf.mxu0
    %v827 = vadd.f32 0.0, %v826
    %v828 = vpop.f32.mrf.mxu0
    %v829 = vpop.f32.mrf.mxu0
    %v830 = vadd.f32 0.0, %v829
    %v831 = vpop.f32.mrf.mxu0
    %832 = vmatprep.mubr.bf16.mxu0 0
    %833 = vmatmul.mubr.bf16.gmra.mxu0 %v483
    %v834 = vpop.f32.mrf.mxu0
    %v835 = vadd.f32 0.0, %v834
    %v836 = vpop.f32.mrf.mxu0
    %v837 = vpop.f32.mrf.mxu0
    %v838 = vadd.f32 0.0, %v837
    %v839 = vpop.f32.mrf.mxu0
    %840 = vmatprep.mubr.bf16.mxu0 0
    %841 = vmatmul.mubr.bf16.gmra.mxu0 %v484
    %v842 = vpop.f32.mrf.mxu0
    %v843 = vadd.f32 0.0, %v842
    %v844 = vpop.f32.mrf.mxu0
    %v845 = vpop.f32.mrf.mxu0
    %v846 = vadd.f32 0.0, %v845
    %v847 = vpop.f32.mrf.mxu0
    %848 = vmatprep.mubr.bf16.mxu0 0
    %849 = vmatmul.mubr.bf16.gmra.mxu0 %v485
    %v850 = vpop.f32.mrf.mxu0
    %v851 = vadd.f32 0.0, %v850
    %v852 = vpop.f32.mrf.mxu0
    %v853 = vpop.f32.mrf.mxu0
    %v854 = vadd.f32 0.0, %v853
    %v855 = vpop.f32.mrf.mxu0
    %856 = vmatprep.mubr.bf16.mxu0 0
    %857 = vmatmul.mubr.bf16.gmra.mxu0 %v486
    %v858 = vpop.f32.mrf.mxu0
    %v859 = vadd.f32 0.0, %v858
    %v860 = vpop.f32.mrf.mxu0
    %v861 = vpop.f32.mrf.mxu0
    %v862 = vadd.f32 0.0, %v861
    %v863 = vpop.f32.mrf.mxu0
    %864 = vmatprep.mubr.bf16.mxu0 0
    %865 = vmatmul.mubr.bf16.gmra.mxu0 %v487
    %v866 = vpop.f32.mrf.mxu0
    %v867 = vadd.f32 0.0, %v866
    %v868 = vpop.f32.mrf.mxu0
    %v869 = vpop.f32.mrf.mxu0
    %v870 = vadd.f32 0.0, %v869
    %v871 = vpop.f32.mrf.mxu0
    %872 = vmatprep.mubr.bf16.mxu0 0
    %873 = vmatmul.mubr.bf16.gmra.mxu0 %v488
    %v874 = vpop.f32.mrf.mxu0
    %v875 = vadd.f32 0.0, %v874
    %v876 = vpop.f32.mrf.mxu0
    %v877 = vpop.f32.mrf.mxu0
    %v878 = vadd.f32 0.0, %v877
    %v879 = vpop.f32.mrf.mxu0
    %880 = vdwg.mxu0
    %v881 = vmul.f32 %v267, %v705
    %v882 = vmul.f32 %v268, %v707
    %v883 = vmul.f32 %v269, %v709
    %v884 = vmul.f32 %v270, %v711
    %v885 = vmul.f32 %v271, %v713
    %v886 = vmul.f32 %v272, %v715
    %v887 = vmul.f32 %v273, %v717
    %v888 = vmul.f32 %v274, %v719
    %v889 = vmul.f32 %v275, %v721
    %v890 = vmul.f32 %v276, %v723
    %v891 = vmul.f32 %v277, %v725
    %v892 = vmul.f32 %v278, %v727
    %v893 = vmul.f32 %v279, %v729
    %v894 = vmul.f32 %v280, %v731
    %v895 = vmul.f32 %v281, %v733
    %v896 = vmul.f32 %v282, %v735
    %v897 = vadd.f32 %v881, %v819
    %v898 = vadd.f32 %v882, %v822
    %v899 = vadd.f32 %v883, %v827
    %v900 = vadd.f32 %v884, %v830
    %v901 = vadd.f32 %v885, %v835
    %v902 = vadd.f32 %v886, %v838
    %v903 = vadd.f32 %v887, %v843
    %v904 = vadd.f32 %v888, %v846
    %v905 = vadd.f32 %v889, %v851
    %v906 = vadd.f32 %v890, %v854
    %v907 = vadd.f32 %v891, %v859
    %v908 = vadd.f32 %v892, %v862
    %v909 = vadd.f32 %v893, %v867
    %v910 = vadd.f32 %v894, %v870
    %v911 = vadd.f32 %v895, %v875
    %v912 = vadd.f32 %v896, %v878
    %v913 = vpack.c.bf16 %v898, %v897
    %v914 = vpack.c.bf16 %v900, %v899
    %v915 = vpack.c.bf16 %v902, %v901
    %v916 = vpack.c.bf16 %v904, %v903
    %v917 = vpack.c.bf16 %v906, %v905
    %v918 = vpack.c.bf16 %v908, %v907
    %v919 = vpack.c.bf16 %v910, %v909
    %v920 = vpack.c.bf16 %v912, %v911
    %v921 = vld [vmem:[%s6] sm:$0xff]
    %v922 = vld [vmem:[%s6 + $0x8] sm:$0xff]
    %v923 = vld [vmem:[%s6 + $0x10] sm:$0xff]
    %v924 = vld [vmem:[%s6 + $0x18] sm:$0xff]
    %v925 = vld [vmem:[%s6 + $0x20] sm:$0xff]
    %v926 = vld [vmem:[%s6 + $0x28] sm:$0xff]
    %v927 = vld [vmem:[%s6 + $0x30] sm:$0xff]
    %v928 = vld [vmem:[%s6 + $0x38] sm:$0xff]
    %v929 = vld [vmem:[%s6 + $0x40] sm:$0xff]
    %v930 = vld [vmem:[%s6 + $0x48] sm:$0xff]
    %v931 = vld [vmem:[%s6 + $0x50] sm:$0xff]
    %v932 = vld [vmem:[%s6 + $0x58] sm:$0xff]
    %v933 = vld [vmem:[%s6 + $0x60] sm:$0xff]
    %v934 = vld [vmem:[%s6 + $0x68] sm:$0xff]
    %v935 = vld [vmem:[%s6 + $0x70] sm:$0xff]
    %v936 = vld [vmem:[%s6 + $0x78] sm:$0xff]
    %v937 = vld [vmem:[%s6 + $0x80] sm:$0xff]
    %v938 = vld [vmem:[%s6 + $0x88] sm:$0xff]
    %v939 = vld [vmem:[%s6 + $0x90] sm:$0xff]
    %v940 = vld [vmem:[%s6 + $0x98] sm:$0xff]
    %v941 = vld [vmem:[%s6 + $0xa0] sm:$0xff]
    %v942 = vld [vmem:[%s6 + $0xa8] sm:$0xff]
    %v943 = vld [vmem:[%s6 + $0xb0] sm:$0xff]
    %v944 = vld [vmem:[%s6 + $0xb8] sm:$0xff]
    %v945 = vld [vmem:[%s6 + $0xc0] sm:$0xff]
    %v946 = vld [vmem:[%s6 + $0xc8] sm:$0xff]
    %v947 = vld [vmem:[%s6 + $0xd0] sm:$0xff]
    %v948 = vld [vmem:[%s6 + $0xd8] sm:$0xff]
    %v949 = vld [vmem:[%s6 + $0xe0] sm:$0xff]
    %v950 = vld [vmem:[%s6 + $0xe8] sm:$0xff]
    %v951 = vld [vmem:[%s6 + $0xf0] sm:$0xff]
    %v952 = vld [vmem:[%s6 + $0xf8] sm:$0xff]
    %v985 = vunpack.c.l.b16 %v921
    %v986 = vunpack.c.h.b16 %v921
    %v987 = vunpack.c.l.b16 %v922
    %v988 = vunpack.c.h.b16 %v922
    %v989 = vunpack.c.l.b16 %v923
    %v990 = vunpack.c.h.b16 %v923
    %v991 = vunpack.c.l.b16 %v924
    %v992 = vunpack.c.h.b16 %v924
    %v993 = vunpack.c.l.b16 %v925
    %v994 = vunpack.c.h.b16 %v925
    %v995 = vunpack.c.l.b16 %v926
    %v996 = vunpack.c.h.b16 %v926
    %v997 = vunpack.c.l.b16 %v927
    %v998 = vunpack.c.h.b16 %v927
    %v999 = vunpack.c.l.b16 %v928
    %v1000 = vunpack.c.h.b16 %v928
    %v1001 = vunpack.c.l.b16 %v929
    %v1002 = vunpack.c.h.b16 %v929
    %v1003 = vunpack.c.l.b16 %v930
    %v1004 = vunpack.c.h.b16 %v930
    %v1005 = vunpack.c.l.b16 %v931
    %v1006 = vunpack.c.h.b16 %v931
    %v1007 = vunpack.c.l.b16 %v932
    %v1008 = vunpack.c.h.b16 %v932
    %v1009 = vunpack.c.l.b16 %v933
    %v1010 = vunpack.c.h.b16 %v933
    %v1011 = vunpack.c.l.b16 %v934
    %v1012 = vunpack.c.h.b16 %v934
    %v1013 = vunpack.c.l.b16 %v935
    %v1014 = vunpack.c.h.b16 %v935
    %v1015 = vunpack.c.l.b16 %v936
    %v1016 = vunpack.c.h.b16 %v936
    %v1017 = vunpack.c.l.b16 %v937
    %v1018 = vunpack.c.h.b16 %v937
    %v1019 = vunpack.c.l.b16 %v938
    %v1020 = vunpack.c.h.b16 %v938
    %v1021 = vunpack.c.l.b16 %v939
    %v1022 = vunpack.c.h.b16 %v939
    %v1023 = vunpack.c.l.b16 %v940
    %v1024 = vunpack.c.h.b16 %v940
    %v1025 = vunpack.c.l.b16 %v941
    %v1026 = vunpack.c.h.b16 %v941
    %v1027 = vunpack.c.l.b16 %v942
    %v1028 = vunpack.c.h.b16 %v942
    %v1029 = vunpack.c.l.b16 %v943
    %v1030 = vunpack.c.h.b16 %v943
    %v1031 = vunpack.c.l.b16 %v944
    %v1032 = vunpack.c.h.b16 %v944
    %v1033 = vunpack.c.l.b16 %v945
    %v1034 = vunpack.c.h.b16 %v945
    %v1035 = vunpack.c.l.b16 %v946
    %v1036 = vunpack.c.h.b16 %v946
    %v1037 = vunpack.c.l.b16 %v947
    %v1038 = vunpack.c.h.b16 %v947
    %v1039 = vunpack.c.l.b16 %v948
    %v1040 = vunpack.c.h.b16 %v948
    %v1041 = vunpack.c.l.b16 %v949
    %v1042 = vunpack.c.h.b16 %v949
    %v1043 = vunpack.c.l.b16 %v950
    %v1044 = vunpack.c.h.b16 %v950
    %v1045 = vunpack.c.l.b16 %v951
    %v1046 = vunpack.c.h.b16 %v951
    %v1047 = vunpack.c.l.b16 %v952
    %v1048 = vunpack.c.h.b16 %v952
    %v1049 = vpack.c.b16 %v989, %v985
    %v1050 = vpack.c.b16 %v990, %v986
    %v1051 = vpack.c.b16 %v991, %v987
    %v1052 = vpack.c.b16 %v992, %v988
    %v1053 = vpack.c.b16 %v997, %v993
    %v1054 = vpack.c.b16 %v998, %v994
    %v1055 = vpack.c.b16 %v999, %v995
    %v1056 = vpack.c.b16 %v1000, %v996
    %v1057 = vpack.c.b16 %v1005, %v1001
    %v1058 = vpack.c.b16 %v1006, %v1002
    %v1059 = vpack.c.b16 %v1007, %v1003
    %v1060 = vpack.c.b16 %v1008, %v1004
    %v1061 = vpack.c.b16 %v1013, %v1009
    %v1062 = vpack.c.b16 %v1014, %v1010
    %v1063 = vpack.c.b16 %v1015, %v1011
    %v1064 = vpack.c.b16 %v1016, %v1012
    %v1065 = vpack.c.b16 %v1021, %v1017
    %v1066 = vpack.c.b16 %v1022, %v1018
    %v1067 = vpack.c.b16 %v1023, %v1019
    %v1068 = vpack.c.b16 %v1024, %v1020
    %v1069 = vpack.c.b16 %v1029, %v1025
    %v1070 = vpack.c.b16 %v1030, %v1026
    %v1071 = vpack.c.b16 %v1031, %v1027
    %v1072 = vpack.c.b16 %v1032, %v1028
    %v1073 = vpack.c.b16 %v1037, %v1033
    %v1074 = vpack.c.b16 %v1038, %v1034
    %v1075 = vpack.c.b16 %v1039, %v1035
    %v1076 = vpack.c.b16 %v1040, %v1036
    %v1077 = vpack.c.b16 %v1045, %v1041
    %v1078 = vpack.c.b16 %v1046, %v1042
    %v1079 = vpack.c.b16 %v1047, %v1043
    %v1080 = vpack.c.b16 %v1048, %v1044
    %1113 = vmatprep.subr.bf16.mxu0 %v1078
    %1114 = vmatpush1.bf16.msra.mxu0 %v1077
    %1115 = vmatprep.subr.bf16.mxu0 %v1074
    %1116 = vmatpush1.bf16.msra.mxu0 %v1073
    %1117 = vmatprep.subr.bf16.mxu0 %v1070
    %1118 = vmatpush1.bf16.msra.mxu0 %v1069
    %1119 = vmatprep.subr.bf16.mxu0 %v1066
    %1120 = vmatpush1.bf16.msra.mxu0 %v1065
    %1121 = vmatprep.subr.bf16.mxu0 %v1062
    %1122 = vmatpush1.bf16.msra.mxu0 %v1061
    %1123 = vmatprep.subr.bf16.mxu0 %v1058
    %1124 = vmatpush1.bf16.msra.mxu0 %v1057
    %1125 = vmatprep.subr.bf16.mxu0 %v1054
    %1126 = vmatpush1.bf16.msra.mxu0 %v1053
    %1127 = vmatprep.subr.bf16.mxu0 %v1050
    %1128 = vmatpush1.bf16.msra.mxu0 %v1049
    %1129 = vmatprep.subr.bf16.mxu0 0
    %1130 = vmatpush2.bf16.msra.mxu0 0
    %1131 = vmatprep.subr.bf16.mxu0 0
    %1132 = vmatpush2.bf16.msra.mxu0 0
    %1133 = vmatprep.subr.bf16.mxu0 0
    %1134 = vmatpush2.bf16.msra.mxu0 0
    %1135 = vmatprep.subr.bf16.mxu0 0
    %1136 = vmatpush2.bf16.msra.mxu0 0
    %1137 = vmatprep.subr.bf16.mxu0 0
    %1138 = vmatpush2.bf16.msra.mxu0 0
    %1139 = vmatprep.subr.bf16.mxu0 0
    %1140 = vmatpush2.bf16.msra.mxu0 0
    %1141 = vmatprep.subr.bf16.mxu0 0
    %1142 = vmatpush2.bf16.msra.mxu0 0
    %1143 = vmatprep.subr.bf16.mxu0 0
    %1144 = vmatpush2.bf16.msra.mxu0 0
    %1145 = vmatprep.mubr.bf16.mxu0 0
    %1146 = vmatmul.mubr.bf16.gmra.mxu0 %v913
    %v1147 = vpop.f32.mrf.mxu0
    %v1148 = vadd.f32 0.0, %v1147
    %v1149 = vpop.f32.mrf.mxu0
    %v1150 = vadd.f32 0.0, %v1149
    %v1151 = vpop.f32.mrf.mxu0
    %v1152 = vadd.f32 0.0, %v1151
    %v1153 = vpop.f32.mrf.mxu0
    %v1154 = vadd.f32 0.0, %v1153
    %1155 = vmatprep.mubr.bf16.mxu0 0
    %1156 = vmatmul.mubr.bf16.gmra.mxu0 %v914
    %v1157 = vpop.f32.mrf.mxu0
    %v1158 = vadd.f32 0.0, %v1157
    %v1159 = vpop.f32.mrf.mxu0
    %v1160 = vadd.f32 0.0, %v1159
    %v1161 = vpop.f32.mrf.mxu0
    %v1162 = vadd.f32 0.0, %v1161
    %v1163 = vpop.f32.mrf.mxu0
    %v1164 = vadd.f32 0.0, %v1163
    %1165 = vmatprep.mubr.bf16.mxu0 0
    %1166 = vmatmul.mubr.bf16.gmra.mxu0 %v915
    %v1167 = vpop.f32.mrf.mxu0
    %v1168 = vadd.f32 0.0, %v1167
    %v1169 = vpop.f32.mrf.mxu0
    %v1170 = vadd.f32 0.0, %v1169
    %v1171 = vpop.f32.mrf.mxu0
    %v1172 = vadd.f32 0.0, %v1171
    %v1173 = vpop.f32.mrf.mxu0
    %v1174 = vadd.f32 0.0, %v1173
    %1175 = vmatprep.mubr.bf16.mxu0 0
    %1176 = vmatmul.mubr.bf16.gmra.mxu0 %v916
    %v1177 = vpop.f32.mrf.mxu0
    %v1178 = vadd.f32 0.0, %v1177
    %v1179 = vpop.f32.mrf.mxu0
    %v1180 = vadd.f32 0.0, %v1179
    %v1181 = vpop.f32.mrf.mxu0
    %v1182 = vadd.f32 0.0, %v1181
    %v1183 = vpop.f32.mrf.mxu0
    %v1184 = vadd.f32 0.0, %v1183
    %1185 = vmatprep.mubr.bf16.mxu0 0
    %1186 = vmatmul.mubr.bf16.gmra.mxu0 %v917
    %v1187 = vpop.f32.mrf.mxu0
    %v1188 = vadd.f32 0.0, %v1187
    %v1189 = vpop.f32.mrf.mxu0
    %v1190 = vadd.f32 0.0, %v1189
    %v1191 = vpop.f32.mrf.mxu0
    %v1192 = vadd.f32 0.0, %v1191
    %v1193 = vpop.f32.mrf.mxu0
    %v1194 = vadd.f32 0.0, %v1193
    %1195 = vmatprep.mubr.bf16.mxu0 0
    %1196 = vmatmul.mubr.bf16.gmra.mxu0 %v918
    %v1197 = vpop.f32.mrf.mxu0
    %v1198 = vadd.f32 0.0, %v1197
    %v1199 = vpop.f32.mrf.mxu0
    %v1200 = vadd.f32 0.0, %v1199
    %v1201 = vpop.f32.mrf.mxu0
    %v1202 = vadd.f32 0.0, %v1201
    %v1203 = vpop.f32.mrf.mxu0
    %v1204 = vadd.f32 0.0, %v1203
    %1205 = vmatprep.mubr.bf16.mxu0 0
    %1206 = vmatmul.mubr.bf16.gmra.mxu0 %v919
    %v1207 = vpop.f32.mrf.mxu0
    %v1208 = vadd.f32 0.0, %v1207
    %v1209 = vpop.f32.mrf.mxu0
    %v1210 = vadd.f32 0.0, %v1209
    %v1211 = vpop.f32.mrf.mxu0
    %v1212 = vadd.f32 0.0, %v1211
    %v1213 = vpop.f32.mrf.mxu0
    %v1214 = vadd.f32 0.0, %v1213
    %1215 = vmatprep.mubr.bf16.mxu0 0
    %1216 = vmatmul.mubr.bf16.gmra.mxu0 %v920
    %v1217 = vpop.f32.mrf.mxu0
    %v1218 = vadd.f32 0.0, %v1217
    %v1219 = vpop.f32.mrf.mxu0
    %v1220 = vadd.f32 0.0, %v1219
    %v1221 = vpop.f32.mrf.mxu0
    %v1222 = vadd.f32 0.0, %v1221
    %v1223 = vpop.f32.mrf.mxu0
    %v1224 = vadd.f32 0.0, %v1223
    %1225 = vdwg.mxu0
    %1226 = vmatprep.subr.bf16.mxu0 %v1080
    %1227 = vmatpush1.bf16.msra.mxu0 %v1079
    %1228 = vmatprep.subr.bf16.mxu0 %v1076
    %1229 = vmatpush1.bf16.msra.mxu0 %v1075
    %1230 = vmatprep.subr.bf16.mxu0 %v1072
    %1231 = vmatpush1.bf16.msra.mxu0 %v1071
    %1232 = vmatprep.subr.bf16.mxu0 %v1068
    %1233 = vmatpush1.bf16.msra.mxu0 %v1067
    %1234 = vmatprep.subr.bf16.mxu0 %v1064
    %1235 = vmatpush1.bf16.msra.mxu0 %v1063
    %1236 = vmatprep.subr.bf16.mxu0 %v1060
    %1237 = vmatpush1.bf16.msra.mxu0 %v1059
    %1238 = vmatprep.subr.bf16.mxu0 %v1056
    %1239 = vmatpush1.bf16.msra.mxu0 %v1055
    %1240 = vmatprep.subr.bf16.mxu0 %v1052
    %1241 = vmatpush1.bf16.msra.mxu0 %v1051
    %1242 = vmatprep.subr.bf16.mxu0 0
    %1243 = vmatpush2.bf16.msra.mxu0 0
    %1244 = vmatprep.subr.bf16.mxu0 0
    %1245 = vmatpush2.bf16.msra.mxu0 0
    %1246 = vmatprep.subr.bf16.mxu0 0
    %1247 = vmatpush2.bf16.msra.mxu0 0
    %1248 = vmatprep.subr.bf16.mxu0 0
    %1249 = vmatpush2.bf16.msra.mxu0 0
    %1250 = vmatprep.subr.bf16.mxu0 0
    %1251 = vmatpush2.bf16.msra.mxu0 0
    %1252 = vmatprep.subr.bf16.mxu0 0
    %1253 = vmatpush2.bf16.msra.mxu0 0
    %1254 = vmatprep.subr.bf16.mxu0 0
    %1255 = vmatpush2.bf16.msra.mxu0 0
    %1256 = vmatprep.subr.bf16.mxu0 0
    %1257 = vmatpush2.bf16.msra.mxu0 0
    %1258 = vmatprep.mubr.bf16.mxu0 0
    %1259 = vmatmul.mubr.bf16.gmra.mxu0 %v913
    %v1260 = vpop.f32.mrf.mxu0
    %v1261 = vadd.f32 0.0, %v1260
    %v1262 = vpop.f32.mrf.mxu0
    %v1263 = vadd.f32 0.0, %v1262
    %v1264 = vpop.f32.mrf.mxu0
    %v1265 = vadd.f32 0.0, %v1264
    %v1266 = vpop.f32.mrf.mxu0
    %v1267 = vadd.f32 0.0, %v1266
    %1268 = vmatprep.mubr.bf16.mxu0 0
    %1269 = vmatmul.mubr.bf16.gmra.mxu0 %v914
    %v1270 = vpop.f32.mrf.mxu0
    %v1271 = vadd.f32 0.0, %v1270
    %v1272 = vpop.f32.mrf.mxu0
    %v1273 = vadd.f32 0.0, %v1272
    %v1274 = vpop.f32.mrf.mxu0
    %v1275 = vadd.f32 0.0, %v1274
    %v1276 = vpop.f32.mrf.mxu0
    %v1277 = vadd.f32 0.0, %v1276
    %1278 = vmatprep.mubr.bf16.mxu0 0
    %1279 = vmatmul.mubr.bf16.gmra.mxu0 %v915
    %v1280 = vpop.f32.mrf.mxu0
    %v1281 = vadd.f32 0.0, %v1280
    %v1282 = vpop.f32.mrf.mxu0
    %v1283 = vadd.f32 0.0, %v1282
    %v1284 = vpop.f32.mrf.mxu0
    %v1285 = vadd.f32 0.0, %v1284
    %v1286 = vpop.f32.mrf.mxu0
    %v1287 = vadd.f32 0.0, %v1286
    %1288 = vmatprep.mubr.bf16.mxu0 0
    %1289 = vmatmul.mubr.bf16.gmra.mxu0 %v916
    %v1290 = vpop.f32.mrf.mxu0
    %v1291 = vadd.f32 0.0, %v1290
    %v1292 = vpop.f32.mrf.mxu0
    %v1293 = vadd.f32 0.0, %v1292
    %v1294 = vpop.f32.mrf.mxu0
    %v1295 = vadd.f32 0.0, %v1294
    %v1296 = vpop.f32.mrf.mxu0
    %v1297 = vadd.f32 0.0, %v1296
    %1298 = vmatprep.mubr.bf16.mxu0 0
    %1299 = vmatmul.mubr.bf16.gmra.mxu0 %v917
    %v1300 = vpop.f32.mrf.mxu0
    %v1301 = vadd.f32 0.0, %v1300
    %v1302 = vpop.f32.mrf.mxu0
    %v1303 = vadd.f32 0.0, %v1302
    %v1304 = vpop.f32.mrf.mxu0
    %v1305 = vadd.f32 0.0, %v1304
    %v1306 = vpop.f32.mrf.mxu0
    %v1307 = vadd.f32 0.0, %v1306
    %1308 = vmatprep.mubr.bf16.mxu0 0
    %1309 = vmatmul.mubr.bf16.gmra.mxu0 %v918
    %v1310 = vpop.f32.mrf.mxu0
    %v1311 = vadd.f32 0.0, %v1310
    %v1312 = vpop.f32.mrf.mxu0
    %v1313 = vadd.f32 0.0, %v1312
    %v1314 = vpop.f32.mrf.mxu0
    %v1315 = vadd.f32 0.0, %v1314
    %v1316 = vpop.f32.mrf.mxu0
    %v1317 = vadd.f32 0.0, %v1316
    %1318 = vmatprep.mubr.bf16.mxu0 0
    %1319 = vmatmul.mubr.bf16.gmra.mxu0 %v919
    %v1320 = vpop.f32.mrf.mxu0
    %v1321 = vadd.f32 0.0, %v1320
    %v1322 = vpop.f32.mrf.mxu0
    %v1323 = vadd.f32 0.0, %v1322
    %v1324 = vpop.f32.mrf.mxu0
    %v1325 = vadd.f32 0.0, %v1324
    %v1326 = vpop.f32.mrf.mxu0
    %v1327 = vadd.f32 0.0, %v1326
    %1328 = vmatprep.mubr.bf16.mxu0 0
    %1329 = vmatmul.mubr.bf16.gmra.mxu0 %v920
    %v1330 = vpop.f32.mrf.mxu0
    %v1331 = vadd.f32 0.0, %v1330
    %v1332 = vpop.f32.mrf.mxu0
    %v1333 = vadd.f32 0.0, %v1332
    %v1334 = vpop.f32.mrf.mxu0
    %v1335 = vadd.f32 0.0, %v1334
    %v1336 = vpop.f32.mrf.mxu0
    %v1337 = vadd.f32 0.0, %v1336
    %1338 = vdwg.mxu0
    %v1339 = vld [vmem:[%s7] sm:$0xff]
    %v1340 = vld [vmem:[%s7 + $0x8] sm:$0xff]
    %v1341 = vld [vmem:[%s7 + $0x10] sm:$0xff]
    %v1342 = vld [vmem:[%s7 + $0x18] sm:$0xff]
    %v1343 = vld [vmem:[%s7 + $0x20] sm:$0xff]
    %v1344 = vld [vmem:[%s7 + $0x28] sm:$0xff]
    %v1345 = vld [vmem:[%s7 + $0x30] sm:$0xff]
    %v1346 = vld [vmem:[%s7 + $0x38] sm:$0xff]
    %v1347 = vld [vmem:[%s7 + $0x40] sm:$0xff]
    %v1348 = vld [vmem:[%s7 + $0x48] sm:$0xff]
    %v1349 = vld [vmem:[%s7 + $0x50] sm:$0xff]
    %v1350 = vld [vmem:[%s7 + $0x58] sm:$0xff]
    %v1351 = vld [vmem:[%s7 + $0x60] sm:$0xff]
    %v1352 = vld [vmem:[%s7 + $0x68] sm:$0xff]
    %v1353 = vld [vmem:[%s7 + $0x70] sm:$0xff]
    %v1354 = vld [vmem:[%s7 + $0x78] sm:$0xff]
    %v1355 = vld [vmem:[%s7 + $0x80] sm:$0xff]
    %v1356 = vld [vmem:[%s7 + $0x88] sm:$0xff]
    %v1357 = vld [vmem:[%s7 + $0x90] sm:$0xff]
    %v1358 = vld [vmem:[%s7 + $0x98] sm:$0xff]
    %v1359 = vld [vmem:[%s7 + $0xa0] sm:$0xff]
    %v1360 = vld [vmem:[%s7 + $0xa8] sm:$0xff]
    %v1361 = vld [vmem:[%s7 + $0xb0] sm:$0xff]
    %v1362 = vld [vmem:[%s7 + $0xb8] sm:$0xff]
    %v1363 = vld [vmem:[%s7 + $0xc0] sm:$0xff]
    %v1364 = vld [vmem:[%s7 + $0xc8] sm:$0xff]
    %v1365 = vld [vmem:[%s7 + $0xd0] sm:$0xff]
    %v1366 = vld [vmem:[%s7 + $0xd8] sm:$0xff]
    %v1367 = vld [vmem:[%s7 + $0xe0] sm:$0xff]
    %v1368 = vld [vmem:[%s7 + $0xe8] sm:$0xff]
    %v1369 = vld [vmem:[%s7 + $0xf0] sm:$0xff]
    %v1370 = vld [vmem:[%s7 + $0xf8] sm:$0xff]
    %v1403 = vunpack.c.l.b16 %v1339
    %v1404 = vunpack.c.h.b16 %v1339
    %v1405 = vunpack.c.l.b16 %v1340
    %v1406 = vunpack.c.h.b16 %v1340
    %v1407 = vunpack.c.l.b16 %v1341
    %v1408 = vunpack.c.h.b16 %v1341
    %v1409 = vunpack.c.l.b16 %v1342
    %v1410 = vunpack.c.h.b16 %v1342
    %v1411 = vunpack.c.l.b16 %v1343
    %v1412 = vunpack.c.h.b16 %v1343
    %v1413 = vunpack.c.l.b16 %v1344
    %v1414 = vunpack.c.h.b16 %v1344
    %v1415 = vunpack.c.l.b16 %v1345
    %v1416 = vunpack.c.h.b16 %v1345
    %v1417 = vunpack.c.l.b16 %v1346
    %v1418 = vunpack.c.h.b16 %v1346
    %v1419 = vunpack.c.l.b16 %v1347
    %v1420 = vunpack.c.h.b16 %v1347
    %v1421 = vunpack.c.l.b16 %v1348
    %v1422 = vunpack.c.h.b16 %v1348
    %v1423 = vunpack.c.l.b16 %v1349
    %v1424 = vunpack.c.h.b16 %v1349
    %v1425 = vunpack.c.l.b16 %v1350
    %v1426 = vunpack.c.h.b16 %v1350
    %v1427 = vunpack.c.l.b16 %v1351
    %v1428 = vunpack.c.h.b16 %v1351
    %v1429 = vunpack.c.l.b16 %v1352
    %v1430 = vunpack.c.h.b16 %v1352
    %v1431 = vunpack.c.l.b16 %v1353
    %v1432 = vunpack.c.h.b16 %v1353
    %v1433 = vunpack.c.l.b16 %v1354
    %v1434 = vunpack.c.h.b16 %v1354
    %v1435 = vunpack.c.l.b16 %v1355
    %v1436 = vunpack.c.h.b16 %v1355
    %v1437 = vunpack.c.l.b16 %v1356
    %v1438 = vunpack.c.h.b16 %v1356
    %v1439 = vunpack.c.l.b16 %v1357
    %v1440 = vunpack.c.h.b16 %v1357
    %v1441 = vunpack.c.l.b16 %v1358
    %v1442 = vunpack.c.h.b16 %v1358
    %v1443 = vunpack.c.l.b16 %v1359
    %v1444 = vunpack.c.h.b16 %v1359
    %v1445 = vunpack.c.l.b16 %v1360
    %v1446 = vunpack.c.h.b16 %v1360
    %v1447 = vunpack.c.l.b16 %v1361
    %v1448 = vunpack.c.h.b16 %v1361
    %v1449 = vunpack.c.l.b16 %v1362
    %v1450 = vunpack.c.h.b16 %v1362
    %v1451 = vunpack.c.l.b16 %v1363
    %v1452 = vunpack.c.h.b16 %v1363
    %v1453 = vunpack.c.l.b16 %v1364
    %v1454 = vunpack.c.h.b16 %v1364
    %v1455 = vunpack.c.l.b16 %v1365
    %v1456 = vunpack.c.h.b16 %v1365
    %v1457 = vunpack.c.l.b16 %v1366
    %v1458 = vunpack.c.h.b16 %v1366
    %v1459 = vunpack.c.l.b16 %v1367
    %v1460 = vunpack.c.h.b16 %v1367
    %v1461 = vunpack.c.l.b16 %v1368
    %v1462 = vunpack.c.h.b16 %v1368
    %v1463 = vunpack.c.l.b16 %v1369
    %v1464 = vunpack.c.h.b16 %v1369
    %v1465 = vunpack.c.l.b16 %v1370
    %v1466 = vunpack.c.h.b16 %v1370
    %v1467 = vpack.c.b16 %v1407, %v1403
    %v1468 = vpack.c.b16 %v1408, %v1404
    %v1469 = vpack.c.b16 %v1409, %v1405
    %v1470 = vpack.c.b16 %v1410, %v1406
    %v1471 = vpack.c.b16 %v1415, %v1411
    %v1472 = vpack.c.b16 %v1416, %v1412
    %v1473 = vpack.c.b16 %v1417, %v1413
    %v1474 = vpack.c.b16 %v1418, %v1414
    %v1475 = vpack.c.b16 %v1423, %v1419
    %v1476 = vpack.c.b16 %v1424, %v1420
    %v1477 = vpack.c.b16 %v1425, %v1421
    %v1478 = vpack.c.b16 %v1426, %v1422
    %v1479 = vpack.c.b16 %v1431, %v1427
    %v1480 = vpack.c.b16 %v1432, %v1428
    %v1481 = vpack.c.b16 %v1433, %v1429
    %v1482 = vpack.c.b16 %v1434, %v1430
    %v1483 = vpack.c.b16 %v1439, %v1435
    %v1484 = vpack.c.b16 %v1440, %v1436
    %v1485 = vpack.c.b16 %v1441, %v1437
    %v1486 = vpack.c.b16 %v1442, %v1438
    %v1487 = vpack.c.b16 %v1447, %v1443
    %v1488 = vpack.c.b16 %v1448, %v1444
    %v1489 = vpack.c.b16 %v1449, %v1445
    %v1490 = vpack.c.b16 %v1450, %v1446
    %v1491 = vpack.c.b16 %v1455, %v1451
    %v1492 = vpack.c.b16 %v1456, %v1452
    %v1493 = vpack.c.b16 %v1457, %v1453
    %v1494 = vpack.c.b16 %v1458, %v1454
    %v1495 = vpack.c.b16 %v1463, %v1459
    %v1496 = vpack.c.b16 %v1464, %v1460
    %v1497 = vpack.c.b16 %v1465, %v1461
    %v1498 = vpack.c.b16 %v1466, %v1462
    %1531 = vmatprep.subr.bf16.mxu0 %v1496
    %1532 = vmatpush1.bf16.msra.mxu0 %v1495
    %1533 = vmatprep.subr.bf16.mxu0 %v1492
    %1534 = vmatpush1.bf16.msra.mxu0 %v1491
    %1535 = vmatprep.subr.bf16.mxu0 %v1488
    %1536 = vmatpush1.bf16.msra.mxu0 %v1487
    %1537 = vmatprep.subr.bf16.mxu0 %v1484
    %1538 = vmatpush1.bf16.msra.mxu0 %v1483
    %1539 = vmatprep.subr.bf16.mxu0 %v1480
    %1540 = vmatpush1.bf16.msra.mxu0 %v1479
    %1541 = vmatprep.subr.bf16.mxu0 %v1476
    %1542 = vmatpush1.bf16.msra.mxu0 %v1475
    %1543 = vmatprep.subr.bf16.mxu0 %v1472
    %1544 = vmatpush1.bf16.msra.mxu0 %v1471
    %1545 = vmatprep.subr.bf16.mxu0 %v1468
    %1546 = vmatpush1.bf16.msra.mxu0 %v1467
    %1547 = vmatprep.subr.bf16.mxu0 0
    %1548 = vmatpush2.bf16.msra.mxu0 0
    %1549 = vmatprep.subr.bf16.mxu0 0
    %1550 = vmatpush2.bf16.msra.mxu0 0
    %1551 = vmatprep.subr.bf16.mxu0 0
    %1552 = vmatpush2.bf16.msra.mxu0 0
    %1553 = vmatprep.subr.bf16.mxu0 0
    %1554 = vmatpush2.bf16.msra.mxu0 0
    %1555 = vmatprep.subr.bf16.mxu0 0
    %1556 = vmatpush2.bf16.msra.mxu0 0
    %1557 = vmatprep.subr.bf16.mxu0 0
    %1558 = vmatpush2.bf16.msra.mxu0 0
    %1559 = vmatprep.subr.bf16.mxu0 0
    %1560 = vmatpush2.bf16.msra.mxu0 0
    %1561 = vmatprep.subr.bf16.mxu0 0
    %1562 = vmatpush2.bf16.msra.mxu0 0
    %1563 = vmatprep.mubr.bf16.mxu0 0
    %1564 = vmatmul.mubr.bf16.gmra.mxu0 %v913
    %v1565 = vpop.f32.mrf.mxu0
    %v1566 = vadd.f32 0.0, %v1565
    %v1567 = vpop.f32.mrf.mxu0
    %v1568 = vadd.f32 0.0, %v1567
    %v1569 = vpop.f32.mrf.mxu0
    %v1570 = vadd.f32 0.0, %v1569
    %v1571 = vpop.f32.mrf.mxu0
    %v1572 = vadd.f32 0.0, %v1571
    %1573 = vmatprep.mubr.bf16.mxu0 0
    %1574 = vmatmul.mubr.bf16.gmra.mxu0 %v914
    %v1575 = vpop.f32.mrf.mxu0
    %v1576 = vadd.f32 0.0, %v1575
    %v1577 = vpop.f32.mrf.mxu0
    %v1578 = vadd.f32 0.0, %v1577
    %v1579 = vpop.f32.mrf.mxu0
    %v1580 = vadd.f32 0.0, %v1579
    %v1581 = vpop.f32.mrf.mxu0
    %v1582 = vadd.f32 0.0, %v1581
    %1583 = vmatprep.mubr.bf16.mxu0 0
    %1584 = vmatmul.mubr.bf16.gmra.mxu0 %v915
    %v1585 = vpop.f32.mrf.mxu0
    %v1586 = vadd.f32 0.0, %v1585
    %v1587 = vpop.f32.mrf.mxu0
    %v1588 = vadd.f32 0.0, %v1587
    %v1589 = vpop.f32.mrf.mxu0
    %v1590 = vadd.f32 0.0, %v1589
    %v1591 = vpop.f32.mrf.mxu0
    %v1592 = vadd.f32 0.0, %v1591
    %1593 = vmatprep.mubr.bf16.mxu0 0
    %1594 = vmatmul.mubr.bf16.gmra.mxu0 %v916
    %v1595 = vpop.f32.mrf.mxu0
    %v1596 = vadd.f32 0.0, %v1595
    %v1597 = vpop.f32.mrf.mxu0
    %v1598 = vadd.f32 0.0, %v1597
    %v1599 = vpop.f32.mrf.mxu0
    %v1600 = vadd.f32 0.0, %v1599
    %v1601 = vpop.f32.mrf.mxu0
    %v1602 = vadd.f32 0.0, %v1601
    %1603 = vmatprep.mubr.bf16.mxu0 0
    %1604 = vmatmul.mubr.bf16.gmra.mxu0 %v917
    %v1605 = vpop.f32.mrf.mxu0
    %v1606 = vadd.f32 0.0, %v1605
    %v1607 = vpop.f32.mrf.mxu0
    %v1608 = vadd.f32 0.0, %v1607
    %v1609 = vpop.f32.mrf.mxu0
    %v1610 = vadd.f32 0.0, %v1609
    %v1611 = vpop.f32.mrf.mxu0
    %v1612 = vadd.f32 0.0, %v1611
    %1613 = vmatprep.mubr.bf16.mxu0 0
    %1614 = vmatmul.mubr.bf16.gmra.mxu0 %v918
    %v1615 = vpop.f32.mrf.mxu0
    %v1616 = vadd.f32 0.0, %v1615
    %v1617 = vpop.f32.mrf.mxu0
    %v1618 = vadd.f32 0.0, %v1617
    %v1619 = vpop.f32.mrf.mxu0
    %v1620 = vadd.f32 0.0, %v1619
    %v1621 = vpop.f32.mrf.mxu0
    %v1622 = vadd.f32 0.0, %v1621
    %1623 = vmatprep.mubr.bf16.mxu0 0
    %1624 = vmatmul.mubr.bf16.gmra.mxu0 %v919
    %v1625 = vpop.f32.mrf.mxu0
    %v1626 = vadd.f32 0.0, %v1625
    %v1627 = vpop.f32.mrf.mxu0
    %v1628 = vadd.f32 0.0, %v1627
    %v1629 = vpop.f32.mrf.mxu0
    %v1630 = vadd.f32 0.0, %v1629
    %v1631 = vpop.f32.mrf.mxu0
    %v1632 = vadd.f32 0.0, %v1631
    %1633 = vmatprep.mubr.bf16.mxu0 0
    %1634 = vmatmul.mubr.bf16.gmra.mxu0 %v920
    %v1635 = vpop.f32.mrf.mxu0
    %v1636 = vadd.f32 0.0, %v1635
    %v1637 = vpop.f32.mrf.mxu0
    %v1638 = vadd.f32 0.0, %v1637
    %v1639 = vpop.f32.mrf.mxu0
    %v1640 = vadd.f32 0.0, %v1639
    %v1641 = vpop.f32.mrf.mxu0
    %v1642 = vadd.f32 0.0, %v1641
    %1643 = vdwg.mxu0
    %1644 = vmatprep.subr.bf16.mxu0 %v1498
    %1645 = vmatpush1.bf16.msra.mxu0 %v1497
    %1646 = vmatprep.subr.bf16.mxu0 %v1494
    %1647 = vmatpush1.bf16.msra.mxu0 %v1493
    %1648 = vmatprep.subr.bf16.mxu0 %v1490
    %1649 = vmatpush1.bf16.msra.mxu0 %v1489
    %1650 = vmatprep.subr.bf16.mxu0 %v1486
    %1651 = vmatpush1.bf16.msra.mxu0 %v1485
    %1652 = vmatprep.subr.bf16.mxu0 %v1482
    %1653 = vmatpush1.bf16.msra.mxu0 %v1481
    %1654 = vmatprep.subr.bf16.mxu0 %v1478
    %1655 = vmatpush1.bf16.msra.mxu0 %v1477
    %1656 = vmatprep.subr.bf16.mxu0 %v1474
    %1657 = vmatpush1.bf16.msra.mxu0 %v1473
    %1658 = vmatprep.subr.bf16.mxu0 %v1470
    %1659 = vmatpush1.bf16.msra.mxu0 %v1469
    %1660 = vmatprep.subr.bf16.mxu0 0
    %1661 = vmatpush2.bf16.msra.mxu0 0
    %1662 = vmatprep.subr.bf16.mxu0 0
    %1663 = vmatpush2.bf16.msra.mxu0 0
    %1664 = vmatprep.subr.bf16.mxu0 0
    %1665 = vmatpush2.bf16.msra.mxu0 0
    %1666 = vmatprep.subr.bf16.mxu0 0
    %1667 = vmatpush2.bf16.msra.mxu0 0
    %1668 = vmatprep.subr.bf16.mxu0 0
    %1669 = vmatpush2.bf16.msra.mxu0 0
    %1670 = vmatprep.subr.bf16.mxu0 0
    %1671 = vmatpush2.bf16.msra.mxu0 0
    %1672 = vmatprep.subr.bf16.mxu0 0
    %1673 = vmatpush2.bf16.msra.mxu0 0
    %1674 = vmatprep.subr.bf16.mxu0 0
    %1675 = vmatpush2.bf16.msra.mxu0 0
    %1676 = vmatprep.mubr.bf16.mxu0 0
    %1677 = vmatmul.mubr.bf16.gmra.mxu0 %v913
    %v1678 = vpop.f32.mrf.mxu0
    %v1679 = vadd.f32 0.0, %v1678
    %v1680 = vpop.f32.mrf.mxu0
    %v1681 = vadd.f32 0.0, %v1680
    %v1682 = vpop.f32.mrf.mxu0
    %v1683 = vadd.f32 0.0, %v1682
    %v1684 = vpop.f32.mrf.mxu0
    %v1685 = vadd.f32 0.0, %v1684
    %1686 = vmatprep.mubr.bf16.mxu0 0
    %1687 = vmatmul.mubr.bf16.gmra.mxu0 %v914
    %v1688 = vpop.f32.mrf.mxu0
    %v1689 = vadd.f32 0.0, %v1688
    %v1690 = vpop.f32.mrf.mxu0
    %v1691 = vadd.f32 0.0, %v1690
    %v1692 = vpop.f32.mrf.mxu0
    %v1693 = vadd.f32 0.0, %v1692
    %v1694 = vpop.f32.mrf.mxu0
    %v1695 = vadd.f32 0.0, %v1694
    %1696 = vmatprep.mubr.bf16.mxu0 0
    %1697 = vmatmul.mubr.bf16.gmra.mxu0 %v915
    %v1698 = vpop.f32.mrf.mxu0
    %v1699 = vadd.f32 0.0, %v1698
    %v1700 = vpop.f32.mrf.mxu0
    %v1701 = vadd.f32 0.0, %v1700
    %v1702 = vpop.f32.mrf.mxu0
    %v1703 = vadd.f32 0.0, %v1702
    %v1704 = vpop.f32.mrf.mxu0
    %v1705 = vadd.f32 0.0, %v1704
    %1706 = vmatprep.mubr.bf16.mxu0 0
    %1707 = vmatmul.mubr.bf16.gmra.mxu0 %v916
    %v1708 = vpop.f32.mrf.mxu0
    %v1709 = vadd.f32 0.0, %v1708
    %v1710 = vpop.f32.mrf.mxu0
    %v1711 = vadd.f32 0.0, %v1710
    %v1712 = vpop.f32.mrf.mxu0
    %v1713 = vadd.f32 0.0, %v1712
    %v1714 = vpop.f32.mrf.mxu0
    %v1715 = vadd.f32 0.0, %v1714
    %1716 = vmatprep.mubr.bf16.mxu0 0
    %1717 = vmatmul.mubr.bf16.gmra.mxu0 %v917
    %v1718 = vpop.f32.mrf.mxu0
    %v1719 = vadd.f32 0.0, %v1718
    %v1720 = vpop.f32.mrf.mxu0
    %v1721 = vadd.f32 0.0, %v1720
    %v1722 = vpop.f32.mrf.mxu0
    %v1723 = vadd.f32 0.0, %v1722
    %v1724 = vpop.f32.mrf.mxu0
    %v1725 = vadd.f32 0.0, %v1724
    %1726 = vmatprep.mubr.bf16.mxu0 0
    %1727 = vmatmul.mubr.bf16.gmra.mxu0 %v918
    %v1728 = vpop.f32.mrf.mxu0
    %v1729 = vadd.f32 0.0, %v1728
    %v1730 = vpop.f32.mrf.mxu0
    %v1731 = vadd.f32 0.0, %v1730
    %v1732 = vpop.f32.mrf.mxu0
    %v1733 = vadd.f32 0.0, %v1732
    %v1734 = vpop.f32.mrf.mxu0
    %v1735 = vadd.f32 0.0, %v1734
    %1736 = vmatprep.mubr.bf16.mxu0 0
    %1737 = vmatmul.mubr.bf16.gmra.mxu0 %v919
    %v1738 = vpop.f32.mrf.mxu0
    %v1739 = vadd.f32 0.0, %v1738
    %v1740 = vpop.f32.mrf.mxu0
    %v1741 = vadd.f32 0.0, %v1740
    %v1742 = vpop.f32.mrf.mxu0
    %v1743 = vadd.f32 0.0, %v1742
    %v1744 = vpop.f32.mrf.mxu0
    %v1745 = vadd.f32 0.0, %v1744
    %1746 = vmatprep.mubr.bf16.mxu0 0
    %1747 = vmatmul.mubr.bf16.gmra.mxu0 %v920
    %v1748 = vpop.f32.mrf.mxu0
    %v1749 = vadd.f32 0.0, %v1748
    %v1750 = vpop.f32.mrf.mxu0
    %v1751 = vadd.f32 0.0, %v1750
    %v1752 = vpop.f32.mrf.mxu0
    %v1753 = vadd.f32 0.0, %v1752
    %v1754 = vpop.f32.mrf.mxu0
    %v1755 = vadd.f32 0.0, %v1754
    %1756 = vdwg.mxu0
    %v1757 = vxor.u32 %v1566, 2147483648
    %v1758 = vxor.u32 %v1568, 2147483648
    %v1759 = vxor.u32 %v1679, 2147483648
    %v1760 = vxor.u32 %v1681, 2147483648
    %v1761 = vxor.u32 %v1570, 2147483648
    %v1762 = vxor.u32 %v1572, 2147483648
    %v1763 = vxor.u32 %v1683, 2147483648
    %v1764 = vxor.u32 %v1685, 2147483648
    %v1765 = vxor.u32 %v1576, 2147483648
    %v1766 = vxor.u32 %v1578, 2147483648
    %v1767 = vxor.u32 %v1689, 2147483648
    %v1768 = vxor.u32 %v1691, 2147483648
    %v1769 = vxor.u32 %v1580, 2147483648
    %v1770 = vxor.u32 %v1582, 2147483648
    %v1771 = vxor.u32 %v1693, 2147483648
    %v1772 = vxor.u32 %v1695, 2147483648
    %v1773 = vxor.u32 %v1586, 2147483648
    %v1774 = vxor.u32 %v1588, 2147483648
    %v1775 = vxor.u32 %v1699, 2147483648
    %v1776 = vxor.u32 %v1701, 2147483648
    %v1777 = vxor.u32 %v1590, 2147483648
    %v1778 = vxor.u32 %v1592, 2147483648
    %v1779 = vxor.u32 %v1703, 2147483648
    %v1780 = vxor.u32 %v1705, 2147483648
    %v1781 = vxor.u32 %v1596, 2147483648
    %v1782 = vxor.u32 %v1598, 2147483648
    %v1783 = vxor.u32 %v1709, 2147483648
    %v1784 = vxor.u32 %v1711, 2147483648
    %v1785 = vxor.u32 %v1600, 2147483648
    %v1786 = vxor.u32 %v1602, 2147483648
    %v1787 = vxor.u32 %v1713, 2147483648
    %v1788 = vxor.u32 %v1715, 2147483648
    %v1789 = vxor.u32 %v1606, 2147483648
    %v1790 = vxor.u32 %v1608, 2147483648
    %v1791 = vxor.u32 %v1719, 2147483648
    %v1792 = vxor.u32 %v1721, 2147483648
    %v1793 = vxor.u32 %v1610, 2147483648
    %v1794 = vxor.u32 %v1612, 2147483648
    %v1795 = vxor.u32 %v1723, 2147483648
    %v1796 = vxor.u32 %v1725, 2147483648
    %v1797 = vxor.u32 %v1616, 2147483648
    %v1798 = vxor.u32 %v1618, 2147483648
    %v1799 = vxor.u32 %v1729, 2147483648
    %v1800 = vxor.u32 %v1731, 2147483648
    %v1801 = vxor.u32 %v1620, 2147483648
    %v1802 = vxor.u32 %v1622, 2147483648
    %v1803 = vxor.u32 %v1733, 2147483648
    %v1804 = vxor.u32 %v1735, 2147483648
    %v1805 = vxor.u32 %v1626, 2147483648
    %v1806 = vxor.u32 %v1628, 2147483648
    %v1807 = vxor.u32 %v1739, 2147483648
    %v1808 = vxor.u32 %v1741, 2147483648
    %v1809 = vxor.u32 %v1630, 2147483648
    %v1810 = vxor.u32 %v1632, 2147483648
    %v1811 = vxor.u32 %v1743, 2147483648
    %v1812 = vxor.u32 %v1745, 2147483648
    %v1813 = vxor.u32 %v1636, 2147483648
    %v1814 = vxor.u32 %v1638, 2147483648
    %v1815 = vxor.u32 %v1749, 2147483648
    %v1816 = vxor.u32 %v1751, 2147483648
    %v1817 = vxor.u32 %v1640, 2147483648
    %v1818 = vxor.u32 %v1642, 2147483648
    %v1819 = vxor.u32 %v1753, 2147483648
    %v1820 = vxor.u32 %v1755, 2147483648
    %v1821 = vmul.f32 %v1757, 1.442695
    %v1822 = vpow.pop %v1821
    %v1823 = vmul.f32 %v1758, 1.442695
    %v1824 = vpow.pop %v1823
    %v1825 = vmul.f32 %v1759, 1.442695
    %v1826 = vpow.pop %v1825
    %v1827 = vmul.f32 %v1760, 1.442695
    %v1828 = vpow.pop %v1827
    %v1829 = vmul.f32 %v1761, 1.442695
    %v1830 = vpow.pop %v1829
    %v1831 = vmul.f32 %v1762, 1.442695
    %v1832 = vpow.pop %v1831
    %v1833 = vmul.f32 %v1763, 1.442695
    %v1834 = vpow.pop %v1833
    %v1835 = vmul.f32 %v1764, 1.442695
    %v1836 = vpow.pop %v1835
    %v1837 = vmul.f32 %v1765, 1.442695
    %v1838 = vpow.pop %v1837
    %v1839 = vmul.f32 %v1766, 1.442695
    %v1840 = vpow.pop %v1839
    %v1841 = vmul.f32 %v1767, 1.442695
    %v1842 = vpow.pop %v1841
    %v1843 = vmul.f32 %v1768, 1.442695
    %v1844 = vpow.pop %v1843
    %v1845 = vmul.f32 %v1769, 1.442695
    %v1846 = vpow.pop %v1845
    %v1847 = vmul.f32 %v1770, 1.442695
    %v1848 = vpow.pop %v1847
    %v1849 = vmul.f32 %v1771, 1.442695
    %v1850 = vpow.pop %v1849
    %v1851 = vmul.f32 %v1772, 1.442695
    %v1852 = vpow.pop %v1851
    %v1853 = vmul.f32 %v1773, 1.442695
    %v1854 = vpow.pop %v1853
    %v1855 = vmul.f32 %v1774, 1.442695
    %v1856 = vpow.pop %v1855
    %v1857 = vmul.f32 %v1775, 1.442695
    %v1858 = vpow.pop %v1857
    %v1859 = vmul.f32 %v1776, 1.442695
    %v1860 = vpow.pop %v1859
    %v1861 = vmul.f32 %v1777, 1.442695
    %v1862 = vpow.pop %v1861
    %v1863 = vmul.f32 %v1778, 1.442695
    %v1864 = vpow.pop %v1863
    %v1865 = vmul.f32 %v1779, 1.442695
    %v1866 = vpow.pop %v1865
    %v1867 = vmul.f32 %v1780, 1.442695
    %v1868 = vpow.pop %v1867
    %v1869 = vmul.f32 %v1781, 1.442695
    %v1870 = vpow.pop %v1869
    %v1871 = vmul.f32 %v1782, 1.442695
    %v1872 = vpow.pop %v1871
    %v1873 = vmul.f32 %v1783, 1.442695
    %v1874 = vpow.pop %v1873
    %v1875 = vmul.f32 %v1784, 1.442695
    %v1876 = vpow.pop %v1875
    %v1877 = vmul.f32 %v1785, 1.442695
    %v1878 = vpow.pop %v1877
    %v1879 = vmul.f32 %v1786, 1.442695
    %v1880 = vpow.pop %v1879
    %v1881 = vmul.f32 %v1787, 1.442695
    %v1882 = vpow.pop %v1881
    %v1883 = vmul.f32 %v1788, 1.442695
    %v1884 = vpow.pop %v1883
    %v1885 = vmul.f32 %v1789, 1.442695
    %v1886 = vpow.pop %v1885
    %v1887 = vmul.f32 %v1790, 1.442695
    %v1888 = vpow.pop %v1887
    %v1889 = vmul.f32 %v1791, 1.442695
    %v1890 = vpow.pop %v1889
    %v1891 = vmul.f32 %v1792, 1.442695
    %v1892 = vpow.pop %v1891
    %v1893 = vmul.f32 %v1793, 1.442695
    %v1894 = vpow.pop %v1893
    %v1895 = vmul.f32 %v1794, 1.442695
    %v1896 = vpow.pop %v1895
    %v1897 = vmul.f32 %v1795, 1.442695
    %v1898 = vpow.pop %v1897
    %v1899 = vmul.f32 %v1796, 1.442695
    %v1900 = vpow.pop %v1899
    %v1901 = vmul.f32 %v1797, 1.442695
    %v1902 = vpow.pop %v1901
    %v1903 = vmul.f32 %v1798, 1.442695
    %v1904 = vpow.pop %v1903
    %v1905 = vmul.f32 %v1799, 1.442695
    %v1906 = vpow.pop %v1905
    %v1907 = vmul.f32 %v1800, 1.442695
    %v1908 = vpow.pop %v1907
    %v1909 = vmul.f32 %v1801, 1.442695
    %v1910 = vpow.pop %v1909
    %v1911 = vmul.f32 %v1802, 1.442695
    %v1912 = vpow.pop %v1911
    %v1913 = vmul.f32 %v1803, 1.442695
    %v1914 = vpow.pop %v1913
    %v1915 = vmul.f32 %v1804, 1.442695
    %v1916 = vpow.pop %v1915
    %v1917 = vmul.f32 %v1805, 1.442695
    %v1918 = vpow.pop %v1917
    %v1919 = vmul.f32 %v1806, 1.442695
    %v1920 = vpow.pop %v1919
    %v1921 = vmul.f32 %v1807, 1.442695
    %v1922 = vpow.pop %v1921
    %v1923 = vmul.f32 %v1808, 1.442695
    %v1924 = vpow.pop %v1923
    %v1925 = vmul.f32 %v1809, 1.442695
    %v1926 = vpow.pop %v1925
    %v1927 = vmul.f32 %v1810, 1.442695
    %v1928 = vpow.pop %v1927
    %v1929 = vmul.f32 %v1811, 1.442695
    %v1930 = vpow.pop %v1929
    %v1931 = vmul.f32 %v1812, 1.442695
    %v1932 = vpow.pop %v1931
    %v1933 = vmul.f32 %v1813, 1.442695
    %v1934 = vpow.pop %v1933
    %v1935 = vmul.f32 %v1814, 1.442695
    %v1936 = vpow.pop %v1935
    %v1937 = vmul.f32 %v1815, 1.442695
    %v1938 = vpow.pop %v1937
    %v1939 = vmul.f32 %v1816, 1.442695
    %v1940 = vpow.pop %v1939
    %v1941 = vmul.f32 %v1817, 1.442695
    %v1942 = vpow.pop %v1941
    %v1943 = vmul.f32 %v1818, 1.442695
    %v1944 = vpow.pop %v1943
    %v1945 = vmul.f32 %v1819, 1.442695
    %v1946 = vpow.pop %v1945
    %v1947 = vmul.f32 %v1820, 1.442695
    %v1948 = vpow.pop %v1947
    %v1949 = vadd.f32 %v1822, 1.0
    %v1950 = vadd.f32 %v1824, 1.0
    %v1951 = vadd.f32 %v1826, 1.0
    %v1952 = vadd.f32 %v1828, 1.0
    %v1953 = vadd.f32 %v1830, 1.0
    %v1954 = vadd.f32 %v1832, 1.0
    %v1955 = vadd.f32 %v1834, 1.0
    %v1956 = vadd.f32 %v1836, 1.0
    %v1957 = vadd.f32 %v1838, 1.0
    %v1958 = vadd.f32 %v1840, 1.0
    %v1959 = vadd.f32 %v1842, 1.0
    %v1960 = vadd.f32 %v1844, 1.0
    %v1961 = vadd.f32 %v1846, 1.0
    %v1962 = vadd.f32 %v1848, 1.0
    %v1963 = vadd.f32 %v1850, 1.0
    %v1964 = vadd.f32 %v1852, 1.0
    %v1965 = vadd.f32 %v1854, 1.0
    %v1966 = vadd.f32 %v1856, 1.0
    %v1967 = vadd.f32 %v1858, 1.0
    %v1968 = vadd.f32 %v1860, 1.0
    %v1969 = vadd.f32 %v1862, 1.0
    %v1970 = vadd.f32 %v1864, 1.0
    %v1971 = vadd.f32 %v1866, 1.0
    %v1972 = vadd.f32 %v1868, 1.0
    %v1973 = vadd.f32 %v1870, 1.0
    %v1974 = vadd.f32 %v1872, 1.0
    %v1975 = vadd.f32 %v1874, 1.0
    %v1976 = vadd.f32 %v1876, 1.0
    %v1977 = vadd.f32 %v1878, 1.0
    %v1978 = vadd.f32 %v1880, 1.0
    %v1979 = vadd.f32 %v1882, 1.0
    %v1980 = vadd.f32 %v1884, 1.0
    %v1981 = vadd.f32 %v1886, 1.0
    %v1982 = vadd.f32 %v1888, 1.0
    %v1983 = vadd.f32 %v1890, 1.0
    %v1984 = vadd.f32 %v1892, 1.0
    %v1985 = vadd.f32 %v1894, 1.0
    %v1986 = vadd.f32 %v1896, 1.0
    %v1987 = vadd.f32 %v1898, 1.0
    %v1988 = vadd.f32 %v1900, 1.0
    %v1989 = vadd.f32 %v1902, 1.0
    %v1990 = vadd.f32 %v1904, 1.0
    %v1991 = vadd.f32 %v1906, 1.0
    %v1992 = vadd.f32 %v1908, 1.0
    %v1993 = vadd.f32 %v1910, 1.0
    %v1994 = vadd.f32 %v1912, 1.0
    %v1995 = vadd.f32 %v1914, 1.0
    %v1996 = vadd.f32 %v1916, 1.0
    %v1997 = vadd.f32 %v1918, 1.0
    %v1998 = vadd.f32 %v1920, 1.0
    %v1999 = vadd.f32 %v1922, 1.0
    %v2000 = vadd.f32 %v1924, 1.0
    %v2001 = vadd.f32 %v1926, 1.0
    %v2002 = vadd.f32 %v1928, 1.0
    %v2003 = vadd.f32 %v1930, 1.0
    %v2004 = vadd.f32 %v1932, 1.0
    %v2005 = vadd.f32 %v1934, 1.0
    %v2006 = vadd.f32 %v1936, 1.0
    %v2007 = vadd.f32 %v1938, 1.0
    %v2008 = vadd.f32 %v1940, 1.0
    %v2009 = vadd.f32 %v1942, 1.0
    %v2010 = vadd.f32 %v1944, 1.0
    %v2011 = vadd.f32 %v1946, 1.0
    %v2012 = vadd.f32 %v1948, 1.0
    %v2013 = vrcp.pop %v1949
    %v2014 = vmul.f32 1.0, %v2013
    %v2015 = vrcp.pop %v1950
    %v2016 = vmul.f32 1.0, %v2015
    %v2017 = vrcp.pop %v1951
    %v2018 = vmul.f32 1.0, %v2017
    %v2019 = vrcp.pop %v1952
    %v2020 = vmul.f32 1.0, %v2019
    %v2021 = vrcp.pop %v1953
    %v2022 = vmul.f32 1.0, %v2021
    %v2023 = vrcp.pop %v1954
    %v2024 = vmul.f32 1.0, %v2023
    %v2025 = vrcp.pop %v1955
    %v2026 = vmul.f32 1.0, %v2025
    %v2027 = vrcp.pop %v1956
    %v2028 = vmul.f32 1.0, %v2027
    %v2029 = vrcp.pop %v1957
    %v2030 = vmul.f32 1.0, %v2029
    %v2031 = vrcp.pop %v1958
    %v2032 = vmul.f32 1.0, %v2031
    %v2033 = vrcp.pop %v1959
    %v2034 = vmul.f32 1.0, %v2033
    %v2035 = vrcp.pop %v1960
    %v2036 = vmul.f32 1.0, %v2035
    %v2037 = vrcp.pop %v1961
    %v2038 = vmul.f32 1.0, %v2037
    %v2039 = vrcp.pop %v1962
    %v2040 = vmul.f32 1.0, %v2039
    %v2041 = vrcp.pop %v1963
    %v2042 = vmul.f32 1.0, %v2041
    %v2043 = vrcp.pop %v1964
    %v2044 = vmul.f32 1.0, %v2043
    %v2045 = vrcp.pop %v1965
    %v2046 = vmul.f32 1.0, %v2045
    %v2047 = vrcp.pop %v1966
    %v2048 = vmul.f32 1.0, %v2047
    %v2049 = vrcp.pop %v1967
    %v2050 = vmul.f32 1.0, %v2049
    %v2051 = vrcp.pop %v1968
    %v2052 = vmul.f32 1.0, %v2051
    %v2053 = vrcp.pop %v1969
    %v2054 = vmul.f32 1.0, %v2053
    %v2055 = vrcp.pop %v1970
    %v2056 = vmul.f32 1.0, %v2055
    %v2057 = vrcp.pop %v1971
    %v2058 = vmul.f32 1.0, %v2057
    %v2059 = vrcp.pop %v1972
    %v2060 = vmul.f32 1.0, %v2059
    %v2061 = vrcp.pop %v1973
    %v2062 = vmul.f32 1.0, %v2061
    %v2063 = vrcp.pop %v1974
    %v2064 = vmul.f32 1.0, %v2063
    %v2065 = vrcp.pop %v1975
    %v2066 = vmul.f32 1.0, %v2065
    %v2067 = vrcp.pop %v1976
    %v2068 = vmul.f32 1.0, %v2067
    %v2069 = vrcp.pop %v1977
    %v2070 = vmul.f32 1.0, %v2069
    %v2071 = vrcp.pop %v1978
    %v2072 = vmul.f32 1.0, %v2071
    %v2073 = vrcp.pop %v1979
    %v2074 = vmul.f32 1.0, %v2073
    %v2075 = vrcp.pop %v1980
    %v2076 = vmul.f32 1.0, %v2075
    %v2077 = vrcp.pop %v1981
    %v2078 = vmul.f32 1.0, %v2077
    %v2079 = vrcp.pop %v1982
    %v2080 = vmul.f32 1.0, %v2079
    %v2081 = vrcp.pop %v1983
    %v2082 = vmul.f32 1.0, %v2081
    %v2083 = vrcp.pop %v1984
    %v2084 = vmul.f32 1.0, %v2083
    %v2085 = vrcp.pop %v1985
    %v2086 = vmul.f32 1.0, %v2085
    %v2087 = vrcp.pop %v1986
    %v2088 = vmul.f32 1.0, %v2087
    %v2089 = vrcp.pop %v1987
    %v2090 = vmul.f32 1.0, %v2089
    %v2091 = vrcp.pop %v1988
    %v2092 = vmul.f32 1.0, %v2091
    %v2093 = vrcp.pop %v1989
    %v2094 = vmul.f32 1.0, %v2093
    %v2095 = vrcp.pop %v1990
    %v2096 = vmul.f32 1.0, %v2095
    %v2097 = vrcp.pop %v1991
    %v2098 = vmul.f32 1.0, %v2097
    %v2099 = vrcp.pop %v1992
    %v2100 = vmul.f32 1.0, %v2099
    %v2101 = vrcp.pop %v1993
    %v2102 = vmul.f32 1.0, %v2101
    %v2103 = vrcp.pop %v1994
    %v2104 = vmul.f32 1.0, %v2103
    %v2105 = vrcp.pop %v1995
    %v2106 = vmul.f32 1.0, %v2105
    %v2107 = vrcp.pop %v1996
    %v2108 = vmul.f32 1.0, %v2107
    %v2109 = vrcp.pop %v1997
    %v2110 = vmul.f32 1.0, %v2109
    %v2111 = vrcp.pop %v1998
    %v2112 = vmul.f32 1.0, %v2111
    %v2113 = vrcp.pop %v1999
    %v2114 = vmul.f32 1.0, %v2113
    %v2115 = vrcp.pop %v2000
    %v2116 = vmul.f32 1.0, %v2115
    %v2117 = vrcp.pop %v2001
    %v2118 = vmul.f32 1.0, %v2117
    %v2119 = vrcp.pop %v2002
    %v2120 = vmul.f32 1.0, %v2119
    %v2121 = vrcp.pop %v2003
    %v2122 = vmul.f32 1.0, %v2121
    %v2123 = vrcp.pop %v2004
    %v2124 = vmul.f32 1.0, %v2123
    %v2125 = vrcp.pop %v2005
    %v2126 = vmul.f32 1.0, %v2125
    %v2127 = vrcp.pop %v2006
    %v2128 = vmul.f32 1.0, %v2127
    %v2129 = vrcp.pop %v2007
    %v2130 = vmul.f32 1.0, %v2129
    %v2131 = vrcp.pop %v2008
    %v2132 = vmul.f32 1.0, %v2131
    %v2133 = vrcp.pop %v2009
    %v2134 = vmul.f32 1.0, %v2133
    %v2135 = vrcp.pop %v2010
    %v2136 = vmul.f32 1.0, %v2135
    %v2137 = vrcp.pop %v2011
    %v2138 = vmul.f32 1.0, %v2137
    %v2139 = vrcp.pop %v2012
    %v2140 = vmul.f32 1.0, %v2139
    %v2141 = vmul.f32 %v1566, %v2014
    %v2142 = vmul.f32 %v1568, %v2016
    %v2143 = vmul.f32 %v1679, %v2018
    %v2144 = vmul.f32 %v1681, %v2020
    %v2145 = vmul.f32 %v1570, %v2022
    %v2146 = vmul.f32 %v1572, %v2024
    %v2147 = vmul.f32 %v1683, %v2026
    %v2148 = vmul.f32 %v1685, %v2028
    %v2149 = vmul.f32 %v1576, %v2030
    %v2150 = vmul.f32 %v1578, %v2032
    %v2151 = vmul.f32 %v1689, %v2034
    %v2152 = vmul.f32 %v1691, %v2036
    %v2153 = vmul.f32 %v1580, %v2038
    %v2154 = vmul.f32 %v1582, %v2040
    %v2155 = vmul.f32 %v1693, %v2042
    %v2156 = vmul.f32 %v1695, %v2044
    %v2157 = vmul.f32 %v1586, %v2046
    %v2158 = vmul.f32 %v1588, %v2048
    %v2159 = vmul.f32 %v1699, %v2050
    %v2160 = vmul.f32 %v1701, %v2052
    %v2161 = vmul.f32 %v1590, %v2054
    %v2162 = vmul.f32 %v1592, %v2056
    %v2163 = vmul.f32 %v1703, %v2058
    %v2164 = vmul.f32 %v1705, %v2060
    %v2165 = vmul.f32 %v1596, %v2062
    %v2166 = vmul.f32 %v1598, %v2064
    %v2167 = vmul.f32 %v1709, %v2066
    %v2168 = vmul.f32 %v1711, %v2068
    %v2169 = vmul.f32 %v1600, %v2070
    %v2170 = vmul.f32 %v1602, %v2072
    %v2171 = vmul.f32 %v1713, %v2074
    %v2172 = vmul.f32 %v1715, %v2076
    %v2173 = vmul.f32 %v1606, %v2078
    %v2174 = vmul.f32 %v1608, %v2080
    %v2175 = vmul.f32 %v1719, %v2082
    %v2176 = vmul.f32 %v1721, %v2084
    %v2177 = vmul.f32 %v1610, %v2086
    %v2178 = vmul.f32 %v1612, %v2088
    %v2179 = vmul.f32 %v1723, %v2090
    %v2180 = vmul.f32 %v1725, %v2092
    %v2181 = vmul.f32 %v1616, %v2094
    %v2182 = vmul.f32 %v1618, %v2096
    %v2183 = vmul.f32 %v1729, %v2098
    %v2184 = vmul.f32 %v1731, %v2100
    %v2185 = vmul.f32 %v1620, %v2102
    %v2186 = vmul.f32 %v1622, %v2104
    %v2187 = vmul.f32 %v1733, %v2106
    %v2188 = vmul.f32 %v1735, %v2108
    %v2189 = vmul.f32 %v1626, %v2110
    %v2190 = vmul.f32 %v1628, %v2112
    %v2191 = vmul.f32 %v1739, %v2114
    %v2192 = vmul.f32 %v1741, %v2116
    %v2193 = vmul.f32 %v1630, %v2118
    %v2194 = vmul.f32 %v1632, %v2120
    %v2195 = vmul.f32 %v1743, %v2122
    %v2196 = vmul.f32 %v1745, %v2124
    %v2197 = vmul.f32 %v1636, %v2126
    %v2198 = vmul.f32 %v1638, %v2128
    %v2199 = vmul.f32 %v1749, %v2130
    %v2200 = vmul.f32 %v1751, %v2132
    %v2201 = vmul.f32 %v1640, %v2134
    %v2202 = vmul.f32 %v1642, %v2136
    %v2203 = vmul.f32 %v1753, %v2138
    %v2204 = vmul.f32 %v1755, %v2140
    %v2205 = vmul.f32 %v2141, %v1148
    %v2206 = vmul.f32 %v2142, %v1150
    %v2207 = vmul.f32 %v2143, %v1261
    %v2208 = vmul.f32 %v2144, %v1263
    %v2209 = vmul.f32 %v2145, %v1152
    %v2210 = vmul.f32 %v2146, %v1154
    %v2211 = vmul.f32 %v2147, %v1265
    %v2212 = vmul.f32 %v2148, %v1267
    %v2213 = vmul.f32 %v2149, %v1158
    %v2214 = vmul.f32 %v2150, %v1160
    %v2215 = vmul.f32 %v2151, %v1271
    %v2216 = vmul.f32 %v2152, %v1273
    %v2217 = vmul.f32 %v2153, %v1162
    %v2218 = vmul.f32 %v2154, %v1164
    %v2219 = vmul.f32 %v2155, %v1275
    %v2220 = vmul.f32 %v2156, %v1277
    %v2221 = vmul.f32 %v2157, %v1168
    %v2222 = vmul.f32 %v2158, %v1170
    %v2223 = vmul.f32 %v2159, %v1281
    %v2224 = vmul.f32 %v2160, %v1283
    %v2225 = vmul.f32 %v2161, %v1172
    %v2226 = vmul.f32 %v2162, %v1174
    %v2227 = vmul.f32 %v2163, %v1285
    %v2228 = vmul.f32 %v2164, %v1287
    %v2229 = vmul.f32 %v2165, %v1178
    %v2230 = vmul.f32 %v2166, %v1180
    %v2231 = vmul.f32 %v2167, %v1291
    %v2232 = vmul.f32 %v2168, %v1293
    %v2233 = vmul.f32 %v2169, %v1182
    %v2234 = vmul.f32 %v2170, %v1184
    %v2235 = vmul.f32 %v2171, %v1295
    %v2236 = vmul.f32 %v2172, %v1297
    %v2237 = vmul.f32 %v2173, %v1188
    %v2238 = vmul.f32 %v2174, %v1190
    %v2239 = vmul.f32 %v2175, %v1301
    %v2240 = vmul.f32 %v2176, %v1303
    %v2241 = vmul.f32 %v2177, %v1192
    %v2242 = vmul.f32 %v2178, %v1194
    %v2243 = vmul.f32 %v2179, %v1305
    %v2244 = vmul.f32 %v2180, %v1307
    %v2245 = vmul.f32 %v2181, %v1198
    %v2246 = vmul.f32 %v2182, %v1200
    %v2247 = vmul.f32 %v2183, %v1311
    %v2248 = vmul.f32 %v2184, %v1313
    %v2249 = vmul.f32 %v2185, %v1202
    %v2250 = vmul.f32 %v2186, %v1204
    %v2251 = vmul.f32 %v2187, %v1315
    %v2252 = vmul.f32 %v2188, %v1317
    %v2253 = vmul.f32 %v2189, %v1208
    %v2254 = vmul.f32 %v2190, %v1210
    %v2255 = vmul.f32 %v2191, %v1321
    %v2256 = vmul.f32 %v2192, %v1323
    %v2257 = vmul.f32 %v2193, %v1212
    %v2258 = vmul.f32 %v2194, %v1214
    %v2259 = vmul.f32 %v2195, %v1325
    %v2260 = vmul.f32 %v2196, %v1327
    %v2261 = vmul.f32 %v2197, %v1218
    %v2262 = vmul.f32 %v2198, %v1220
    %v2263 = vmul.f32 %v2199, %v1331
    %v2264 = vmul.f32 %v2200, %v1333
    %v2265 = vmul.f32 %v2201, %v1222
    %v2266 = vmul.f32 %v2202, %v1224
    %v2267 = vmul.f32 %v2203, %v1335
    %v2268 = vmul.f32 %v2204, %v1337
    %v2269 = vpack.c.bf16 %v2209, %v2205
    %v2270 = vpack.c.bf16 %v2210, %v2206
    %v2271 = vpack.c.bf16 %v2211, %v2207
    %v2272 = vpack.c.bf16 %v2212, %v2208
    %v2273 = vpack.c.bf16 %v2217, %v2213
    %v2274 = vpack.c.bf16 %v2218, %v2214
    %v2275 = vpack.c.bf16 %v2219, %v2215
    %v2276 = vpack.c.bf16 %v2220, %v2216
    %v2277 = vpack.c.bf16 %v2225, %v2221
    %v2278 = vpack.c.bf16 %v2226, %v2222
    %v2279 = vpack.c.bf16 %v2227, %v2223
    %v2280 = vpack.c.bf16 %v2228, %v2224
    %v2281 = vpack.c.bf16 %v2233, %v2229
    %v2282 = vpack.c.bf16 %v2234, %v2230
    %v2283 = vpack.c.bf16 %v2235, %v2231
    %v2284 = vpack.c.bf16 %v2236, %v2232
    %v2285 = vpack.c.bf16 %v2241, %v2237
    %v2286 = vpack.c.bf16 %v2242, %v2238
    %v2287 = vpack.c.bf16 %v2243, %v2239
    %v2288 = vpack.c.bf16 %v2244, %v2240
    %v2289 = vpack.c.bf16 %v2249, %v2245
    %v2290 = vpack.c.bf16 %v2250, %v2246
    %v2291 = vpack.c.bf16 %v2251, %v2247
    %v2292 = vpack.c.bf16 %v2252, %v2248
    %v2293 = vpack.c.bf16 %v2257, %v2253
    %v2294 = vpack.c.bf16 %v2258, %v2254
    %v2295 = vpack.c.bf16 %v2259, %v2255
    %v2296 = vpack.c.bf16 %v2260, %v2256
    %v2297 = vpack.c.bf16 %v2265, %v2261
    %v2298 = vpack.c.bf16 %v2266, %v2262
    %v2299 = vpack.c.bf16 %v2267, %v2263
    %v2300 = vpack.c.bf16 %v2268, %v2264
    %v2301 = vld [vmem:[%s8] sm:$0xf]
    %v2302 = vld [vmem:[%s8 + $0x4] sm:$0xf]
    %v2303 = vld [vmem:[%s8 + $0x8] sm:$0xf]
    %v2304 = vld [vmem:[%s8 + $0xc] sm:$0xf]
    %v2305 = vld [vmem:[%s8 + $0x10] sm:$0xf]
    %v2306 = vld [vmem:[%s8 + $0x14] sm:$0xf]
    %v2307 = vld [vmem:[%s8 + $0x18] sm:$0xf]
    %v2308 = vld [vmem:[%s8 + $0x1c] sm:$0xf]
    %v2309 = vld [vmem:[%s8 + $0x20] sm:$0xf]
    %v2310 = vld [vmem:[%s8 + $0x24] sm:$0xf]
    %v2311 = vld [vmem:[%s8 + $0x28] sm:$0xf]
    %v2312 = vld [vmem:[%s8 + $0x2c] sm:$0xf]
    %v2313 = vld [vmem:[%s8 + $0x30] sm:$0xf]
    %v2314 = vld [vmem:[%s8 + $0x34] sm:$0xf]
    %v2315 = vld [vmem:[%s8 + $0x38] sm:$0xf]
    %v2316 = vld [vmem:[%s8 + $0x3c] sm:$0xf]
    %v2317 = vld [vmem:[%s8 + $0x40] sm:$0xf]
    %v2318 = vld [vmem:[%s8 + $0x44] sm:$0xf]
    %v2319 = vld [vmem:[%s8 + $0x48] sm:$0xf]
    %v2320 = vld [vmem:[%s8 + $0x4c] sm:$0xf]
    %v2321 = vld [vmem:[%s8 + $0x50] sm:$0xf]
    %v2322 = vld [vmem:[%s8 + $0x54] sm:$0xf]
    %v2323 = vld [vmem:[%s8 + $0x58] sm:$0xf]
    %v2324 = vld [vmem:[%s8 + $0x5c] sm:$0xf]
    %v2325 = vld [vmem:[%s8 + $0x60] sm:$0xf]
    %v2326 = vld [vmem:[%s8 + $0x64] sm:$0xf]
    %v2327 = vld [vmem:[%s8 + $0x68] sm:$0xf]
    %v2328 = vld [vmem:[%s8 + $0x6c] sm:$0xf]
    %v2329 = vld [vmem:[%s8 + $0x70] sm:$0xf]
    %v2330 = vld [vmem:[%s8 + $0x74] sm:$0xf]
    %v2331 = vld [vmem:[%s8 + $0x78] sm:$0xf]
    %v2332 = vld [vmem:[%s8 + $0x7c] sm:$0xf]
    %v2333 = vld [vmem:[%s8 + $0x80] sm:$0xf]
    %v2334 = vld [vmem:[%s8 + $0x84] sm:$0xf]
    %v2335 = vld [vmem:[%s8 + $0x88] sm:$0xf]
    %v2336 = vld [vmem:[%s8 + $0x8c] sm:$0xf]
    %v2337 = vld [vmem:[%s8 + $0x90] sm:$0xf]
    %v2338 = vld [vmem:[%s8 + $0x94] sm:$0xf]
    %v2339 = vld [vmem:[%s8 + $0x98] sm:$0xf]
    %v2340 = vld [vmem:[%s8 + $0x9c] sm:$0xf]
    %v2341 = vld [vmem:[%s8 + $0xa0] sm:$0xf]
    %v2342 = vld [vmem:[%s8 + $0xa4] sm:$0xf]
    %v2343 = vld [vmem:[%s8 + $0xa8] sm:$0xf]
    %v2344 = vld [vmem:[%s8 + $0xac] sm:$0xf]
    %v2345 = vld [vmem:[%s8 + $0xb0] sm:$0xf]
    %v2346 = vld [vmem:[%s8 + $0xb4] sm:$0xf]
    %v2347 = vld [vmem:[%s8 + $0xb8] sm:$0xf]
    %v2348 = vld [vmem:[%s8 + $0xbc] sm:$0xf]
    %v2349 = vld [vmem:[%s8 + $0xc0] sm:$0xf]
    %v2350 = vld [vmem:[%s8 + $0xc4] sm:$0xf]
    %v2351 = vld [vmem:[%s8 + $0xc8] sm:$0xf]
    %v2352 = vld [vmem:[%s8 + $0xcc] sm:$0xf]
    %v2353 = vld [vmem:[%s8 + $0xd0] sm:$0xf]
    %v2354 = vld [vmem:[%s8 + $0xd4] sm:$0xf]
    %v2355 = vld [vmem:[%s8 + $0xd8] sm:$0xf]
    %v2356 = vld [vmem:[%s8 + $0xdc] sm:$0xf]
    %v2357 = vld [vmem:[%s8 + $0xe0] sm:$0xf]
    %v2358 = vld [vmem:[%s8 + $0xe4] sm:$0xf]
    %v2359 = vld [vmem:[%s8 + $0xe8] sm:$0xf]
    %v2360 = vld [vmem:[%s8 + $0xec] sm:$0xf]
    %v2361 = vld [vmem:[%s8 + $0xf0] sm:$0xf]
    %v2362 = vld [vmem:[%s8 + $0xf4] sm:$0xf]
    %v2363 = vld [vmem:[%s8 + $0xf8] sm:$0xf]
    %v2364 = vld [vmem:[%s8 + $0xfc] sm:$0xf]
    %v2429 = vunpack.c.l.b16 %v2301
    %v2430 = vunpack.c.l.b16 %v2302
    %v2431 = vunpack.c.l.b16 %v2303
    %v2432 = vunpack.c.l.b16 %v2304
    %v2433 = vunpack.c.l.b16 %v2305
    %v2434 = vunpack.c.l.b16 %v2306
    %v2435 = vunpack.c.l.b16 %v2307
    %v2436 = vunpack.c.l.b16 %v2308
    %v2437 = vunpack.c.l.b16 %v2309
    %v2438 = vunpack.c.l.b16 %v2310
    %v2439 = vunpack.c.l.b16 %v2311
    %v2440 = vunpack.c.l.b16 %v2312
    %v2441 = vunpack.c.l.b16 %v2313
    %v2442 = vunpack.c.l.b16 %v2314
    %v2443 = vunpack.c.l.b16 %v2315
    %v2444 = vunpack.c.l.b16 %v2316
    %v2445 = vunpack.c.l.b16 %v2317
    %v2446 = vunpack.c.l.b16 %v2318
    %v2447 = vunpack.c.l.b16 %v2319
    %v2448 = vunpack.c.l.b16 %v2320
    %v2449 = vunpack.c.l.b16 %v2321
    %v2450 = vunpack.c.l.b16 %v2322
    %v2451 = vunpack.c.l.b16 %v2323
    %v2452 = vunpack.c.l.b16 %v2324
    %v2453 = vunpack.c.l.b16 %v2325
    %v2454 = vunpack.c.l.b16 %v2326
    %v2455 = vunpack.c.l.b16 %v2327
    %v2456 = vunpack.c.l.b16 %v2328
    %v2457 = vunpack.c.l.b16 %v2329
    %v2458 = vunpack.c.l.b16 %v2330
    %v2459 = vunpack.c.l.b16 %v2331
    %v2460 = vunpack.c.l.b16 %v2332
    %v2461 = vunpack.c.l.b16 %v2333
    %v2462 = vunpack.c.l.b16 %v2334
    %v2463 = vunpack.c.l.b16 %v2335
    %v2464 = vunpack.c.l.b16 %v2336
    %v2465 = vunpack.c.l.b16 %v2337
    %v2466 = vunpack.c.l.b16 %v2338
    %v2467 = vunpack.c.l.b16 %v2339
    %v2468 = vunpack.c.l.b16 %v2340
    %v2469 = vunpack.c.l.b16 %v2341
    %v2470 = vunpack.c.l.b16 %v2342
    %v2471 = vunpack.c.l.b16 %v2343
    %v2472 = vunpack.c.l.b16 %v2344
    %v2473 = vunpack.c.l.b16 %v2345
    %v2474 = vunpack.c.l.b16 %v2346
    %v2475 = vunpack.c.l.b16 %v2347
    %v2476 = vunpack.c.l.b16 %v2348
    %v2477 = vunpack.c.l.b16 %v2349
    %v2478 = vunpack.c.l.b16 %v2350
    %v2479 = vunpack.c.l.b16 %v2351
    %v2480 = vunpack.c.l.b16 %v2352
    %v2481 = vunpack.c.l.b16 %v2353
    %v2482 = vunpack.c.l.b16 %v2354
    %v2483 = vunpack.c.l.b16 %v2355
    %v2484 = vunpack.c.l.b16 %v2356
    %v2485 = vunpack.c.l.b16 %v2357
    %v2486 = vunpack.c.l.b16 %v2358
    %v2487 = vunpack.c.l.b16 %v2359
    %v2488 = vunpack.c.l.b16 %v2360
    %v2489 = vunpack.c.l.b16 %v2361
    %v2490 = vunpack.c.l.b16 %v2362
    %v2491 = vunpack.c.l.b16 %v2363
    %v2492 = vunpack.c.l.b16 %v2364
    %v2493 = vpack.c.b16 %v2430, %v2429
    %v2494 = vpack.c.b16 %v2432, %v2431
    %v2495 = vpack.c.b16 %v2434, %v2433
    %v2496 = vpack.c.b16 %v2436, %v2435
    %v2497 = vpack.c.b16 %v2438, %v2437
    %v2498 = vpack.c.b16 %v2440, %v2439
    %v2499 = vpack.c.b16 %v2442, %v2441
    %v2500 = vpack.c.b16 %v2444, %v2443
    %v2501 = vpack.c.b16 %v2446, %v2445
    %v2502 = vpack.c.b16 %v2448, %v2447
    %v2503 = vpack.c.b16 %v2450, %v2449
    %v2504 = vpack.c.b16 %v2452, %v2451
    %v2505 = vpack.c.b16 %v2454, %v2453
    %v2506 = vpack.c.b16 %v2456, %v2455
    %v2507 = vpack.c.b16 %v2458, %v2457
    %v2508 = vpack.c.b16 %v2460, %v2459
    %v2509 = vpack.c.b16 %v2462, %v2461
    %v2510 = vpack.c.b16 %v2464, %v2463
    %v2511 = vpack.c.b16 %v2466, %v2465
    %v2512 = vpack.c.b16 %v2468, %v2467
    %v2513 = vpack.c.b16 %v2470, %v2469
    %v2514 = vpack.c.b16 %v2472, %v2471
    %v2515 = vpack.c.b16 %v2474, %v2473
    %v2516 = vpack.c.b16 %v2476, %v2475
    %v2517 = vpack.c.b16 %v2478, %v2477
    %v2518 = vpack.c.b16 %v2480, %v2479
    %v2519 = vpack.c.b16 %v2482, %v2481
    %v2520 = vpack.c.b16 %v2484, %v2483
    %v2521 = vpack.c.b16 %v2486, %v2485
    %v2522 = vpack.c.b16 %v2488, %v2487
    %v2523 = vpack.c.b16 %v2490, %v2489
    %v2524 = vpack.c.b16 %v2492, %v2491
    %2557 = vmatprep.subr.bf16.mxu0 0
    %2558 = vmatpush1.bf16.msra.mxu0 %v2500
    %2559 = vmatprep.subr.bf16.mxu0 0
    %2560 = vmatpush1.bf16.msra.mxu0 %v2499
    %2561 = vmatprep.subr.bf16.mxu0 0
    %2562 = vmatpush1.bf16.msra.mxu0 %v2498
    %2563 = vmatprep.subr.bf16.mxu0 0
    %2564 = vmatpush1.bf16.msra.mxu0 %v2497
    %2565 = vmatprep.subr.bf16.mxu0 0
    %2566 = vmatpush1.bf16.msra.mxu0 %v2496
    %2567 = vmatprep.subr.bf16.mxu0 0
    %2568 = vmatpush1.bf16.msra.mxu0 %v2495
    %2569 = vmatprep.subr.bf16.mxu0 0
    %2570 = vmatpush1.bf16.msra.mxu0 %v2494
    %2571 = vmatprep.subr.bf16.mxu0 0
    %2572 = vmatpush1.bf16.msra.mxu0 %v2493
    %2573 = vmatprep.subr.bf16.mxu0 0
    %2574 = vmatpush2.bf16.msra.mxu0 %v2508
    %2575 = vmatprep.subr.bf16.mxu0 0
    %2576 = vmatpush2.bf16.msra.mxu0 %v2507
    %2577 = vmatprep.subr.bf16.mxu0 0
    %2578 = vmatpush2.bf16.msra.mxu0 %v2506
    %2579 = vmatprep.subr.bf16.mxu0 0
    %2580 = vmatpush2.bf16.msra.mxu0 %v2505
    %2581 = vmatprep.subr.bf16.mxu0 0
    %2582 = vmatpush2.bf16.msra.mxu0 %v2504
    %2583 = vmatprep.subr.bf16.mxu0 0
    %2584 = vmatpush2.bf16.msra.mxu0 %v2503
    %2585 = vmatprep.subr.bf16.mxu0 0
    %2586 = vmatpush2.bf16.msra.mxu0 %v2502
    %2587 = vmatprep.subr.bf16.mxu0 0
    %2588 = vmatpush2.bf16.msra.mxu0 %v2501
    %2589 = vmatprep.mubr.bf16.mxu0 %v2270
    %2590 = vmatmul.mubr.bf16.gmra.mxu0 %v2269
    %v2591 = vpop.f32.mrf.mxu0
    %v2592 = vadd.f32 0.0, %v2591
    %v2593 = vpop.f32.mrf.mxu0
    %v2594 = vpop.f32.mrf.mxu0
    %v2595 = vadd.f32 0.0, %v2594
    %v2596 = vpop.f32.mrf.mxu0
    %2597 = vmatprep.mubr.bf16.mxu0 %v2274
    %2598 = vmatmul.mubr.bf16.gmra.mxu0 %v2273
    %v2599 = vpop.f32.mrf.mxu0
    %v2600 = vadd.f32 0.0, %v2599
    %v2601 = vpop.f32.mrf.mxu0
    %v2602 = vpop.f32.mrf.mxu0
    %v2603 = vadd.f32 0.0, %v2602
    %v2604 = vpop.f32.mrf.mxu0
    %2605 = vmatprep.mubr.bf16.mxu0 %v2278
    %2606 = vmatmul.mubr.bf16.gmra.mxu0 %v2277
    %v2607 = vpop.f32.mrf.mxu0
    %v2608 = vadd.f32 0.0, %v2607
    %v2609 = vpop.f32.mrf.mxu0
    %v2610 = vpop.f32.mrf.mxu0
    %v2611 = vadd.f32 0.0, %v2610
    %v2612 = vpop.f32.mrf.mxu0
    %2613 = vmatprep.mubr.bf16.mxu0 %v2282
    %2614 = vmatmul.mubr.bf16.gmra.mxu0 %v2281
    %v2615 = vpop.f32.mrf.mxu0
    %v2616 = vadd.f32 0.0, %v2615
    %v2617 = vpop.f32.mrf.mxu0
    %v2618 = vpop.f32.mrf.mxu0
    %v2619 = vadd.f32 0.0, %v2618
    %v2620 = vpop.f32.mrf.mxu0
    %2621 = vmatprep.mubr.bf16.mxu0 %v2286
    %2622 = vmatmul.mubr.bf16.gmra.mxu0 %v2285
    %v2623 = vpop.f32.mrf.mxu0
    %v2624 = vadd.f32 0.0, %v2623
    %v2625 = vpop.f32.mrf.mxu0
    %v2626 = vpop.f32.mrf.mxu0
    %v2627 = vadd.f32 0.0, %v2626
    %v2628 = vpop.f32.mrf.mxu0
    %2629 = vmatprep.mubr.bf16.mxu0 %v2290
    %2630 = vmatmul.mubr.bf16.gmra.mxu0 %v2289
    %v2631 = vpop.f32.mrf.mxu0
    %v2632 = vadd.f32 0.0, %v2631
    %v2633 = vpop.f32.mrf.mxu0
    %v2634 = vpop.f32.mrf.mxu0
    %v2635 = vadd.f32 0.0, %v2634
    %v2636 = vpop.f32.mrf.mxu0
    %2637 = vmatprep.mubr.bf16.mxu0 %v2294
    %2638 = vmatmul.mubr.bf16.gmra.mxu0 %v2293
    %v2639 = vpop.f32.mrf.mxu0
    %v2640 = vadd.f32 0.0, %v2639
    %v2641 = vpop.f32.mrf.mxu0
    %v2642 = vpop.f32.mrf.mxu0
    %v2643 = vadd.f32 0.0, %v2642
    %v2644 = vpop.f32.mrf.mxu0
    %2645 = vmatprep.mubr.bf16.mxu0 %v2298
    %2646 = vmatmul.mubr.bf16.gmra.mxu0 %v2297
    %v2647 = vpop.f32.mrf.mxu0
    %v2648 = vadd.f32 0.0, %v2647
    %v2649 = vpop.f32.mrf.mxu0
    %v2650 = vpop.f32.mrf.mxu0
    %v2651 = vadd.f32 0.0, %v2650
    %v2652 = vpop.f32.mrf.mxu0
    %2653 = vdwg.mxu0
    %2654 = vmatprep.subr.bf16.mxu0 0
    %2655 = vmatpush1.bf16.msra.mxu0 %v2516
    %2656 = vmatprep.subr.bf16.mxu0 0
    %2657 = vmatpush1.bf16.msra.mxu0 %v2515
    %2658 = vmatprep.subr.bf16.mxu0 0
    %2659 = vmatpush1.bf16.msra.mxu0 %v2514
    %2660 = vmatprep.subr.bf16.mxu0 0
    %2661 = vmatpush1.bf16.msra.mxu0 %v2513
    %2662 = vmatprep.subr.bf16.mxu0 0
    %2663 = vmatpush1.bf16.msra.mxu0 %v2512
    %2664 = vmatprep.subr.bf16.mxu0 0
    %2665 = vmatpush1.bf16.msra.mxu0 %v2511
    %2666 = vmatprep.subr.bf16.mxu0 0
    %2667 = vmatpush1.bf16.msra.mxu0 %v2510
    %2668 = vmatprep.subr.bf16.mxu0 0
    %2669 = vmatpush1.bf16.msra.mxu0 %v2509
    %2670 = vmatprep.subr.bf16.mxu0 0
    %2671 = vmatpush2.bf16.msra.mxu0 %v2524
    %2672 = vmatprep.subr.bf16.mxu0 0
    %2673 = vmatpush2.bf16.msra.mxu0 %v2523
    %2674 = vmatprep.subr.bf16.mxu0 0
    %2675 = vmatpush2.bf16.msra.mxu0 %v2522
    %2676 = vmatprep.subr.bf16.mxu0 0
    %2677 = vmatpush2.bf16.msra.mxu0 %v2521
    %2678 = vmatprep.subr.bf16.mxu0 0
    %2679 = vmatpush2.bf16.msra.mxu0 %v2520
    %2680 = vmatprep.subr.bf16.mxu0 0
    %2681 = vmatpush2.bf16.msra.mxu0 %v2519
    %2682 = vmatprep.subr.bf16.mxu0 0
    %2683 = vmatpush2.bf16.msra.mxu0 %v2518
    %2684 = vmatprep.subr.bf16.mxu0 0
    %2685 = vmatpush2.bf16.msra.mxu0 %v2517
    %2686 = vmatprep.mubr.bf16.mxu0 %v2272
    %2687 = vmatmul.mubr.bf16.gmra.mxu0 %v2271
    %v2688 = vpop.f32.mrf.mxu0
    %v2689 = vadd.f32 %v2592, %v2688
    %v2690 = vpop.f32.mrf.mxu0
    %v2691 = vpop.f32.mrf.mxu0
    %v2692 = vadd.f32 %v2595, %v2691
    %v2693 = vpop.f32.mrf.mxu0
    %2694 = vmatprep.mubr.bf16.mxu0 %v2276
    %2695 = vmatmul.mubr.bf16.gmra.mxu0 %v2275
    %v2696 = vpop.f32.mrf.mxu0
    %v2697 = vadd.f32 %v2600, %v2696
    %v2698 = vpop.f32.mrf.mxu0
    %v2699 = vpop.f32.mrf.mxu0
    %v2700 = vadd.f32 %v2603, %v2699
    %v2701 = vpop.f32.mrf.mxu0
    %2702 = vmatprep.mubr.bf16.mxu0 %v2280
    %2703 = vmatmul.mubr.bf16.gmra.mxu0 %v2279
    %v2704 = vpop.f32.mrf.mxu0
    %v2705 = vadd.f32 %v2608, %v2704
    %v2706 = vpop.f32.mrf.mxu0
    %v2707 = vpop.f32.mrf.mxu0
    %v2708 = vadd.f32 %v2611, %v2707
    %v2709 = vpop.f32.mrf.mxu0
    %2710 = vmatprep.mubr.bf16.mxu0 %v2284
    %2711 = vmatmul.mubr.bf16.gmra.mxu0 %v2283
    %v2712 = vpop.f32.mrf.mxu0
    %v2713 = vadd.f32 %v2616, %v2712
    %v2714 = vpop.f32.mrf.mxu0
    %v2715 = vpop.f32.mrf.mxu0
    %v2716 = vadd.f32 %v2619, %v2715
    %v2717 = vpop.f32.mrf.mxu0
    %2718 = vmatprep.mubr.bf16.mxu0 %v2288
    %2719 = vmatmul.mubr.bf16.gmra.mxu0 %v2287
    %v2720 = vpop.f32.mrf.mxu0
    %v2721 = vadd.f32 %v2624, %v2720
    %v2722 = vpop.f32.mrf.mxu0
    %v2723 = vpop.f32.mrf.mxu0
    %v2724 = vadd.f32 %v2627, %v2723
    %v2725 = vpop.f32.mrf.mxu0
    %2726 = vmatprep.mubr.bf16.mxu0 %v2292
    %2727 = vmatmul.mubr.bf16.gmra.mxu0 %v2291
    %v2728 = vpop.f32.mrf.mxu0
    %v2729 = vadd.f32 %v2632, %v2728
    %v2730 = vpop.f32.mrf.mxu0
    %v2731 = vpop.f32.mrf.mxu0
    %v2732 = vadd.f32 %v2635, %v2731
    %v2733 = vpop.f32.mrf.mxu0
    %2734 = vmatprep.mubr.bf16.mxu0 %v2296
    %2735 = vmatmul.mubr.bf16.gmra.mxu0 %v2295
    %v2736 = vpop.f32.mrf.mxu0
    %v2737 = vadd.f32 %v2640, %v2736
    %v2738 = vpop.f32.mrf.mxu0
    %v2739 = vpop.f32.mrf.mxu0
    %v2740 = vadd.f32 %v2643, %v2739
    %v2741 = vpop.f32.mrf.mxu0
    %2742 = vmatprep.mubr.bf16.mxu0 %v2300
    %2743 = vmatmul.mubr.bf16.gmra.mxu0 %v2299
    %v2744 = vpop.f32.mrf.mxu0
    %v2745 = vadd.f32 %v2648, %v2744
    %v2746 = vpop.f32.mrf.mxu0
    %v2747 = vpop.f32.mrf.mxu0
    %v2748 = vadd.f32 %v2651, %v2747
    %v2749 = vpop.f32.mrf.mxu0
    %2750 = vdwg.mxu0
    %v2751 = vpack.c.bf16 %v57, %v56
    %v2752 = vpack.c.bf16 %v59, %v58
    %v2753 = vpack.c.bf16 %v61, %v60
    %v2754 = vpack.c.bf16 %v63, %v62
    %v2755 = vpack.c.bf16 %v65, %v64
    %v2756 = vpack.c.bf16 %v67, %v66
    %v2757 = vpack.c.bf16 %v69, %v68
    %v2758 = vpack.c.bf16 %v71, %v70
    %v2759 = vld [vmem:[%s9] sm:$0xf]
    %v2760 = vld [vmem:[%s9 + $0x4] sm:$0xf]
    %v2761 = vld [vmem:[%s9 + $0x8] sm:$0xf]
    %v2762 = vld [vmem:[%s9 + $0xc] sm:$0xf]
    %v2763 = vld [vmem:[%s9 + $0x10] sm:$0xf]
    %v2764 = vld [vmem:[%s9 + $0x14] sm:$0xf]
    %v2765 = vld [vmem:[%s9 + $0x18] sm:$0xf]
    %v2766 = vld [vmem:[%s9 + $0x1c] sm:$0xf]
    %v2767 = vld [vmem:[%s9 + $0x20] sm:$0xf]
    %v2768 = vld [vmem:[%s9 + $0x24] sm:$0xf]
    %v2769 = vld [vmem:[%s9 + $0x28] sm:$0xf]
    %v2770 = vld [vmem:[%s9 + $0x2c] sm:$0xf]
    %v2771 = vld [vmem:[%s9 + $0x30] sm:$0xf]
    %v2772 = vld [vmem:[%s9 + $0x34] sm:$0xf]
    %v2773 = vld [vmem:[%s9 + $0x38] sm:$0xf]
    %v2774 = vld [vmem:[%s9 + $0x3c] sm:$0xf]
    %v2775 = vld [vmem:[%s10] sm:$0x1]
    %v2777 = vlaneseq
    %v2778 = vshrl.u32 %v2777, 7
    %v2779 = vsub.s32 0, %v2778
    %v2780 = vrot.slane %v2775, %v2779
    %v2798 = vunpack.c.l.b16 %v2759
    %v2799 = vunpack.c.l.b16 %v2760
    %v2800 = vunpack.c.l.b16 %v2761
    %v2801 = vunpack.c.l.b16 %v2762
    %v2802 = vunpack.c.l.b16 %v2763
    %v2803 = vunpack.c.l.b16 %v2764
    %v2804 = vunpack.c.l.b16 %v2765
    %v2805 = vunpack.c.l.b16 %v2766
    %v2806 = vunpack.c.l.b16 %v2767
    %v2807 = vunpack.c.l.b16 %v2768
    %v2808 = vunpack.c.l.b16 %v2769
    %v2809 = vunpack.c.l.b16 %v2770
    %v2810 = vunpack.c.l.b16 %v2771
    %v2811 = vunpack.c.l.b16 %v2772
    %v2812 = vunpack.c.l.b16 %v2773
    %v2813 = vunpack.c.l.b16 %v2774
    %v2814 = vpack.c.b16 %v2799, %v2798
    %v2815 = vpack.c.b16 %v2801, %v2800
    %v2816 = vpack.c.b16 %v2803, %v2802
    %v2817 = vpack.c.b16 %v2805, %v2804
    %v2818 = vpack.c.b16 %v2807, %v2806
    %v2819 = vpack.c.b16 %v2809, %v2808
    %v2820 = vpack.c.b16 %v2811, %v2810
    %v2821 = vpack.c.b16 %v2813, %v2812
    %2830 = vmatprep.subr.bf16.mxu0 0
    %2831 = vmatpush1.bf16.msra.mxu0 %v2821
    %2832 = vmatprep.subr.bf16.mxu0 0
    %2833 = vmatpush1.bf16.msra.mxu0 %v2820
    %2834 = vmatprep.subr.bf16.mxu0 0
    %2835 = vmatpush1.bf16.msra.mxu0 %v2819
    %2836 = vmatprep.subr.bf16.mxu0 0
    %2837 = vmatpush1.bf16.msra.mxu0 %v2818
    %2838 = vmatprep.subr.bf16.mxu0 0
    %2839 = vmatpush1.bf16.msra.mxu0 %v2817
    %2840 = vmatprep.subr.bf16.mxu0 0
    %2841 = vmatpush1.bf16.msra.mxu0 %v2816
    %2842 = vmatprep.subr.bf16.mxu0 0
    %2843 = vmatpush1.bf16.msra.mxu0 %v2815
    %2844 = vmatprep.subr.bf16.mxu0 0
    %2845 = vmatpush1.bf16.msra.mxu0 %v2814
    %2846 = vmatprep.subr.bf16.mxu0 0
    %2847 = vmatpush2.bf16.msra.mxu0 0
    %2848 = vmatprep.subr.bf16.mxu0 0
    %2849 = vmatpush2.bf16.msra.mxu0 0
    %2850 = vmatprep.subr.bf16.mxu0 0
    %2851 = vmatpush2.bf16.msra.mxu0 0
    %2852 = vmatprep.subr.bf16.mxu0 0
    %2853 = vmatpush2.bf16.msra.mxu0 0
    %2854 = vmatprep.subr.bf16.mxu0 0
    %2855 = vmatpush2.bf16.msra.mxu0 0
    %2856 = vmatprep.subr.bf16.mxu0 0
    %2857 = vmatpush2.bf16.msra.mxu0 0
    %2858 = vmatprep.subr.bf16.mxu0 0
    %2859 = vmatpush2.bf16.msra.mxu0 0
    %2860 = vmatprep.subr.bf16.mxu0 0
    %2861 = vmatpush2.bf16.msra.mxu0 0
    %2862 = vmatprep.mubr.bf16.mxu0 0
    %2863 = vmatmul.mubr.bf16.gmra.mxu0 %v2751
    %v2864 = vpop.f32.mrf.mxu0
    %v2865 = vadd.f32 %v2780, %v2864
    %v2866 = vpop.f32.mrf.mxu0
    %v2867 = vpop.f32.mrf.mxu0
    %v2868 = vadd.f32 %v2780, %v2867
    %v2869 = vpop.f32.mrf.mxu0
    %2870 = vmatprep.mubr.bf16.mxu0 0
    %2871 = vmatmul.mubr.bf16.gmra.mxu0 %v2752
    %v2872 = vpop.f32.mrf.mxu0
    %v2873 = vadd.f32 %v2780, %v2872
    %v2874 = vpop.f32.mrf.mxu0
    %v2875 = vpop.f32.mrf.mxu0
    %v2876 = vadd.f32 %v2780, %v2875
    %v2877 = vpop.f32.mrf.mxu0
    %2878 = vmatprep.mubr.bf16.mxu0 0
    %2879 = vmatmul.mubr.bf16.gmra.mxu0 %v2753
    %v2880 = vpop.f32.mrf.mxu0
    %v2881 = vadd.f32 %v2780, %v2880
    %v2882 = vpop.f32.mrf.mxu0
    %v2883 = vpop.f32.mrf.mxu0
    %v2884 = vadd.f32 %v2780, %v2883
    %v2885 = vpop.f32.mrf.mxu0
    %2886 = vmatprep.mubr.bf16.mxu0 0
    %2887 = vmatmul.mubr.bf16.gmra.mxu0 %v2754
    %v2888 = vpop.f32.mrf.mxu0
    %v2889 = vadd.f32 %v2780, %v2888
    %v2890 = vpop.f32.mrf.mxu0
    %v2891 = vpop.f32.mrf.mxu0
    %v2892 = vadd.f32 %v2780, %v2891
    %v2893 = vpop.f32.mrf.mxu0
    %2894 = vmatprep.mubr.bf16.mxu0 0
    %2895 = vmatmul.mubr.bf16.gmra.mxu0 %v2755
    %v2896 = vpop.f32.mrf.mxu0
    %v2897 = vadd.f32 %v2780, %v2896
    %v2898 = vpop.f32.mrf.mxu0
    %v2899 = vpop.f32.mrf.mxu0
    %v2900 = vadd.f32 %v2780, %v2899
    %v2901 = vpop.f32.mrf.mxu0
    %2902 = vmatprep.mubr.bf16.mxu0 0
    %2903 = vmatmul.mubr.bf16.gmra.mxu0 %v2756
    %v2904 = vpop.f32.mrf.mxu0
    %v2905 = vadd.f32 %v2780, %v2904
    %v2906 = vpop.f32.mrf.mxu0
    %v2907 = vpop.f32.mrf.mxu0
    %v2908 = vadd.f32 %v2780, %v2907
    %v2909 = vpop.f32.mrf.mxu0
    %2910 = vmatprep.mubr.bf16.mxu0 0
    %2911 = vmatmul.mubr.bf16.gmra.mxu0 %v2757
    %v2912 = vpop.f32.mrf.mxu0
    %v2913 = vadd.f32 %v2780, %v2912
    %v2914 = vpop.f32.mrf.mxu0
    %v2915 = vpop.f32.mrf.mxu0
    %v2916 = vadd.f32 %v2780, %v2915
    %v2917 = vpop.f32.mrf.mxu0
    %2918 = vmatprep.mubr.bf16.mxu0 0
    %2919 = vmatmul.mubr.bf16.gmra.mxu0 %v2758
    %v2920 = vpop.f32.mrf.mxu0
    %v2921 = vadd.f32 %v2780, %v2920
    %v2922 = vpop.f32.mrf.mxu0
    %v2923 = vpop.f32.mrf.mxu0
    %v2924 = vadd.f32 %v2780, %v2923
    %v2925 = vpop.f32.mrf.mxu0
    %2926 = vdwg.mxu0
    %v2927 = vxor.u32 %v2865, 2147483648
    %v2928 = vxor.u32 %v2868, 2147483648
    %v2929 = vxor.u32 %v2873, 2147483648
    %v2930 = vxor.u32 %v2876, 2147483648
    %v2931 = vxor.u32 %v2881, 2147483648
    %v2932 = vxor.u32 %v2884, 2147483648
    %v2933 = vxor.u32 %v2889, 2147483648
    %v2934 = vxor.u32 %v2892, 2147483648
    %v2935 = vxor.u32 %v2897, 2147483648
    %v2936 = vxor.u32 %v2900, 2147483648
    %v2937 = vxor.u32 %v2905, 2147483648
    %v2938 = vxor.u32 %v2908, 2147483648
    %v2939 = vxor.u32 %v2913, 2147483648
    %v2940 = vxor.u32 %v2916, 2147483648
    %v2941 = vxor.u32 %v2921, 2147483648
    %v2942 = vxor.u32 %v2924, 2147483648
    %v2943 = vmul.f32 %v2927, 1.442695
    %v2944 = vpow.pop %v2943
    %v2945 = vmul.f32 %v2928, 1.442695
    %v2946 = vpow.pop %v2945
    %v2947 = vmul.f32 %v2929, 1.442695
    %v2948 = vpow.pop %v2947
    %v2949 = vmul.f32 %v2930, 1.442695
    %v2950 = vpow.pop %v2949
    %v2951 = vmul.f32 %v2931, 1.442695
    %v2952 = vpow.pop %v2951
    %v2953 = vmul.f32 %v2932, 1.442695
    %v2954 = vpow.pop %v2953
    %v2955 = vmul.f32 %v2933, 1.442695
    %v2956 = vpow.pop %v2955
    %v2957 = vmul.f32 %v2934, 1.442695
    %v2958 = vpow.pop %v2957
    %v2959 = vmul.f32 %v2935, 1.442695
    %v2960 = vpow.pop %v2959
    %v2961 = vmul.f32 %v2936, 1.442695
    %v2962 = vpow.pop %v2961
    %v2963 = vmul.f32 %v2937, 1.442695
    %v2964 = vpow.pop %v2963
    %v2965 = vmul.f32 %v2938, 1.442695
    %v2966 = vpow.pop %v2965
    %v2967 = vmul.f32 %v2939, 1.442695
    %v2968 = vpow.pop %v2967
    %v2969 = vmul.f32 %v2940, 1.442695
    %v2970 = vpow.pop %v2969
    %v2971 = vmul.f32 %v2941, 1.442695
    %v2972 = vpow.pop %v2971
    %v2973 = vmul.f32 %v2942, 1.442695
    %v2974 = vpow.pop %v2973
    %v2975 = vadd.f32 %v2944, 1.0
    %v2976 = vadd.f32 %v2946, 1.0
    %v2977 = vadd.f32 %v2948, 1.0
    %v2978 = vadd.f32 %v2950, 1.0
    %v2979 = vadd.f32 %v2952, 1.0
    %v2980 = vadd.f32 %v2954, 1.0
    %v2981 = vadd.f32 %v2956, 1.0
    %v2982 = vadd.f32 %v2958, 1.0
    %v2983 = vadd.f32 %v2960, 1.0
    %v2984 = vadd.f32 %v2962, 1.0
    %v2985 = vadd.f32 %v2964, 1.0
    %v2986 = vadd.f32 %v2966, 1.0
    %v2987 = vadd.f32 %v2968, 1.0
    %v2988 = vadd.f32 %v2970, 1.0
    %v2989 = vadd.f32 %v2972, 1.0
    %v2990 = vadd.f32 %v2974, 1.0
    %v2991 = vrcp.pop %v2975
    %v2992 = vmul.f32 1.0, %v2991
    %v2993 = vrcp.pop %v2976
    %v2994 = vmul.f32 1.0, %v2993
    %v2995 = vrcp.pop %v2977
    %v2996 = vmul.f32 1.0, %v2995
    %v2997 = vrcp.pop %v2978
    %v2998 = vmul.f32 1.0, %v2997
    %v2999 = vrcp.pop %v2979
    %v3000 = vmul.f32 1.0, %v2999
    %v3001 = vrcp.pop %v2980
    %v3002 = vmul.f32 1.0, %v3001
    %v3003 = vrcp.pop %v2981
    %v3004 = vmul.f32 1.0, %v3003
    %v3005 = vrcp.pop %v2982
    %v3006 = vmul.f32 1.0, %v3005
    %v3007 = vrcp.pop %v2983
    %v3008 = vmul.f32 1.0, %v3007
    %v3009 = vrcp.pop %v2984
    %v3010 = vmul.f32 1.0, %v3009
    %v3011 = vrcp.pop %v2985
    %v3012 = vmul.f32 1.0, %v3011
    %v3013 = vrcp.pop %v2986
    %v3014 = vmul.f32 1.0, %v3013
    %v3015 = vrcp.pop %v2987
    %v3016 = vmul.f32 1.0, %v3015
    %v3017 = vrcp.pop %v2988
    %v3018 = vmul.f32 1.0, %v3017
    %v3019 = vrcp.pop %v2989
    %v3020 = vmul.f32 1.0, %v3019
    %v3021 = vrcp.pop %v2990
    %v3022 = vmul.f32 1.0, %v3021
    %v3023 = vmul.f32 %v2689, %v2992
    %v3024 = vmul.f32 %v2692, %v2994
    %v3025 = vmul.f32 %v2697, %v2996
    %v3026 = vmul.f32 %v2700, %v2998
    %v3027 = vmul.f32 %v2705, %v3000
    %v3028 = vmul.f32 %v2708, %v3002
    %v3029 = vmul.f32 %v2713, %v3004
    %v3030 = vmul.f32 %v2716, %v3006
    %v3031 = vmul.f32 %v2721, %v3008
    %v3032 = vmul.f32 %v2724, %v3010
    %v3033 = vmul.f32 %v2729, %v3012
    %v3034 = vmul.f32 %v2732, %v3014
    %v3035 = vmul.f32 %v2737, %v3016
    %v3036 = vmul.f32 %v2740, %v3018
    %v3037 = vmul.f32 %v2745, %v3020
    %v3038 = vmul.f32 %v2748, %v3022
    %3039 = vst [vmem:[#allocation2] sm:$0xff] %v3023
    %3040 = vst [vmem:[#allocation2 + $0x8] sm:$0xff] %v3024
    %3041 = vst [vmem:[#allocation2 + $0x10] sm:$0xff] %v3025
    %3042 = vst [vmem:[#allocation2 + $0x18] sm:$0xff] %v3026
    %3043 = vst [vmem:[#allocation2 + $0x20] sm:$0xff] %v3027
    %3044 = vst [vmem:[#allocation2 + $0x28] sm:$0xff] %v3028
    %3045 = vst [vmem:[#allocation2 + $0x30] sm:$0xff] %v3029
    %3046 = vst [vmem:[#allocation2 + $0x38] sm:$0xff] %v3030
    %3047 = vst [vmem:[#allocation2 + $0x40] sm:$0xff] %v3031
    %3048 = vst [vmem:[#allocation2 + $0x48] sm:$0xff] %v3032
    %3049 = vst [vmem:[#allocation2 + $0x50] sm:$0xff] %v3033
    %3050 = vst [vmem:[#allocation2 + $0x58] sm:$0xff] %v3034
    %3051 = vst [vmem:[#allocation2 + $0x60] sm:$0xff] %v3035
    %3052 = vst [vmem:[#allocation2 + $0x68] sm:$0xff] %v3036
    %3053 = vst [vmem:[#allocation2 + $0x70] sm:$0xff] %v3037
    %3054 = vst [vmem:[#allocation2 + $0x78] sm:$0xff] %v3038
    // Predicated region
    $region46: #{condition_wrapper_transition.1} parent=1 // pred_check
      _
    $region47: #{condition_wrapper_transition.1} parent=1 // pred_check_branch
      %3056 = sbr.rel (0) target = $region49
    $region48: #{condition_wrapper_transition.1} parent=1 // pred_region
      %s3058 = ssub.s32 2048, 2048
      %3059 = vsyncadd [#allocation3], %s3058
      %s3060 = sshll.u32 [#allocation2], 4
      %s3061 = int_to_ptr.vmem [resolvable:$true] %s3060
      %3066 = dma.vmem_to_hbm [thread:$0]  %s3061, 2048, %s11, [#allocation3], 128, 128, 8
    $region49: #{condition_wrapper_transition.1} parent=1 // pred_fallthru
      _
    // Predicated region
    $region50: #{condition_wrapper_transition.1} parent=1 // pred_check
      _
    $region51: #{condition_wrapper_transition.1} parent=1 // pred_check_branch
      %3068 = sbr.rel (0) target = $region53
    $region52: #{condition_wrapper_transition.1} parent=1 // pred_region
      %3069 = dma.done [#allocation3], 2048
    $region53: #{condition_wrapper_transition.1} parent=1 // pred_fallthru
      _
    %3070 = vsyncpa [#allocation3], 1

</llo_original>
